<compile_context>
chip_gen: v6e
topology: v6e:2x2x1
jax: 0.10.0
libtpu: 0.0.40
codegen_flags: <defaults>
</compile_context>

<pallas_src>
import functools

import jax
import jax.numpy as jnp
import numpy as np
from jax.experimental import pallas as pl
from jax.experimental.pallas import tpu as pltpu


HIDDEN = 750
HIDDEN_PAD = 768  # round_up(750, 128): lane-aligned hidden width


def _round_up(x, m):
    return ((x + m - 1) // m) * m


def _tensorcores_per_chip():
    """2 for megacore chips (v7x, v4, v5p), 1 for v5e/v6e; default 1 is safe."""
    try:
        kind = jax.devices()[0].device_kind.lower()
    except Exception:
        return 1
    if "v7" in kind or "tpu7" in kind or "v4" in kind or "v5p" in kind:
        return 2
    return 1


def _vae_kernel(sa_ref, eps_ref,
                w_e1_ref, b_e1_ref,
                w_e2q_ref, s_e2_ref, b_e2_ref,
                w_ms_ref, b_ms_ref,
                w_d1s_ref, w_d1z_ref, b_d1_ref,
                w_d2q_ref, s_d2_ref, b_d2_ref,
                w_d3_ref, b_d3_ref,
                out_ref, *, latent_dim, max_action):
    f32 = jnp.float32
    bf16 = jnp.bfloat16
    L = latent_dim

    sa = sa_ref[...]  # bf16 [tb, SA_PAD] = [state | action | 0]

    def deq(wq_ref):
        # int8 weight -> bf16 operand (via f32; the MXU only ever sees bf16,
        # so this is generation-agnostic — no reliance on an int MXU path).
        return wq_ref[...].astype(f32).astype(bf16)

    # ---------------- encoder ----------------
    z = jnp.dot(sa, w_e1_ref[...], preferred_element_type=f32) + b_e1_ref[...]
    z = jnp.maximum(z, 0.0)
    # e2: int8 weight, per-output-channel scale applied to the f32 accumulator.
    z = (jnp.dot(z.astype(bf16), deq(w_e2q_ref), preferred_element_type=f32)
         * s_e2_ref[...] + b_e2_ref[...])
    z = jnp.maximum(z, 0.0)

    # fused mean/log_std head, already placed at cols [0:L) / [L:2L) of a
    # 128-lane output (remaining weight/bias columns are zero).
    ms = jnp.dot(z.astype(bf16), w_ms_ref[...], preferred_element_type=f32) + b_ms_ref[...]
    std_all = jnp.exp(jnp.clip(ms, -4.0, 15.0))   # single clip+exp pass, reused below
    mean = ms[:, :L]
    std = std_all[:, L:2 * L]
    lat = mean + std * eps_ref[...]               # reparameterization (eps passed in)

    # ---------------- decoder ----------------
    # d1 split-K: state part reuses `sa` (weights are zero over action/pad cols).
    a = (jnp.dot(sa, w_d1s_ref[...], preferred_element_type=f32)
         + jnp.dot(lat.astype(bf16), w_d1z_ref[...], preferred_element_type=f32)
         + b_d1_ref[...])
    a = jnp.maximum(a, 0.0)
    a = (jnp.dot(a.astype(bf16), deq(w_d2q_ref), preferred_element_type=f32)
         * s_d2_ref[...] + b_d2_ref[...])
    a = jnp.maximum(a, 0.0)

    # d3 weights/bias are pre-placed at cols [2L, 2L+A) of the 128-lane layout,
    # so u lands directly at its packed-output lanes (tanh(0)=0 elsewhere).
    u_full = max_action * jnp.tanh(
        jnp.dot(a.astype(bf16), w_d3_ref[...], preferred_element_type=f32) + b_d3_ref[...])

    # Packed lane-dense output: [mean | std | u | 0] — elementwise select + add
    # only, one unmasked full-width store, split in the wrapper.
    col = jax.lax.broadcasted_iota(jnp.int32, ms.shape, 1)
    msd = jnp.where(col < L, ms, jnp.where(col < 2 * L, std_all, 0.0))
    out_ref[...] = (msd + u_full).astype(out_ref.dtype)


def vae_forward(state, action, eps, kernel_params, *, latent_dim, max_action,
                max_tile_b=512):
    """Pallas implementation of VAE.forward(state, action) -> (u, mean, std)."""
    B, S = state.shape
    A = action.shape[1]
    L = latent_dim
    SA_PAD = kernel_params["w_e1"].shape[0]
    OUT_PAD = kernel_params["w_d3"].shape[1]       # >= 2L + A, multiple of 128

    # Generation-aware batch tiling: large tiles amortize the ~0.35 us/step
    # grid overhead; split across >=2 tiles only on multi-TensorCore chips.
    n_tc = _tensorcores_per_chip()
    if B <= 8 or n_tc == 1:
        tile_b = min(max_tile_b, _round_up(B, 8))
    else:
        tile_b = min(max_tile_b, _round_up(pl.cdiv(B, n_tc), 8))
    pB = _round_up(B, tile_b)

    # One HBM-side concat (tiny: B*(S+A)*2 bytes) makes e1 a single matmul.
    sa = jnp.concatenate([state, action], axis=1).astype(jnp.bfloat16)
    sa = jnp.pad(sa, ((0, pB - B), (0, SA_PAD - (S + A))))
    eps_p = jnp.pad(eps.astype(jnp.float32), ((0, pB - B), (0, 0)))

    kp = kernel_params
    weights = (kp["w_e1"], kp["b_e1"],
               kp["w_e2q"], kp["s_e2"], kp["b_e2"],
               kp["w_ms"], kp["b_ms"],
               kp["w_d1s"], kp["w_d1z"], kp["b_d1"],
               kp["w_d2q"], kp["s_d2"], kp["b_d2"],
               kp["w_d3"], kp["b_d3"])

    def batch_spec(cols):
        return pl.BlockSpec((tile_b, cols), lambda i: (i, 0))

    def full_spec(x):
        # Whole weight resident in VMEM with a constant index_map: DMA'd once,
        # never re-fetched across batch tiles.
        return pl.BlockSpec(x.shape, lambda i: (0, 0))

    in_specs = [batch_spec(SA_PAD), batch_spec(L)] + [full_spec(w) for w in weights]
    out_specs = batch_spec(OUT_PAD)
    out_shape = jax.ShapeDtypeStruct((pB, OUT_PAD), jnp.float32)

    kernel = functools.partial(_vae_kernel, latent_dim=L,
                               max_action=float(max_action))

    packed = pl.pallas_call(
        kernel,
        out_shape=out_shape,
        grid=(pB // tile_b,),
        in_specs=in_specs,
        out_specs=out_specs,
        compiler_params=pltpu.CompilerParams(
            dimension_semantics=("parallel",),
            vmem_limit_bytes=32 * 1024 * 1024,  # safe on v5e/v6e and v7x (64 MiB phys)
        ),
    )(sa, eps_p, *weights)

    mean = packed[:B, :L]
    std = packed[:B, L:2 * L]
    u = packed[:B, 2 * L:2 * L + A]
    return u, mean, std


def init_vae_params(key, state_dim, action_dim, latent_dim):
    """torch.nn.Linear-style init (uniform +-1/sqrt(fan_in)), [in, out] layout."""
    dims = {
        "e1": (state_dim + action_dim, HIDDEN),
        "e2": (HIDDEN, HIDDEN),
        "mean": (HIDDEN, latent_dim),
        "log_std": (HIDDEN, latent_dim),
        "d1": (state_dim + latent_dim, HIDDEN),
        "d2": (HIDDEN, HIDDEN),
        "d3": (HIDDEN, action_dim),
    }
    params = {}
    for name, (fan_in, fan_out) in dims.items():
        key, kw, kb = jax.random.split(key, 3)
        bound = 1.0 / np.sqrt(fan_in)
        w = jax.random.uniform(kw, (fan_in, fan_out), jnp.float32, -bound, bound)
        b = jax.random.uniform(kb, (1, fan_out), jnp.float32, -bound, bound)
        params[name] = (w, b)
    return params


def _pad_to(x, rows=None, cols=None):
    r = x.shape[0] if rows is None else rows
    c = x.shape[1] if cols is None else cols
    return jnp.pad(x, ((0, r - x.shape[0]), (0, c - x.shape[1])))


def _quantize_int8(w):
    """Symmetric per-output-channel int8 quantization; dequant = wq * scale."""
    amax = jnp.max(jnp.abs(w), axis=0, keepdims=True)
    scale = jnp.maximum(amax, 1e-8) / 127.0
    wq = jnp.clip(jnp.round(w / scale), -127.0, 127.0).astype(jnp.int8)
    return wq, scale.astype(jnp.float32)


def prepare_kernel_params(params, state_dim, action_dim, latent_dim):
    """Fuse / zero-pad / quantize the torch-style params for the kernel.

    All padding is exact (padded units have zero weights/biases and zero
    outgoing weights).  The only approximation is the per-channel int8
    quantization of the two 768x768 matrices (w_e2, w_d2), which dominate
    weight HBM traffic.  Biases and scales stay f32; other weights bf16.
    """
    S, A, L = state_dim, action_dim, latent_dim
    SA_PAD = _round_up(S + A, 8)
    OUT_PAD = _round_up(2 * L + A, 128)   # packed output: [mean | std | u | 0]
    HP = HIDDEN_PAD
    bf16 = jnp.bfloat16

    w_e1, b_e1 = params["e1"]
    w_e2, b_e2 = params["e2"]
    w_m, b_m = params["mean"]
    w_ls, b_ls = params["log_std"]
    w_d1, b_d1 = params["d1"]
    w_d2, b_d2 = params["d2"]
    w_d3, b_d3 = params["d3"]

    w_e2q, s_e2 = _quantize_int8(_pad_to(w_e2, rows=HP, cols=HP))
    w_d2q, s_d2 = _quantize_int8(_pad_to(w_d2, rows=HP, cols=HP))

    # fused mean/log_std head placed at output cols [0:L) / [L:2L)
    w_ms = jnp.zeros((HP, OUT_PAD), jnp.float32)
    w_ms = w_ms.at[:HIDDEN, :L].set(w_m).at[:HIDDEN, L:2 * L].set(w_ls)
    b_ms = jnp.zeros((1, OUT_PAD), jnp.float32)
    b_ms = b_ms.at[:, :L].set(b_m).at[:, L:2 * L].set(b_ls)

    # d3 head placed at output cols [2L, 2L+A) of the same 128-lane layout
    w_d3p = jnp.zeros((HP, OUT_PAD), jnp.float32).at[:HIDDEN, 2 * L:2 * L + A].set(w_d3)
    b_d3p = jnp.zeros((1, OUT_PAD), jnp.float32).at[:, 2 * L:2 * L + A].set(b_d3)

    return {
        # e1 fused over the [state | action | pad] input layout
        "w_e1": _pad_to(w_e1, rows=SA_PAD, cols=HP).astype(bf16),
        "b_e1": _pad_to(b_e1, cols=HP),
        "w_e2q": w_e2q, "s_e2": s_e2, "b_e2": _pad_to(b_e2, cols=HP),
        "w_ms": w_ms.astype(bf16), "b_ms": b_ms,
        # d1 split-K: state part reuses the [state | action | pad] input with
        # zero rows over the action/pad columns; latent part is separate.
        "w_d1s": _pad_to(w_d1[:S], rows=SA_PAD, cols=HP).astype(bf16),
        "w_d1z": _pad_to(w_d1[S:], cols=HP).astype(bf16),
        "b_d1": _pad_to(b_d1, cols=HP),
        "w_d2q": w_d2q, "s_d2": s_d2, "b_d2": _pad_to(b_d2, cols=HP),
        "w_d3": w_d3p.astype(bf16), "b_d3": b_d3p,
    }


def vae_forward_ref(state, action, eps, kp, *, latent_dim, max_action):
    """Plain-JAX reference mirroring the kernel's arithmetic exactly
    (bf16 operands, f32 accumulation, int8-dequant weights, fused/padded heads)."""
    bf16, f32 = jnp.bfloat16, jnp.float32
    S = state.shape[1]
    A = action.shape[1]
    L = latent_dim
    SA_PAD = kp["w_e1"].shape[0]

    sa = jnp.concatenate([state, action], axis=1).astype(bf16)
    sa = jnp.pad(sa, ((0, 0), (0, SA_PAD - (S + A))))

    def dot(x, w):
        return jnp.dot(x.astype(bf16), w, preferred_element_type=f32)

    def deq(wq):
        return wq.astype(f32).astype(bf16)

    z = jnp.maximum(dot(sa, kp["w_e1"]) + kp["b_e1"], 0.0)
    z = jnp.maximum(dot(z, deq(kp["w_e2q"])) * kp["s_e2"] + kp["b_e2"], 0.0)
    ms = dot(z, kp["w_ms"]) + kp["b_ms"]
    mean = ms[:, :L]
    std = jnp.exp(jnp.clip(ms[:, L:2 * L], -4.0, 15.0))
    lat = mean + std * eps
    a = jnp.maximum(dot(sa, kp["w_d1s"]) + dot(lat, kp["w_d1z"]) + kp["b_d1"], 0.0)
    a = jnp.maximum(dot(a, deq(kp["w_d2q"])) * kp["s_d2"] + kp["b_d2"], 0.0)
    u_full = max_action * jnp.tanh(dot(a, kp["w_d3"]) + kp["b_d3"])
    return u_full[:, 2 * L:2 * L + A], mean, std


def vae_forward_fp32_ref(state, action, eps, params, max_action):
    """Full-precision reference of the original PyTorch forward (semantics check)."""
    w_e1, b_e1 = params["e1"]
    w_e2, b_e2 = params["e2"]
    w_m, b_m = params["mean"]
    w_ls, b_ls = params["log_std"]
    w_d1, b_d1 = params["d1"]
    w_d2, b_d2 = params["d2"]
    w_d3, b_d3 = params["d3"]
    z = jnp.maximum(jnp.concatenate([state, action], 1) @ w_e1 + b_e1, 0.0)
    z = jnp.maximum(z @ w_e2 + b_e2, 0.0)
    mean = z @ w_m + b_m
    log_std = jnp.clip(z @ w_ls + b_ls, -4.0, 15.0)
    std = jnp.exp(log_std)
    lat = mean + std * eps
    a = jnp.maximum(jnp.concatenate([state, lat], 1) @ w_d1 + b_d1, 0.0)
    a = jnp.maximum(a @ w_d2 + b_d2, 0.0)
    u = max_action * jnp.tanh(a @ w_d3 + b_d3)
    return u, mean, std


if __name__ == "__main__":
    # AntBulletEnv-v0: state_dim=28, action_dim=8; BCQ uses latent_dim=2*action_dim.
    state_dim, action_dim = 28, 8
    latent_dim = 2 * action_dim
    max_action = 1.0
    batch = 32

    key = jax.random.PRNGKey(0)
    kparam, ks, ka, ke = jax.random.split(key, 4)
    params = init_vae_params(kparam, state_dim, action_dim, latent_dim)
    kernel_params = prepare_kernel_params(params, state_dim, action_dim, latent_dim)

    state = jax.random.normal(ks, (batch, state_dim), jnp.float32)
    action = jax.random.normal(ka, (batch, action_dim), jnp.float32)
    # torch.randn_like(std) -> explicit eps input (reparameterization trick),
    # generated in the JAX wrapper so the kernel stays deterministic/verifiable.
    eps = jax.random.normal(ke, (batch, latent_dim), jnp.float32)

    u, mean, std = vae_forward(state, action, eps, kernel_params,
                               latent_dim=latent_dim, max_action=max_action)
    u = jax.block_until_ready(u)
    mean = jax.block_until_ready(mean)
    std = jax.block_until_ready(std)

    assert u.shape == (batch, action_dim)
    assert mean.shape == (batch, latent_dim) and std.shape == (batch, latent_dim)

    # Exact mirror of the kernel arithmetic (bf16 + int8-dequant) -> tight tol.
    u_r, mean_r, std_r = vae_forward_ref(state, action, eps, kernel_params,
                                         latent_dim=latent_dim, max_action=max_action)
    np.testing.assert_allclose(np.asarray(u), np.asarray(u_r), rtol=2e-3, atol=2e-3)
    np.testing.assert_allclose(np.asarray(mean), np.asarray(mean_r), rtol=2e-3, atol=2e-3)
    np.testing.assert_allclose(np.asarray(std), np.asarray(std_r), rtol=2e-3, atol=2e-3)

    # Full-precision semantics check (loose: bf16 + int8 weight-quant error budget).
    u_f, mean_f, std_f = vae_forward_fp32_ref(state, action, eps, params, max_action)
    np.testing.assert_allclose(np.asarray(u), np.asarray(u_f), rtol=5e-2, atol=5e-2)
    np.testing.assert_allclose(np.asarray(mean), np.asarray(mean_f), rtol=5e-2, atol=5e-2)
    np.testing.assert_allclose(np.asarray(std), np.asarray(std_f), rtol=5e-2, atol=5e-2)

    print("KERNEL_OK")
</pallas_src>

<mosaic_0001>
module attributes {stable_mosaic.version = 11 : i64} {
  func.func @_vae_kernel(%arg0: i32, %arg1: memref<32x40xbf16, #tpu.memory_space<vmem>>, %arg2: memref<32x16xf32, #tpu.memory_space<vmem>>, %arg3: memref<40x768xbf16, #tpu.memory_space<vmem>>, %arg4: memref<1x768xf32, #tpu.memory_space<vmem>>, %arg5: memref<768x768xi8, #tpu.memory_space<vmem>>, %arg6: memref<1x768xf32, #tpu.memory_space<vmem>>, %arg7: memref<1x768xf32, #tpu.memory_space<vmem>>, %arg8: memref<768x128xbf16, #tpu.memory_space<vmem>>, %arg9: memref<1x128xf32, #tpu.memory_space<vmem>>, %arg10: memref<40x768xbf16, #tpu.memory_space<vmem>>, %arg11: memref<16x768xbf16, #tpu.memory_space<vmem>>, %arg12: memref<1x768xf32, #tpu.memory_space<vmem>>, %arg13: memref<768x768xi8, #tpu.memory_space<vmem>>, %arg14: memref<1x768xf32, #tpu.memory_space<vmem>>, %arg15: memref<1x768xf32, #tpu.memory_space<vmem>>, %arg16: memref<768x128xbf16, #tpu.memory_space<vmem>>, %arg17: memref<1x128xf32, #tpu.memory_space<vmem>>, %arg18: memref<32x128xf32, #tpu.memory_space<vmem>>) attributes {dimension_semantics = [#tpu.dimension_semantics<parallel>], iteration_bounds = array<i64: 1>, scalar_prefetch = 0 : i64, scratch_operands = 0 : i64, tpu.core_type = #tpu.core_type<tc>, window_params = [{transform_indices = @transform_0, window_bounds = array<i64: 32, 40>}, {transform_indices = @transform_1, window_bounds = array<i64: 32, 16>}, {pipeline_mode = #tpu.pipeline_mode<synchronous>, transform_indices = @transform_2, window_bounds = array<i64: 40, 768>}, {pipeline_mode = #tpu.pipeline_mode<synchronous>, transform_indices = @transform_3, window_bounds = array<i64: 1, 768>}, {pipeline_mode = #tpu.pipeline_mode<synchronous>, transform_indices = @transform_4, window_bounds = array<i64: 768, 768>}, {pipeline_mode = #tpu.pipeline_mode<synchronous>, transform_indices = @transform_5, window_bounds = array<i64: 1, 768>}, {pipeline_mode = #tpu.pipeline_mode<synchronous>, transform_indices = @transform_6, window_bounds = array<i64: 1, 768>}, {pipeline_mode = #tpu.pipeline_mode<synchronous>, transform_indices = @transform_7, window_bounds = array<i64: 768, 128>}, {pipeline_mode = #tpu.pipeline_mode<synchronous>, transform_indices = @transform_8, window_bounds = array<i64: 1, 128>}, {pipeline_mode = #tpu.pipeline_mode<synchronous>, transform_indices = @transform_9, window_bounds = array<i64: 40, 768>}, {pipeline_mode = #tpu.pipeline_mode<synchronous>, transform_indices = @transform_10, window_bounds = array<i64: 16, 768>}, {pipeline_mode = #tpu.pipeline_mode<synchronous>, transform_indices = @transform_11, window_bounds = array<i64: 1, 768>}, {pipeline_mode = #tpu.pipeline_mode<synchronous>, transform_indices = @transform_12, window_bounds = array<i64: 768, 768>}, {pipeline_mode = #tpu.pipeline_mode<synchronous>, transform_indices = @transform_13, window_bounds = array<i64: 1, 768>}, {pipeline_mode = #tpu.pipeline_mode<synchronous>, transform_indices = @transform_14, window_bounds = array<i64: 1, 768>}, {pipeline_mode = #tpu.pipeline_mode<synchronous>, transform_indices = @transform_15, window_bounds = array<i64: 768, 128>}, {pipeline_mode = #tpu.pipeline_mode<synchronous>, transform_indices = @transform_16, window_bounds = array<i64: 1, 128>}, {transform_indices = @transform_17, window_bounds = array<i64: 32, 128>}]} {
    %c0 = arith.constant 0 : index
    %c0_0 = arith.constant 0 : index
    %0 = vector.load %arg1[%c0, %c0_0] : memref<32x40xbf16, #tpu.memory_space<vmem>>, vector<32x40xbf16>
    %c0_1 = arith.constant 0 : index
    %c0_2 = arith.constant 0 : index
    %1 = vector.load %arg3[%c0_1, %c0_2] : memref<40x768xbf16, #tpu.memory_space<vmem>>, vector<40x768xbf16>
    %cst = arith.constant dense<0.000000e+00> : vector<32x768xf32>
    %2 = tpu.matmul %0, %1, %cst {dimension_numbers = #tpu.dot_dimension_numbers<[1], [0], [0], [1], [0, 0, 1, 1], [], []>} : vector<32x40xbf16>, vector<40x768xbf16>, vector<32x768xf32> -> vector<32x768xf32>
    %c0_3 = arith.constant 0 : index
    %c0_4 = arith.constant 0 : index
    %3 = vector.load %arg4[%c0_3, %c0_4] : memref<1x768xf32, #tpu.memory_space<vmem>>, vector<1x768xf32>
    %4 = vector.broadcast %3 : vector<1x768xf32> to vector<32x768xf32>
    %5 = arith.addf %2, %4 : vector<32x768xf32>
    %cst_5 = arith.constant 0.000000e+00 : f32
    %6 = vector.broadcast %cst_5 : f32 to vector<32x768xf32>
    %7 = arith.maximumf %5, %6 : vector<32x768xf32>
    %8 = arith.truncf %7 : vector<32x768xf32> to vector<32x768xbf16>
    %c0_6 = arith.constant 0 : index
    %c0_7 = arith.constant 0 : index
    %9 = vector.load %arg5[%c0_6, %c0_7] : memref<768x768xi8, #tpu.memory_space<vmem>>, vector<768x768xi8>
    %10 = arith.sitofp %9 : vector<768x768xi8> to vector<768x768xf32>
    %11 = arith.truncf %10 : vector<768x768xf32> to vector<768x768xbf16>
    %cst_8 = arith.constant dense<0.000000e+00> : vector<32x768xf32>
    %12 = tpu.matmul %8, %11, %cst_8 {dimension_numbers = #tpu.dot_dimension_numbers<[1], [0], [0], [1], [0, 0, 1, 1], [], []>} : vector<32x768xbf16>, vector<768x768xbf16>, vector<32x768xf32> -> vector<32x768xf32>
    %c0_9 = arith.constant 0 : index
    %c0_10 = arith.constant 0 : index
    %13 = vector.load %arg6[%c0_9, %c0_10] : memref<1x768xf32, #tpu.memory_space<vmem>>, vector<1x768xf32>
    %14 = vector.broadcast %13 : vector<1x768xf32> to vector<32x768xf32>
    %15 = arith.mulf %12, %14 : vector<32x768xf32>
    %c0_11 = arith.constant 0 : index
    %c0_12 = arith.constant 0 : index
    %16 = vector.load %arg7[%c0_11, %c0_12] : memref<1x768xf32, #tpu.memory_space<vmem>>, vector<1x768xf32>
    %17 = vector.broadcast %16 : vector<1x768xf32> to vector<32x768xf32>
    %18 = arith.addf %15, %17 : vector<32x768xf32>
    %cst_13 = arith.constant 0.000000e+00 : f32
    %19 = vector.broadcast %cst_13 : f32 to vector<32x768xf32>
    %20 = arith.maximumf %18, %19 : vector<32x768xf32>
    %21 = arith.truncf %20 : vector<32x768xf32> to vector<32x768xbf16>
    %c0_14 = arith.constant 0 : index
    %c0_15 = arith.constant 0 : index
    %22 = vector.load %arg8[%c0_14, %c0_15] : memref<768x128xbf16, #tpu.memory_space<vmem>>, vector<768x128xbf16>
    %cst_16 = arith.constant dense<0.000000e+00> : vector<32x128xf32>
    %23 = tpu.matmul %21, %22, %cst_16 {dimension_numbers = #tpu.dot_dimension_numbers<[1], [0], [0], [1], [0, 0, 1, 1], [], []>} : vector<32x768xbf16>, vector<768x128xbf16>, vector<32x128xf32> -> vector<32x128xf32>
    %c0_17 = arith.constant 0 : index
    %c0_18 = arith.constant 0 : index
    %24 = vector.load %arg9[%c0_17, %c0_18] : memref<1x128xf32, #tpu.memory_space<vmem>>, vector<1x128xf32>
    %25 = vector.broadcast %24 : vector<1x128xf32> to vector<32x128xf32>
    %26 = arith.addf %23, %25 : vector<32x128xf32>
    %cst_19 = arith.constant -4.000000e+00 : f32
    %cst_20 = arith.constant 1.500000e+01 : f32
    %27 = vector.broadcast %cst_19 : f32 to vector<32x128xf32>
    %28 = arith.maximumf %27, %26 : vector<32x128xf32>
    %29 = vector.broadcast %cst_20 : f32 to vector<32x128xf32>
    %30 = arith.minimumf %29, %28 : vector<32x128xf32>
    %31 = math.exp %30 : vector<32x128xf32>
    %32 = vector.extract_strided_slice %26 {offsets = [0, 0], sizes = [32, 16], strides = [1, 1]} : vector<32x128xf32> to vector<32x16xf32>
    %33 = vector.extract_strided_slice %31 {offsets = [0, 16], sizes = [32, 16], strides = [1, 1]} : vector<32x128xf32> to vector<32x16xf32>
    %c0_21 = arith.constant 0 : index
    %c0_22 = arith.constant 0 : index
    %34 = vector.load %arg2[%c0_21, %c0_22] : memref<32x16xf32, #tpu.memory_space<vmem>>, vector<32x16xf32>
    %35 = arith.mulf %33, %34 : vector<32x16xf32>
    %36 = arith.addf %32, %35 : vector<32x16xf32>
    %c0_23 = arith.constant 0 : index
    %c0_24 = arith.constant 0 : index
    %37 = vector.load %arg10[%c0_23, %c0_24] : memref<40x768xbf16, #tpu.memory_space<vmem>>, vector<40x768xbf16>
    %cst_25 = arith.constant dense<0.000000e+00> : vector<32x768xf32>
    %38 = tpu.matmul %0, %37, %cst_25 {dimension_numbers = #tpu.dot_dimension_numbers<[1], [0], [0], [1], [0, 0, 1, 1], [], []>} : vector<32x40xbf16>, vector<40x768xbf16>, vector<32x768xf32> -> vector<32x768xf32>
    %39 = arith.truncf %36 : vector<32x16xf32> to vector<32x16xbf16>
    %c0_26 = arith.constant 0 : index
    %c0_27 = arith.constant 0 : index
    %40 = vector.load %arg11[%c0_26, %c0_27] : memref<16x768xbf16, #tpu.memory_space<vmem>>, vector<16x768xbf16>
    %cst_28 = arith.constant dense<0.000000e+00> : vector<32x768xf32>
    %41 = tpu.matmul %39, %40, %cst_28 {dimension_numbers = #tpu.dot_dimension_numbers<[1], [0], [0], [1], [0, 0, 1, 1], [], []>} : vector<32x16xbf16>, vector<16x768xbf16>, vector<32x768xf32> -> vector<32x768xf32>
    %42 = arith.addf %38, %41 : vector<32x768xf32>
    %c0_29 = arith.constant 0 : index
    %c0_30 = arith.constant 0 : index
    %43 = vector.load %arg12[%c0_29, %c0_30] : memref<1x768xf32, #tpu.memory_space<vmem>>, vector<1x768xf32>
    %44 = vector.broadcast %43 : vector<1x768xf32> to vector<32x768xf32>
    %45 = arith.addf %42, %44 : vector<32x768xf32>
    %cst_31 = arith.constant 0.000000e+00 : f32
    %46 = vector.broadcast %cst_31 : f32 to vector<32x768xf32>
    %47 = arith.maximumf %45, %46 : vector<32x768xf32>
    %48 = arith.truncf %47 : vector<32x768xf32> to vector<32x768xbf16>
    %c0_32 = arith.constant 0 : index
    %c0_33 = arith.constant 0 : index
    %49 = vector.load %arg13[%c0_32, %c0_33] : memref<768x768xi8, #tpu.memory_space<vmem>>, vector<768x768xi8>
    %50 = arith.sitofp %49 : vector<768x768xi8> to vector<768x768xf32>
    %51 = arith.truncf %50 : vector<768x768xf32> to vector<768x768xbf16>
    %cst_34 = arith.constant dense<0.000000e+00> : vector<32x768xf32>
    %52 = tpu.matmul %48, %51, %cst_34 {dimension_numbers = #tpu.dot_dimension_numbers<[1], [0], [0], [1], [0, 0, 1, 1], [], []>} : vector<32x768xbf16>, vector<768x768xbf16>, vector<32x768xf32> -> vector<32x768xf32>
    %c0_35 = arith.constant 0 : index
    %c0_36 = arith.constant 0 : index
    %53 = vector.load %arg14[%c0_35, %c0_36] : memref<1x768xf32, #tpu.memory_space<vmem>>, vector<1x768xf32>
    %54 = vector.broadcast %53 : vector<1x768xf32> to vector<32x768xf32>
    %55 = arith.mulf %52, %54 : vector<32x768xf32>
    %c0_37 = arith.constant 0 : index
    %c0_38 = arith.constant 0 : index
    %56 = vector.load %arg15[%c0_37, %c0_38] : memref<1x768xf32, #tpu.memory_space<vmem>>, vector<1x768xf32>
    %57 = vector.broadcast %56 : vector<1x768xf32> to vector<32x768xf32>
    %58 = arith.addf %55, %57 : vector<32x768xf32>
    %cst_39 = arith.constant 0.000000e+00 : f32
    %59 = vector.broadcast %cst_39 : f32 to vector<32x768xf32>
    %60 = arith.maximumf %58, %59 : vector<32x768xf32>
    %61 = arith.truncf %60 : vector<32x768xf32> to vector<32x768xbf16>
    %c0_40 = arith.constant 0 : index
    %c0_41 = arith.constant 0 : index
    %62 = vector.load %arg16[%c0_40, %c0_41] : memref<768x128xbf16, #tpu.memory_space<vmem>>, vector<768x128xbf16>
    %cst_42 = arith.constant dense<0.000000e+00> : vector<32x128xf32>
    %63 = tpu.matmul %61, %62, %cst_42 {dimension_numbers = #tpu.dot_dimension_numbers<[1], [0], [0], [1], [0, 0, 1, 1], [], []>} : vector<32x768xbf16>, vector<768x128xbf16>, vector<32x128xf32> -> vector<32x128xf32>
    %c0_43 = arith.constant 0 : index
    %c0_44 = arith.constant 0 : index
    %64 = vector.load %arg17[%c0_43, %c0_44] : memref<1x128xf32, #tpu.memory_space<vmem>>, vector<1x128xf32>
    %65 = vector.broadcast %64 : vector<1x128xf32> to vector<32x128xf32>
    %66 = arith.addf %63, %65 : vector<32x128xf32>
    %67 = math.tanh %66 : vector<32x128xf32>
    %cst_45 = arith.constant 1.000000e+00 : f32
    %68 = vector.broadcast %cst_45 : f32 to vector<32x128xf32>
    %69 = arith.mulf %68, %67 : vector<32x128xf32>
    %70 = tpu.iota {dimensions = array<i32: 1>} : vector<32x128xi32>
    %c16_i32 = arith.constant 16 : i32
    %71 = vector.broadcast %c16_i32 : i32 to vector<32x128xi32>
    %72 = arith.cmpi slt, %70, %71 : vector<32x128xi32>
    %c32_i32 = arith.constant 32 : i32
    %73 = vector.broadcast %c32_i32 : i32 to vector<32x128xi32>
    %74 = arith.cmpi slt, %70, %73 : vector<32x128xi32>
    %cst_46 = arith.constant 0.000000e+00 : f32
    %75 = vector.broadcast %cst_46 : f32 to vector<32x128xf32>
    %76 = arith.select %74, %31, %75 : vector<32x128xi1>, vector<32x128xf32>
    %77 = arith.select %72, %26, %76 : vector<32x128xi1>, vector<32x128xf32>
    %78 = arith.addf %77, %69 : vector<32x128xf32>
    %c0_47 = arith.constant 0 : index
    %c0_48 = arith.constant 0 : index
    %79 = vector.load %arg18[%c0_47, %c0_48] : memref<32x128xf32, #tpu.memory_space<vmem>>, vector<32x128xf32>
    tpu.vector_store %arg18[%c0_47, %c0_48], %78 {strides = array<i32>} : memref<32x128xf32, #tpu.memory_space<vmem>>, vector<32x128xf32>,
    return
  }
  func.func @transform_0(%arg0: i32) -> (i32, i32) {
    %c0_i32 = arith.constant 0 : i32
    %c0_i32_0 = arith.constant 0 : i32
    return %arg0, %c0_i32 : i32, i32
  }
  func.func @transform_1(%arg0: i32) -> (i32, i32) {
    %c0_i32 = arith.constant 0 : i32
    %c0_i32_0 = arith.constant 0 : i32
    return %arg0, %c0_i32 : i32, i32
  }
  func.func @transform_2(%arg0: i32) -> (i32, i32) {
    %c0_i32 = arith.constant 0 : i32
    %c0_i32_0 = arith.constant 0 : i32
    %c0_i32_1 = arith.constant 0 : i32
    return %c0_i32, %c0_i32_0 : i32, i32
  }
  func.func @transform_3(%arg0: i32) -> (i32, i32) {
    %c0_i32 = arith.constant 0 : i32
    %c0_i32_0 = arith.constant 0 : i32
    %c0_i32_1 = arith.constant 0 : i32
    return %c0_i32, %c0_i32_0 : i32, i32
  }
  func.func @transform_4(%arg0: i32) -> (i32, i32) {
    %c0_i32 = arith.constant 0 : i32
    %c0_i32_0 = arith.constant 0 : i32
    %c0_i32_1 = arith.constant 0 : i32
    return %c0_i32, %c0_i32_0 : i32, i32
  }
  func.func @transform_5(%arg0: i32) -> (i32, i32) {
    %c0_i32 = arith.constant 0 : i32
    %c0_i32_0 = arith.constant 0 : i32
    %c0_i32_1 = arith.constant 0 : i32
    return %c0_i32, %c0_i32_0 : i32, i32
  }
  func.func @transform_6(%arg0: i32) -> (i32, i32) {
    %c0_i32 = arith.constant 0 : i32
    %c0_i32_0 = arith.constant 0 : i32
    %c0_i32_1 = arith.constant 0 : i32
    return %c0_i32, %c0_i32_0 : i32, i32
  }
  func.func @transform_7(%arg0: i32) -> (i32, i32) {
    %c0_i32 = arith.constant 0 : i32
    %c0_i32_0 = arith.constant 0 : i32
    %c0_i32_1 = arith.constant 0 : i32
    return %c0_i32, %c0_i32_0 : i32, i32
  }
  func.func @transform_8(%arg0: i32) -> (i32, i32) {
    %c0_i32 = arith.constant 0 : i32
    %c0_i32_0 = arith.constant 0 : i32
    %c0_i32_1 = arith.constant 0 : i32
    return %c0_i32, %c0_i32_0 : i32, i32
  }
  func.func @transform_9(%arg0: i32) -> (i32, i32) {
    %c0_i32 = arith.constant 0 : i32
    %c0_i32_0 = arith.constant 0 : i32
    %c0_i32_1 = arith.constant 0 : i32
    return %c0_i32, %c0_i32_0 : i32, i32
  }
  func.func @transform_10(%arg0: i32) -> (i32, i32) {
    %c0_i32 = arith.constant 0 : i32
    %c0_i32_0 = arith.constant 0 : i32
    %c0_i32_1 = arith.constant 0 : i32
    return %c0_i32, %c0_i32_0 : i32, i32
  }
  func.func @transform_11(%arg0: i32) -> (i32, i32) {
    %c0_i32 = arith.constant 0 : i32
    %c0_i32_0 = arith.constant 0 : i32
    %c0_i32_1 = arith.constant 0 : i32
    return %c0_i32, %c0_i32_0 : i32, i32
  }
  func.func @transform_12(%arg0: i32) -> (i32, i32) {
    %c0_i32 = arith.constant 0 : i32
    %c0_i32_0 = arith.constant 0 : i32
    %c0_i32_1 = arith.constant 0 : i32
    return %c0_i32, %c0_i32_0 : i32, i32
  }
  func.func @transform_13(%arg0: i32) -> (i32, i32) {
    %c0_i32 = arith.constant 0 : i32
    %c0_i32_0 = arith.constant 0 : i32
    %c0_i32_1 = arith.constant 0 : i32
    return %c0_i32, %c0_i32_0 : i32, i32
  }
  func.func @transform_14(%arg0: i32) -> (i32, i32) {
    %c0_i32 = arith.constant 0 : i32
    %c0_i32_0 = arith.constant 0 : i32
    %c0_i32_1 = arith.constant 0 : i32
    return %c0_i32, %c0_i32_0 : i32, i32
  }
  func.func @transform_15(%arg0: i32) -> (i32, i32) {
    %c0_i32 = arith.constant 0 : i32
    %c0_i32_0 = arith.constant 0 : i32
    %c0_i32_1 = arith.constant 0 : i32
    return %c0_i32, %c0_i32_0 : i32, i32
  }
  func.func @transform_16(%arg0: i32) -> (i32, i32) {
    %c0_i32 = arith.constant 0 : i32
    %c0_i32_0 = arith.constant 0 : i32
    %c0_i32_1 = arith.constant 0 : i32
    return %c0_i32, %c0_i32_0 : i32, i32
  }
  func.func @transform_17(%arg0: i32) -> (i32, i32) {
    %c0_i32 = arith.constant 0 : i32
    %c0_i32_0 = arith.constant 0 : i32
    return %arg0, %c0_i32 : i32, i32
  }
}

</mosaic_0001>

<llo_original>
// kernel: tpu_custom_call.1
$region0: #{tpu_custom_call.1}
  #allocation0 [shape = 'u32[]', space=smem, size = 0x4, offset = 0x4, fixed_abs, tag = 'smem constant byte address 0x4 - core index']
  #allocation1 [shape = 'u32[144,128]{1,0:T(1,128)}', space=vmem, size = 0x12000, scoped, tag = 'internal scratch']
  %s0 = inlined_call_operand.vmem [shape: bf16[32,40], index: 0, kind: input, shape index: {}]
  %s1 = inlined_call_operand.vmem [shape: f32[32,16], index: 1, kind: input, shape index: {}]
  %s2 = inlined_call_operand.hbm [shape: bf16[40,768], index: 2, kind: input, shape index: {}]
  %s3 = inlined_call_operand.hbm [shape: f32[1,768], index: 3, kind: input, shape index: {}]
  %s4 = inlined_call_operand.hbm [shape: s8[768,768], index: 4, kind: input, shape index: {}]
  %s5 = inlined_call_operand.hbm [shape: f32[1,768], index: 5, kind: input, shape index: {}]
  %s6 = inlined_call_operand.hbm [shape: f32[1,768], index: 6, kind: input, shape index: {}]
  %s7 = inlined_call_operand.hbm [shape: bf16[768,128], index: 7, kind: input, shape index: {}]
  %s8 = inlined_call_operand.vmem [shape: f32[1,128], index: 8, kind: input, shape index: {}]
  %s9 = inlined_call_operand.hbm [shape: bf16[40,768], index: 9, kind: input, shape index: {}]
  %s10 = inlined_call_operand.vmem [shape: bf16[16,768], index: 10, kind: input, shape index: {}]
  %s11 = inlined_call_operand.hbm [shape: f32[1,768], index: 11, kind: input, shape index: {}]
  %s12 = inlined_call_operand.hbm [shape: s8[768,768], index: 12, kind: input, shape index: {}]
  %s13 = inlined_call_operand.vmem [shape: f32[1,768], index: 13, kind: input, shape index: {}]
  %s14 = inlined_call_operand.hbm [shape: f32[1,768], index: 14, kind: input, shape index: {}]
  %s15 = inlined_call_operand.hbm [shape: bf16[768,128], index: 15, kind: input, shape index: {}]
  %s16 = inlined_call_operand.vmem [shape: f32[1,128], index: 16, kind: input, shape index: {}]
  %s17 = inlined_call_operand.hbm [shape: f32[32,128], index: 17, kind: output, shape index: {}]
  %s18 = sld [smem:[#allocation0]]
  $region122: #{tpu_custom_call.1} parent=0
    _
  %s20 = ssub.s32 1, %s18
  %s21 = scalar_select 0, %s20, %s18
  $region1: #{tpu_custom_call.1} parent=0
    #allocation2 [shape = 'u8[61440]{0}', space=vmem, size = 0xf000, scoped, tag = 'input window, operand 2, single buffered']
    #allocation3 [shape = 's32[1]{0}', space=sflag, size = 0x4, scoped, tag = 'scoped memory for tpu_custom_call.1']
    #allocation4 [shape = 's32[1]{0}', space=sflag, size = 0x4, scoped, tag = 'scoped memory for tpu_custom_call.1']
    #allocation5 [shape = 'u8[3072]{0}', space=vmem, size = 0xc00, scoped, tag = 'input window, operand 3, single buffered']
    #allocation6 [shape = 's32[1]{0}', space=sflag, size = 0x4, scoped, tag = 'scoped memory for tpu_custom_call.1']
    #allocation7 [shape = 'u8[589824]{0}', space=vmem, size = 0x90000, scoped, tag = 'input window, operand 4, single buffered']
    #allocation8 [shape = 'u8[3072]{0}', space=vmem, size = 0xc00, scoped, tag = 'input window, operand 5, single buffered']
    #allocation9 [shape = 's32[1]{0}', space=sflag, size = 0x4, scoped, tag = 'scoped memory for tpu_custom_call.1']
    #allocation10 [shape = 'u8[3072]{0}', space=vmem, size = 0xc00, scoped, tag = 'input window, operand 6, single buffered']
    #allocation11 [shape = 'u8[196608]{0}', space=vmem, size = 0x30000, scoped, tag = 'input window, operand 7, single buffered']
    #allocation12 [shape = 's32[1]{0}', space=sflag, size = 0x4, scoped, tag = 'scoped memory for tpu_custom_call.1']
    #allocation13 [shape = 'u8[61440]{0}', space=vmem, size = 0xf000, scoped, tag = 'input window, operand 9, single buffered']
    #allocation14 [shape = 'u8[3072]{0}', space=vmem, size = 0xc00, scoped, tag = 'input window, operand 11, single buffered']
    #allocation15 [shape = 's32[1]{0}', space=sflag, size = 0x4, scoped, tag = 'scoped memory for tpu_custom_call.1']
    #allocation16 [shape = 'u8[589824]{0}', space=vmem, size = 0x90000, scoped, tag = 'input window, operand 12, single buffered']
    #allocation17 [shape = 'u8[3072]{0}', space=vmem, size = 0xc00, scoped, tag = 'input window, operand 14, single buffered']
    #allocation18 [shape = 's32[1]{0}', space=sflag, size = 0x4, scoped, tag = 'scoped memory for tpu_custom_call.1']
    #allocation19 [shape = 'u8[196608]{0}', space=vmem, size = 0x30000, scoped, tag = 'input window, operand 15, single buffered']
    #allocation20 [shape = 'u8[16384]{0}', space=vmem, size = 0x4000, scoped, tag = 'output window, operand 0, single buffered']
    %22 = vsyncpa [#allocation3], 0
    %23 = vsyncpa [#allocation6], 0
    %24 = vsyncpa [#allocation9], 0
    %25 = vsyncpa [#allocation12], 0
    %26 = vsyncpa [#allocation15], 0
    %27 = vsyncpa [#allocation18], 0
    %28 = vsyncpa [#allocation4], 0
    // Predicated region
    $region2: #{tpu_custom_call.1} parent=1 // pred_check
      _
    $region3: #{tpu_custom_call.1} parent=1 // pred_check_branch
      %30 = sbr.rel (0) target = $region5
    $region4: #{tpu_custom_call.1} parent=1 // pred_region
      _
    $region5: #{tpu_custom_call.1} parent=1 // pred_fallthru
      _
    // Predicated region
    $region6: #{tpu_custom_call.1} parent=1 // pred_check
      _
    $region7: #{tpu_custom_call.1} parent=1 // pred_check_branch
      %32 = sbr.rel (0) target = $region9
    $region8: #{tpu_custom_call.1} parent=1 // pred_region
      _
    $region9: #{tpu_custom_call.1} parent=1 // pred_fallthru
      _
    // Predicated region
    $region10: #{tpu_custom_call.1} parent=1 // pred_check
      _
    $region11: #{tpu_custom_call.1} parent=1 // pred_check_branch
      %34 = sbr.rel (0) target = $region13
    $region12: #{tpu_custom_call.1} parent=1 // pred_region
      %s36 = ssub.s32 1920, 1920
      %37 = vsyncadd [#allocation3], %s36
      %s38 = sshll.u32 [#allocation2], 4
      %s39 = int_to_ptr.vmem [resolvable:$true] %s38
      %44 = dma.hbm_to_vmem [thread:$0]  %s2, 1920, %s39, [#allocation3], 384, 384, 24
    $region13: #{tpu_custom_call.1} parent=1 // pred_fallthru
      _
    // Predicated region
    $region14: #{tpu_custom_call.1} parent=1 // pred_check
      _
    $region15: #{tpu_custom_call.1} parent=1 // pred_check_branch
      %46 = sbr.rel (0) target = $region17
    $region16: #{tpu_custom_call.1} parent=1 // pred_region
      %s48 = ssub.s32 96, 96
      %49 = vsyncadd [#allocation6], %s48
      %s51 = sshll.u32 [#allocation5], 4
      %s52 = int_to_ptr.vmem [resolvable:$true] %s51
      %54 = dma.hbm_to_vmem [thread:$0]  %s3, 96, %s52, [#allocation6]
    $region17: #{tpu_custom_call.1} parent=1 // pred_fallthru
      _
    // Predicated region
    $region18: #{tpu_custom_call.1} parent=1 // pred_check
      _
    $region19: #{tpu_custom_call.1} parent=1 // pred_check_branch
      %56 = sbr.rel (0) target = $region21
    $region20: #{tpu_custom_call.1} parent=1 // pred_region
      %s58 = ssub.s32 18432, 18432
      %59 = vsyncadd [#allocation6], %s58
      %s60 = sshll.u32 [#allocation7], 4
      %s61 = int_to_ptr.vmem [resolvable:$true] %s60
      %66 = dma.hbm_to_vmem [thread:$0]  %s4, 18432, %s61, [#allocation6], 768, 768, 48
    $region21: #{tpu_custom_call.1} parent=1 // pred_fallthru
      _
    // Predicated region
    $region22: #{tpu_custom_call.1} parent=1 // pred_check
      _
    $region23: #{tpu_custom_call.1} parent=1 // pred_check_branch
      %68 = sbr.rel (0) target = $region25
    $region24: #{tpu_custom_call.1} parent=1 // pred_region
      %s70 = ssub.s32 96, 96
      %71 = vsyncadd [#allocation9], %s70
      %s73 = sshll.u32 [#allocation8], 4
      %s74 = int_to_ptr.vmem [resolvable:$true] %s73
      %76 = dma.hbm_to_vmem [thread:$0]  %s5, 96, %s74, [#allocation9]
    $region25: #{tpu_custom_call.1} parent=1 // pred_fallthru
      _
    // Predicated region
    $region26: #{tpu_custom_call.1} parent=1 // pred_check
      _
    $region27: #{tpu_custom_call.1} parent=1 // pred_check_branch
      %78 = sbr.rel (0) target = $region29
    $region28: #{tpu_custom_call.1} parent=1 // pred_region
      %s80 = ssub.s32 96, 96
      %81 = vsyncadd [#allocation9], %s80
      %s83 = sshll.u32 [#allocation10], 4
      %s84 = int_to_ptr.vmem [resolvable:$true] %s83
      %86 = dma.hbm_to_vmem [thread:$0]  %s6, 96, %s84, [#allocation9]
    $region29: #{tpu_custom_call.1} parent=1 // pred_fallthru
      _
    // Predicated region
    $region30: #{tpu_custom_call.1} parent=1 // pred_check
      _
    $region31: #{tpu_custom_call.1} parent=1 // pred_check_branch
      %88 = sbr.rel (0) target = $region33
    $region32: #{tpu_custom_call.1} parent=1 // pred_region
      %s90 = ssub.s32 6144, 6144
      %91 = vsyncadd [#allocation12], %s90
      %s92 = sshll.u32 [#allocation11], 4
      %s93 = int_to_ptr.vmem [resolvable:$true] %s92
      %98 = dma.hbm_to_vmem [thread:$0]  %s7, 6144, %s93, [#allocation12], 64, 64, 4
    $region33: #{tpu_custom_call.1} parent=1 // pred_fallthru
      _
    // Predicated region
    $region34: #{tpu_custom_call.1} parent=1 // pred_check
      _
    $region35: #{tpu_custom_call.1} parent=1 // pred_check_branch
      %100 = sbr.rel (0) target = $region37
    $region36: #{tpu_custom_call.1} parent=1 // pred_region
      _
    $region37: #{tpu_custom_call.1} parent=1 // pred_fallthru
      _
    // Predicated region
    $region38: #{tpu_custom_call.1} parent=1 // pred_check
      _
    $region39: #{tpu_custom_call.1} parent=1 // pred_check_branch
      %102 = sbr.rel (0) target = $region41
    $region40: #{tpu_custom_call.1} parent=1 // pred_region
      %s104 = ssub.s32 1920, 1920
      %105 = vsyncadd [#allocation12], %s104
      %s106 = sshll.u32 [#allocation13], 4
      %s107 = int_to_ptr.vmem [resolvable:$true] %s106
      %112 = dma.hbm_to_vmem [thread:$0]  %s9, 1920, %s107, [#allocation12], 384, 384, 24
    $region41: #{tpu_custom_call.1} parent=1 // pred_fallthru
      _
    // Predicated region
    $region42: #{tpu_custom_call.1} parent=1 // pred_check
      _
    $region43: #{tpu_custom_call.1} parent=1 // pred_check_branch
      %114 = sbr.rel (0) target = $region45
    $region44: #{tpu_custom_call.1} parent=1 // pred_region
      _
    $region45: #{tpu_custom_call.1} parent=1 // pred_fallthru
      _
    // Predicated region
    $region46: #{tpu_custom_call.1} parent=1 // pred_check
      _
    $region47: #{tpu_custom_call.1} parent=1 // pred_check_branch
      %116 = sbr.rel (0) target = $region49
    $region48: #{tpu_custom_call.1} parent=1 // pred_region
      %s118 = ssub.s32 96, 96
      %119 = vsyncadd [#allocation15], %s118
      %s121 = sshll.u32 [#allocation14], 4
      %s122 = int_to_ptr.vmem [resolvable:$true] %s121
      %124 = dma.hbm_to_vmem [thread:$0]  %s11, 96, %s122, [#allocation15]
    $region49: #{tpu_custom_call.1} parent=1 // pred_fallthru
      _
    // Predicated region
    $region50: #{tpu_custom_call.1} parent=1 // pred_check
      _
    $region51: #{tpu_custom_call.1} parent=1 // pred_check_branch
      %126 = sbr.rel (0) target = $region53
    $region52: #{tpu_custom_call.1} parent=1 // pred_region
      %s128 = ssub.s32 18432, 18432
      %129 = vsyncadd [#allocation15], %s128
      %s130 = sshll.u32 [#allocation16], 4
      %s131 = int_to_ptr.vmem [resolvable:$true] %s130
      %136 = dma.hbm_to_vmem [thread:$0]  %s12, 18432, %s131, [#allocation15], 768, 768, 48
    $region53: #{tpu_custom_call.1} parent=1 // pred_fallthru
      _
    // Predicated region
    $region54: #{tpu_custom_call.1} parent=1 // pred_check
      _
    $region55: #{tpu_custom_call.1} parent=1 // pred_check_branch
      %138 = sbr.rel (0) target = $region57
    $region56: #{tpu_custom_call.1} parent=1 // pred_region
      _
    $region57: #{tpu_custom_call.1} parent=1 // pred_fallthru
      _
    // Predicated region
    $region58: #{tpu_custom_call.1} parent=1 // pred_check
      _
    $region59: #{tpu_custom_call.1} parent=1 // pred_check_branch
      %140 = sbr.rel (0) target = $region61
    $region60: #{tpu_custom_call.1} parent=1 // pred_region
      %s142 = ssub.s32 96, 96
      %143 = vsyncadd [#allocation18], %s142
      %s145 = sshll.u32 [#allocation17], 4
      %s146 = int_to_ptr.vmem [resolvable:$true] %s145
      %148 = dma.hbm_to_vmem [thread:$0]  %s14, 96, %s146, [#allocation18]
    $region61: #{tpu_custom_call.1} parent=1 // pred_fallthru
      _
    // Predicated region
    $region62: #{tpu_custom_call.1} parent=1 // pred_check
      _
    $region63: #{tpu_custom_call.1} parent=1 // pred_check_branch
      %150 = sbr.rel (0) target = $region65
    $region64: #{tpu_custom_call.1} parent=1 // pred_region
      %s152 = ssub.s32 6144, 6144
      %153 = vsyncadd [#allocation18], %s152
      %s154 = sshll.u32 [#allocation19], 4
      %s155 = int_to_ptr.vmem [resolvable:$true] %s154
      %160 = dma.hbm_to_vmem [thread:$0]  %s15, 6144, %s155, [#allocation18], 64, 64, 4
    $region65: #{tpu_custom_call.1} parent=1 // pred_fallthru
      _
    // Predicated region
    $region66: #{tpu_custom_call.1} parent=1 // pred_check
      _
    $region67: #{tpu_custom_call.1} parent=1 // pred_check_branch
      %162 = sbr.rel (0) target = $region69
    $region68: #{tpu_custom_call.1} parent=1 // pred_region
      _
    $region69: #{tpu_custom_call.1} parent=1 // pred_fallthru
      _
    // Predicated region
    $region70: #{tpu_custom_call.1} parent=1 // pred_check
      _
    $region71: #{tpu_custom_call.1} parent=1 // pred_check_branch
      %164 = sbr.rel (0) target = $region73
    $region72: #{tpu_custom_call.1} parent=1 // pred_region
      %165 = dma.done [#allocation3], 1920
    $region73: #{tpu_custom_call.1} parent=1 // pred_fallthru
      _
    // Predicated region
    $region74: #{tpu_custom_call.1} parent=1 // pred_check
      _
    $region75: #{tpu_custom_call.1} parent=1 // pred_check_branch
      %167 = sbr.rel (0) target = $region77
    $region76: #{tpu_custom_call.1} parent=1 // pred_region
      %168 = dma.done [#allocation6], 96
    $region77: #{tpu_custom_call.1} parent=1 // pred_fallthru
      _
    // Predicated region
    $region78: #{tpu_custom_call.1} parent=1 // pred_check
      _
    $region79: #{tpu_custom_call.1} parent=1 // pred_check_branch
      %170 = sbr.rel (0) target = $region81
    $region80: #{tpu_custom_call.1} parent=1 // pred_region
      %171 = dma.done [#allocation6], 18432
    $region81: #{tpu_custom_call.1} parent=1 // pred_fallthru
      _
    // Predicated region
    $region82: #{tpu_custom_call.1} parent=1 // pred_check
      _
    $region83: #{tpu_custom_call.1} parent=1 // pred_check_branch
      %173 = sbr.rel (0) target = $region85
    $region84: #{tpu_custom_call.1} parent=1 // pred_region
      %174 = dma.done [#allocation9], 96
    $region85: #{tpu_custom_call.1} parent=1 // pred_fallthru
      _
    // Predicated region
    $region86: #{tpu_custom_call.1} parent=1 // pred_check
      _
    $region87: #{tpu_custom_call.1} parent=1 // pred_check_branch
      %176 = sbr.rel (0) target = $region89
    $region88: #{tpu_custom_call.1} parent=1 // pred_region
      %177 = dma.done [#allocation9], 96
    $region89: #{tpu_custom_call.1} parent=1 // pred_fallthru
      _
    // Predicated region
    $region90: #{tpu_custom_call.1} parent=1 // pred_check
      _
    $region91: #{tpu_custom_call.1} parent=1 // pred_check_branch
      %179 = sbr.rel (0) target = $region93
    $region92: #{tpu_custom_call.1} parent=1 // pred_region
      %180 = dma.done [#allocation12], 6144
    $region93: #{tpu_custom_call.1} parent=1 // pred_fallthru
      _
    // Predicated region
    $region94: #{tpu_custom_call.1} parent=1 // pred_check
      _
    $region95: #{tpu_custom_call.1} parent=1 // pred_check_branch
      %182 = sbr.rel (0) target = $region97
    $region96: #{tpu_custom_call.1} parent=1 // pred_region
      %183 = dma.done [#allocation12], 1920
    $region97: #{tpu_custom_call.1} parent=1 // pred_fallthru
      _
    // Predicated region
    $region98: #{tpu_custom_call.1} parent=1 // pred_check
      _
    $region99: #{tpu_custom_call.1} parent=1 // pred_check_branch
      %185 = sbr.rel (0) target = $region101
    $region100: #{tpu_custom_call.1} parent=1 // pred_region
      %186 = dma.done [#allocation15], 96
    $region101: #{tpu_custom_call.1} parent=1 // pred_fallthru
      _
    // Predicated region
    $region102: #{tpu_custom_call.1} parent=1 // pred_check
      _
    $region103: #{tpu_custom_call.1} parent=1 // pred_check_branch
      %188 = sbr.rel (0) target = $region105
    $region104: #{tpu_custom_call.1} parent=1 // pred_region
      %189 = dma.done [#allocation15], 18432
    $region105: #{tpu_custom_call.1} parent=1 // pred_fallthru
      _
    // Predicated region
    $region106: #{tpu_custom_call.1} parent=1 // pred_check
      _
    $region107: #{tpu_custom_call.1} parent=1 // pred_check_branch
      %191 = sbr.rel (0) target = $region109
    $region108: #{tpu_custom_call.1} parent=1 // pred_region
      %192 = dma.done [#allocation18], 96
    $region109: #{tpu_custom_call.1} parent=1 // pred_fallthru
      _
    // Predicated region
    $region110: #{tpu_custom_call.1} parent=1 // pred_check
      _
    $region111: #{tpu_custom_call.1} parent=1 // pred_check_branch
      %194 = sbr.rel (0) target = $region113
    $region112: #{tpu_custom_call.1} parent=1 // pred_region
      %195 = dma.done [#allocation18], 6144
    $region113: #{tpu_custom_call.1} parent=1 // pred_fallthru
      _
    %v197 = vld [vmem:[%s0] sm:$0xf]
    %v198 = vld [vmem:[%s0 + $0x4] sm:$0xf]
    %v199 = vld [vmem:[%s0 + $0x8] sm:$0xf]
    %v200 = vld [vmem:[%s0 + $0xc] sm:$0xf]
    %v201 = vld [vmem:[#allocation2] sm:$0xff]
    %v202 = vld [vmem:[#allocation2 + $0x8] sm:$0xff]
    %v203 = vld [vmem:[#allocation2 + $0x10] sm:$0xff]
    %v204 = vld [vmem:[#allocation2 + $0x18] sm:$0xff]
    %v205 = vld [vmem:[#allocation2 + $0x20] sm:$0xff]
    %v206 = vld [vmem:[#allocation2 + $0x28] sm:$0xff]
    %v207 = vld [vmem:[#allocation2 + $0x30] sm:$0xff]
    %v208 = vld [vmem:[#allocation2 + $0x38] sm:$0xff]
    %v209 = vld [vmem:[#allocation2 + $0x40] sm:$0xff]
    %v210 = vld [vmem:[#allocation2 + $0x48] sm:$0xff]
    %v211 = vld [vmem:[#allocation2 + $0x50] sm:$0xff]
    %v212 = vld [vmem:[#allocation2 + $0x58] sm:$0xff]
    %v213 = vld [vmem:[#allocation2 + $0x60] sm:$0xff]
    %v214 = vld [vmem:[#allocation2 + $0x68] sm:$0xff]
    %v215 = vld [vmem:[#allocation2 + $0x70] sm:$0xff]
    %v216 = vld [vmem:[#allocation5] sm:$0x3f]
    %v218 = vlaneseq
    %v219 = vshrl.u32 %v218, 7
    %v220 = vsub.s32 0, %v219
    %v221 = vrot.slane %v216, %v220
    %v222 = vlaneseq
    %v223 = vshrl.u32 %v222, 7
    %v224 = vsub.s32 1, %v223
    %v225 = vrot.slane %v216, %v224
    %v226 = vlaneseq
    %v227 = vshrl.u32 %v226, 7
    %v228 = vsub.s32 2, %v227
    %v229 = vrot.slane %v216, %v228
    %v230 = vlaneseq
    %v231 = vshrl.u32 %v230, 7
    %v232 = vsub.s32 3, %v231
    %v233 = vrot.slane %v216, %v232
    %v234 = vlaneseq
    %v235 = vshrl.u32 %v234, 7
    %v236 = vsub.s32 4, %v235
    %v237 = vrot.slane %v216, %v236
    %v238 = vlaneseq
    %v239 = vshrl.u32 %v238, 7
    %v240 = vsub.s32 5, %v239
    %v241 = vrot.slane %v216, %v240
    %v252 = vunpack.c.l.b16 %v197
    %v253 = vunpack.c.l.b16 %v198
    %v254 = vunpack.c.l.b16 %v199
    %v255 = vunpack.c.l.b16 %v200
    %v256 = vpack.c.b16 %v253, %v252
    %v257 = vpack.c.b16 %v255, %v254
    %v273 = vunpack.c.l.b16 %v201
    %v274 = vunpack.c.h.b16 %v201
    %v275 = vunpack.c.l.b16 %v202
    %v276 = vunpack.c.h.b16 %v202
    %v277 = vunpack.c.l.b16 %v203
    %v278 = vunpack.c.h.b16 %v203
    %v279 = vunpack.c.l.b16 %v204
    %v280 = vunpack.c.h.b16 %v204
    %v281 = vunpack.c.l.b16 %v205
    %v282 = vunpack.c.h.b16 %v205
    %v283 = vunpack.c.l.b16 %v206
    %v284 = vunpack.c.h.b16 %v206
    %v285 = vunpack.c.l.b16 %v207
    %v286 = vunpack.c.h.b16 %v207
    %v287 = vunpack.c.l.b16 %v208
    %v288 = vunpack.c.h.b16 %v208
    %v289 = vunpack.c.l.b16 %v209
    %v290 = vunpack.c.h.b16 %v209
    %v291 = vunpack.c.l.b16 %v210
    %v292 = vunpack.c.h.b16 %v210
    %v293 = vunpack.c.l.b16 %v211
    %v294 = vunpack.c.h.b16 %v211
    %v295 = vunpack.c.l.b16 %v212
    %v296 = vunpack.c.h.b16 %v212
    %v297 = vunpack.c.l.b16 %v213
    %v298 = vunpack.c.h.b16 %v213
    %v299 = vunpack.c.l.b16 %v214
    %v300 = vunpack.c.h.b16 %v214
    %v301 = vunpack.c.l.b16 %v215
    %v302 = vunpack.c.h.b16 %v215
    %v303 = vpack.c.b16 %v279, %v273
    %v304 = vpack.c.b16 %v280, %v274
    %v305 = vpack.c.b16 %v281, %v275
    %v306 = vpack.c.b16 %v282, %v276
    %v307 = vpack.c.b16 %v283, %v277
    %v308 = vpack.c.b16 %v284, %v278
    %v309 = vpack.c.b16 %v291, %v285
    %v310 = vpack.c.b16 %v292, %v286
    %v311 = vpack.c.b16 %v293, %v287
    %v312 = vpack.c.b16 %v294, %v288
    %v313 = vpack.c.b16 %v295, %v289
    %v314 = vpack.c.b16 %v296, %v290
    %v315 = vpack.c.b16 %v297, %v297
    %v316 = vpack.c.b16 %v298, %v298
    %v317 = vpack.c.b16 %v299, %v299
    %v318 = vpack.c.b16 %v300, %v300
    %v319 = vpack.c.b16 %v301, %v301
    %v320 = vpack.c.b16 %v302, %v302
    %vm333 = vcmask 326656
    %v335 = vsel %vm333, %v256, 0
    %v338 = vsel %vm333, %v257, 0
    %vm340 = vcmask 1043456
    %v342 = vsel %vm340, %v315, 0
    %v345 = vsel %vm340, %v316, 0
    %v348 = vsel %vm340, %v317, 0
    %v351 = vsel %vm340, %v318, 0
    %v354 = vsel %vm340, %v319, 0
    %v357 = vsel %vm340, %v320, 0
    %359 = vmatprep.subr.bf16.mxu0 0
    %360 = vmatpush1.bf16.msra.mxu0 0
    %361 = vmatprep.subr.bf16.mxu0 0
    %362 = vmatpush1.bf16.msra.mxu0 0
    %363 = vmatprep.subr.bf16.mxu0 0
    %364 = vmatpush1.bf16.msra.mxu0 0
    %365 = vmatprep.subr.bf16.mxu0 0
    %366 = vmatpush1.bf16.msra.mxu0 0
    %367 = vmatprep.subr.bf16.mxu0 0
    %368 = vmatpush1.bf16.msra.mxu0 0
    %369 = vmatprep.subr.bf16.mxu0 %v345
    %370 = vmatpush1.bf16.msra.mxu0 %v342
    %371 = vmatprep.subr.bf16.mxu0 %v310
    %372 = vmatpush1.bf16.msra.mxu0 %v309
    %373 = vmatprep.subr.bf16.mxu0 %v304
    %374 = vmatpush1.bf16.msra.mxu0 %v303
    %375 = vmatprep.subr.bf16.mxu0 0
    %376 = vmatpush2.bf16.msra.mxu0 0
    %377 = vmatprep.subr.bf16.mxu0 0
    %378 = vmatpush2.bf16.msra.mxu0 0
    %379 = vmatprep.subr.bf16.mxu0 0
    %380 = vmatpush2.bf16.msra.mxu0 0
    %381 = vmatprep.subr.bf16.mxu0 0
    %382 = vmatpush2.bf16.msra.mxu0 0
    %383 = vmatprep.subr.bf16.mxu0 0
    %384 = vmatpush2.bf16.msra.mxu0 0
    %385 = vmatprep.subr.bf16.mxu0 0
    %386 = vmatpush2.bf16.msra.mxu0 0
    %387 = vmatprep.subr.bf16.mxu0 0
    %388 = vmatpush2.bf16.msra.mxu0 0
    %389 = vmatprep.subr.bf16.mxu0 0
    %390 = vmatpush2.bf16.msra.mxu0 0
    %391 = vmatprep.mubr.bf16.mxu0 0
    %392 = vmatmul.mubr.bf16.gmra.mxu0 %v335
    %v393 = vpop.f32.mrf.mxu0
    %v394 = vadd.f32 %v221, %v393
    %v395 = vpop.f32.mrf.mxu0
    %v396 = vadd.f32 %v225, %v395
    %v397 = vpop.f32.mrf.mxu0
    %v398 = vadd.f32 %v221, %v397
    %v399 = vpop.f32.mrf.mxu0
    %v400 = vadd.f32 %v225, %v399
    %401 = vmatprep.mubr.bf16.mxu0 0
    %402 = vmatmul.mubr.bf16.gmra.mxu0 %v338
    %v403 = vpop.f32.mrf.mxu0
    %v404 = vadd.f32 %v221, %v403
    %v405 = vpop.f32.mrf.mxu0
    %v406 = vadd.f32 %v225, %v405
    %v407 = vpop.f32.mrf.mxu0
    %v408 = vadd.f32 %v221, %v407
    %v409 = vpop.f32.mrf.mxu0
    %v410 = vadd.f32 %v225, %v409
    %411 = vdwg.mxu0
    %412 = vmatprep.subr.bf16.mxu0 0
    %413 = vmatpush1.bf16.msra.mxu0 0
    %414 = vmatprep.subr.bf16.mxu0 0
    %415 = vmatpush1.bf16.msra.mxu0 0
    %416 = vmatprep.subr.bf16.mxu0 0
    %417 = vmatpush1.bf16.msra.mxu0 0
    %418 = vmatprep.subr.bf16.mxu0 0
    %419 = vmatpush1.bf16.msra.mxu0 0
    %420 = vmatprep.subr.bf16.mxu0 0
    %421 = vmatpush1.bf16.msra.mxu0 0
    %422 = vmatprep.subr.bf16.mxu0 %v351
    %423 = vmatpush1.bf16.msra.mxu0 %v348
    %424 = vmatprep.subr.bf16.mxu0 %v312
    %425 = vmatpush1.bf16.msra.mxu0 %v311
    %426 = vmatprep.subr.bf16.mxu0 %v306
    %427 = vmatpush1.bf16.msra.mxu0 %v305
    %428 = vmatprep.subr.bf16.mxu0 0
    %429 = vmatpush2.bf16.msra.mxu0 0
    %430 = vmatprep.subr.bf16.mxu0 0
    %431 = vmatpush2.bf16.msra.mxu0 0
    %432 = vmatprep.subr.bf16.mxu0 0
    %433 = vmatpush2.bf16.msra.mxu0 0
    %434 = vmatprep.subr.bf16.mxu0 0
    %435 = vmatpush2.bf16.msra.mxu0 0
    %436 = vmatprep.subr.bf16.mxu0 0
    %437 = vmatpush2.bf16.msra.mxu0 0
    %438 = vmatprep.subr.bf16.mxu0 0
    %439 = vmatpush2.bf16.msra.mxu0 0
    %440 = vmatprep.subr.bf16.mxu0 0
    %441 = vmatpush2.bf16.msra.mxu0 0
    %442 = vmatprep.subr.bf16.mxu0 0
    %443 = vmatpush2.bf16.msra.mxu0 0
    %444 = vmatprep.mubr.bf16.mxu0 0
    %445 = vmatmul.mubr.bf16.gmra.mxu0 %v335
    %v446 = vpop.f32.mrf.mxu0
    %v447 = vadd.f32 %v229, %v446
    %v448 = vpop.f32.mrf.mxu0
    %v449 = vadd.f32 %v233, %v448
    %v450 = vpop.f32.mrf.mxu0
    %v451 = vadd.f32 %v229, %v450
    %v452 = vpop.f32.mrf.mxu0
    %v453 = vadd.f32 %v233, %v452
    %454 = vmatprep.mubr.bf16.mxu0 0
    %455 = vmatmul.mubr.bf16.gmra.mxu0 %v338
    %v456 = vpop.f32.mrf.mxu0
    %v457 = vadd.f32 %v229, %v456
    %v458 = vpop.f32.mrf.mxu0
    %v459 = vadd.f32 %v233, %v458
    %v460 = vpop.f32.mrf.mxu0
    %v461 = vadd.f32 %v229, %v460
    %v462 = vpop.f32.mrf.mxu0
    %v463 = vadd.f32 %v233, %v462
    %464 = vdwg.mxu0
    %465 = vmatprep.subr.bf16.mxu0 0
    %466 = vmatpush1.bf16.msra.mxu0 0
    %467 = vmatprep.subr.bf16.mxu0 0
    %468 = vmatpush1.bf16.msra.mxu0 0
    %469 = vmatprep.subr.bf16.mxu0 0
    %470 = vmatpush1.bf16.msra.mxu0 0
    %471 = vmatprep.subr.bf16.mxu0 0
    %472 = vmatpush1.bf16.msra.mxu0 0
    %473 = vmatprep.subr.bf16.mxu0 0
    %474 = vmatpush1.bf16.msra.mxu0 0
    %475 = vmatprep.subr.bf16.mxu0 %v357
    %476 = vmatpush1.bf16.msra.mxu0 %v354
    %477 = vmatprep.subr.bf16.mxu0 %v314
    %478 = vmatpush1.bf16.msra.mxu0 %v313
    %479 = vmatprep.subr.bf16.mxu0 %v308
    %480 = vmatpush1.bf16.msra.mxu0 %v307
    %481 = vmatprep.subr.bf16.mxu0 0
    %482 = vmatpush2.bf16.msra.mxu0 0
    %483 = vmatprep.subr.bf16.mxu0 0
    %484 = vmatpush2.bf16.msra.mxu0 0
    %485 = vmatprep.subr.bf16.mxu0 0
    %486 = vmatpush2.bf16.msra.mxu0 0
    %487 = vmatprep.subr.bf16.mxu0 0
    %488 = vmatpush2.bf16.msra.mxu0 0
    %489 = vmatprep.subr.bf16.mxu0 0
    %490 = vmatpush2.bf16.msra.mxu0 0
    %491 = vmatprep.subr.bf16.mxu0 0
    %492 = vmatpush2.bf16.msra.mxu0 0
    %493 = vmatprep.subr.bf16.mxu0 0
    %494 = vmatpush2.bf16.msra.mxu0 0
    %495 = vmatprep.subr.bf16.mxu0 0
    %496 = vmatpush2.bf16.msra.mxu0 0
    %497 = vmatprep.mubr.bf16.mxu0 0
    %498 = vmatmul.mubr.bf16.gmra.mxu0 %v335
    %v499 = vpop.f32.mrf.mxu0
    %v500 = vadd.f32 %v237, %v499
    %v501 = vpop.f32.mrf.mxu0
    %v502 = vadd.f32 %v241, %v501
    %v503 = vpop.f32.mrf.mxu0
    %v504 = vadd.f32 %v237, %v503
    %v505 = vpop.f32.mrf.mxu0
    %v506 = vadd.f32 %v241, %v505
    %507 = vmatprep.mubr.bf16.mxu0 0
    %508 = vmatmul.mubr.bf16.gmra.mxu0 %v338
    %v509 = vpop.f32.mrf.mxu0
    %v510 = vadd.f32 %v237, %v509
    %v511 = vpop.f32.mrf.mxu0
    %v512 = vadd.f32 %v241, %v511
    %v513 = vpop.f32.mrf.mxu0
    %v514 = vadd.f32 %v237, %v513
    %v515 = vpop.f32.mrf.mxu0
    %v516 = vadd.f32 %v241, %v515
    %517 = vdwg.mxu0
    %v518 = vmax.f32 %v394, 0.0
    %v519 = vmax.f32 %v396, 0.0
    %v520 = vmax.f32 %v447, 0.0
    %v521 = vmax.f32 %v449, 0.0
    %v522 = vmax.f32 %v500, 0.0
    %v523 = vmax.f32 %v502, 0.0
    %v524 = vmax.f32 %v398, 0.0
    %v525 = vmax.f32 %v400, 0.0
    %v526 = vmax.f32 %v451, 0.0
    %v527 = vmax.f32 %v453, 0.0
    %v528 = vmax.f32 %v504, 0.0
    %v529 = vmax.f32 %v506, 0.0
    %v530 = vmax.f32 %v404, 0.0
    %v531 = vmax.f32 %v406, 0.0
    %v532 = vmax.f32 %v457, 0.0
    %v533 = vmax.f32 %v459, 0.0
    %v534 = vmax.f32 %v510, 0.0
    %v535 = vmax.f32 %v512, 0.0
    %v536 = vmax.f32 %v408, 0.0
    %v537 = vmax.f32 %v410, 0.0
    %v538 = vmax.f32 %v461, 0.0
    %v539 = vmax.f32 %v463, 0.0
    %v540 = vmax.f32 %v514, 0.0
    %v541 = vmax.f32 %v516, 0.0
    %v542 = vpack.c.bf16 %v524, %v518
    %v543 = vpack.c.bf16 %v525, %v519
    %v544 = vpack.c.bf16 %v526, %v520
    %v545 = vpack.c.bf16 %v527, %v521
    %v546 = vpack.c.bf16 %v528, %v522
    %v547 = vpack.c.bf16 %v529, %v523
    %v548 = vpack.c.bf16 %v536, %v530
    %v549 = vpack.c.bf16 %v537, %v531
    %v550 = vpack.c.bf16 %v538, %v532
    %v551 = vpack.c.bf16 %v539, %v533
    %v552 = vpack.c.bf16 %v540, %v534
    %v553 = vpack.c.bf16 %v541, %v535
    %v554 = vld [vmem:[#allocation7] sm:$0xff]
    %v555 = vld [vmem:[#allocation7 + $0x8] sm:$0xff]
    %v556 = vld [vmem:[#allocation7 + $0x10] sm:$0xff]
    %v557 = vld [vmem:[#allocation7 + $0x18] sm:$0xff]
    %v558 = vld [vmem:[#allocation7 + $0x20] sm:$0xff]
    %v559 = vld [vmem:[#allocation7 + $0x28] sm:$0xff]
    %v560 = vld [vmem:[#allocation7 + $0x30] sm:$0xff]
    %v561 = vld [vmem:[#allocation7 + $0x38] sm:$0xff]
    %v562 = vld [vmem:[#allocation7 + $0x40] sm:$0xff]
    %v563 = vld [vmem:[#allocation7 + $0x48] sm:$0xff]
    %v564 = vld [vmem:[#allocation7 + $0x50] sm:$0xff]
    %v565 = vld [vmem:[#allocation7 + $0x58] sm:$0xff]
    %v566 = vld [vmem:[#allocation7 + $0x60] sm:$0xff]
    %v567 = vld [vmem:[#allocation7 + $0x68] sm:$0xff]
    %v568 = vld [vmem:[#allocation7 + $0x70] sm:$0xff]
    %v569 = vld [vmem:[#allocation7 + $0x78] sm:$0xff]
    %v570 = vld [vmem:[#allocation7 + $0x80] sm:$0xff]
    %v571 = vld [vmem:[#allocation7 + $0x88] sm:$0xff]
    %v572 = vld [vmem:[#allocation7 + $0x90] sm:$0xff]
    %v573 = vld [vmem:[#allocation7 + $0x98] sm:$0xff]
    %v574 = vld [vmem:[#allocation7 + $0xa0] sm:$0xff]
    %v575 = vld [vmem:[#allocation7 + $0xa8] sm:$0xff]
    %v576 = vld [vmem:[#allocation7 + $0xb0] sm:$0xff]
    %v577 = vld [vmem:[#allocation7 + $0xb8] sm:$0xff]
    %v578 = vld [vmem:[#allocation7 + $0xc0] sm:$0xff]
    %v579 = vld [vmem:[#allocation7 + $0xc8] sm:$0xff]
    %v580 = vld [vmem:[#allocation7 + $0xd0] sm:$0xff]
    %v581 = vld [vmem:[#allocation7 + $0xd8] sm:$0xff]
    %v582 = vld [vmem:[#allocation7 + $0xe0] sm:$0xff]
    %v583 = vld [vmem:[#allocation7 + $0xe8] sm:$0xff]
    %v584 = vld [vmem:[#allocation7 + $0xf0] sm:$0xff]
    %v585 = vld [vmem:[#allocation7 + $0xf8] sm:$0xff]
    %v586 = vld [vmem:[#allocation7 + $0x100] sm:$0xff]
    %v587 = vld [vmem:[#allocation7 + $0x108] sm:$0xff]
    %v588 = vld [vmem:[#allocation7 + $0x110] sm:$0xff]
    %v589 = vld [vmem:[#allocation7 + $0x118] sm:$0xff]
    %v590 = vld [vmem:[#allocation7 + $0x120] sm:$0xff]
    %v591 = vld [vmem:[#allocation7 + $0x128] sm:$0xff]
    %v592 = vld [vmem:[#allocation7 + $0x130] sm:$0xff]
    %v593 = vld [vmem:[#allocation7 + $0x138] sm:$0xff]
    %v594 = vld [vmem:[#allocation7 + $0x140] sm:$0xff]
    %v595 = vld [vmem:[#allocation7 + $0x148] sm:$0xff]
    %v596 = vld [vmem:[#allocation7 + $0x150] sm:$0xff]
    %v597 = vld [vmem:[#allocation7 + $0x158] sm:$0xff]
    %v598 = vld [vmem:[#allocation7 + $0x160] sm:$0xff]
    %v599 = vld [vmem:[#allocation7 + $0x168] sm:$0xff]
    %v600 = vld [vmem:[#allocation7 + $0x170] sm:$0xff]
    %v601 = vld [vmem:[#allocation7 + $0x178] sm:$0xff]
    %v602 = vld [vmem:[#allocation7 + $0x180] sm:$0xff]
    %v603 = vld [vmem:[#allocation7 + $0x188] sm:$0xff]
    %v604 = vld [vmem:[#allocation7 + $0x190] sm:$0xff]
    %v605 = vld [vmem:[#allocation7 + $0x198] sm:$0xff]
    %v606 = vld [vmem:[#allocation7 + $0x1a0] sm:$0xff]
    %v607 = vld [vmem:[#allocation7 + $0x1a8] sm:$0xff]
    %v608 = vld [vmem:[#allocation7 + $0x1b0] sm:$0xff]
    %v609 = vld [vmem:[#allocation7 + $0x1b8] sm:$0xff]
    %v610 = vld [vmem:[#allocation7 + $0x1c0] sm:$0xff]
    %v611 = vld [vmem:[#allocation7 + $0x1c8] sm:$0xff]
    %v612 = vld [vmem:[#allocation7 + $0x1d0] sm:$0xff]
    %v613 = vld [vmem:[#allocation7 + $0x1d8] sm:$0xff]
    %v614 = vld [vmem:[#allocation7 + $0x1e0] sm:$0xff]
    %v615 = vld [vmem:[#allocation7 + $0x1e8] sm:$0xff]
    %v616 = vld [vmem:[#allocation7 + $0x1f0] sm:$0xff]
    %v617 = vld [vmem:[#allocation7 + $0x1f8] sm:$0xff]
    %v618 = vld [vmem:[#allocation7 + $0x200] sm:$0xff]
    %v619 = vld [vmem:[#allocation7 + $0x208] sm:$0xff]
    %v620 = vld [vmem:[#allocation7 + $0x210] sm:$0xff]
    %v621 = vld [vmem:[#allocation7 + $0x218] sm:$0xff]
    %v622 = vld [vmem:[#allocation7 + $0x220] sm:$0xff]
    %v623 = vld [vmem:[#allocation7 + $0x228] sm:$0xff]
    %v624 = vld [vmem:[#allocation7 + $0x230] sm:$0xff]
    %v625 = vld [vmem:[#allocation7 + $0x238] sm:$0xff]
    %v626 = vld [vmem:[#allocation7 + $0x240] sm:$0xff]
    %v627 = vld [vmem:[#allocation7 + $0x248] sm:$0xff]
    %v628 = vld [vmem:[#allocation7 + $0x250] sm:$0xff]
    %v629 = vld [vmem:[#allocation7 + $0x258] sm:$0xff]
    %v630 = vld [vmem:[#allocation7 + $0x260] sm:$0xff]
    %v631 = vld [vmem:[#allocation7 + $0x268] sm:$0xff]
    %v632 = vld [vmem:[#allocation7 + $0x270] sm:$0xff]
    %v633 = vld [vmem:[#allocation7 + $0x278] sm:$0xff]
    %v634 = vld [vmem:[#allocation7 + $0x280] sm:$0xff]
    %v635 = vld [vmem:[#allocation7 + $0x288] sm:$0xff]
    %v636 = vld [vmem:[#allocation7 + $0x290] sm:$0xff]
    %v637 = vld [vmem:[#allocation7 + $0x298] sm:$0xff]
    %v638 = vld [vmem:[#allocation7 + $0x2a0] sm:$0xff]
    %v639 = vld [vmem:[#allocation7 + $0x2a8] sm:$0xff]
    %v640 = vld [vmem:[#allocation7 + $0x2b0] sm:$0xff]
    %v641 = vld [vmem:[#allocation7 + $0x2b8] sm:$0xff]
    %v642 = vld [vmem:[#allocation7 + $0x2c0] sm:$0xff]
    %v643 = vld [vmem:[#allocation7 + $0x2c8] sm:$0xff]
    %v644 = vld [vmem:[#allocation7 + $0x2d0] sm:$0xff]
    %v645 = vld [vmem:[#allocation7 + $0x2d8] sm:$0xff]
    %v646 = vld [vmem:[#allocation7 + $0x2e0] sm:$0xff]
    %v647 = vld [vmem:[#allocation7 + $0x2e8] sm:$0xff]
    %v648 = vld [vmem:[#allocation7 + $0x2f0] sm:$0xff]
    %v649 = vld [vmem:[#allocation7 + $0x2f8] sm:$0xff]
    %v650 = vld [vmem:[#allocation7 + $0x300] sm:$0xff]
    %v651 = vld [vmem:[#allocation7 + $0x308] sm:$0xff]
    %v652 = vld [vmem:[#allocation7 + $0x310] sm:$0xff]
    %v653 = vld [vmem:[#allocation7 + $0x318] sm:$0xff]
    %v654 = vld [vmem:[#allocation7 + $0x320] sm:$0xff]
    %v655 = vld [vmem:[#allocation7 + $0x328] sm:$0xff]
    %v656 = vld [vmem:[#allocation7 + $0x330] sm:$0xff]
    %v657 = vld [vmem:[#allocation7 + $0x338] sm:$0xff]
    %v658 = vld [vmem:[#allocation7 + $0x340] sm:$0xff]
    %v659 = vld [vmem:[#allocation7 + $0x348] sm:$0xff]
    %v660 = vld [vmem:[#allocation7 + $0x350] sm:$0xff]
    %v661 = vld [vmem:[#allocation7 + $0x358] sm:$0xff]
    %v662 = vld [vmem:[#allocation7 + $0x360] sm:$0xff]
    %v663 = vld [vmem:[#allocation7 + $0x368] sm:$0xff]
    %v664 = vld [vmem:[#allocation7 + $0x370] sm:$0xff]
    %v665 = vld [vmem:[#allocation7 + $0x378] sm:$0xff]
    %v666 = vld [vmem:[#allocation7 + $0x380] sm:$0xff]
    %v667 = vld [vmem:[#allocation7 + $0x388] sm:$0xff]
    %v668 = vld [vmem:[#allocation7 + $0x390] sm:$0xff]
    %v669 = vld [vmem:[#allocation7 + $0x398] sm:$0xff]
    %v670 = vld [vmem:[#allocation7 + $0x3a0] sm:$0xff]
    %v671 = vld [vmem:[#allocation7 + $0x3a8] sm:$0xff]
    %v672 = vld [vmem:[#allocation7 + $0x3b0] sm:$0xff]
    %v673 = vld [vmem:[#allocation7 + $0x3b8] sm:$0xff]
    %v674 = vld [vmem:[#allocation7 + $0x3c0] sm:$0xff]
    %v675 = vld [vmem:[#allocation7 + $0x3c8] sm:$0xff]
    %v676 = vld [vmem:[#allocation7 + $0x3d0] sm:$0xff]
    %v677 = vld [vmem:[#allocation7 + $0x3d8] sm:$0xff]
    %v678 = vld [vmem:[#allocation7 + $0x3e0] sm:$0xff]
    %v679 = vld [vmem:[#allocation7 + $0x3e8] sm:$0xff]
    %v680 = vld [vmem:[#allocation7 + $0x3f0] sm:$0xff]
    %v681 = vld [vmem:[#allocation7 + $0x3f8] sm:$0xff]
    %v682 = vld [vmem:[#allocation7 + $0x400] sm:$0xff]
    %v683 = vld [vmem:[#allocation7 + $0x408] sm:$0xff]
    %v684 = vld [vmem:[#allocation7 + $0x410] sm:$0xff]
    %v685 = vld [vmem:[#allocation7 + $0x418] sm:$0xff]
    %v686 = vld [vmem:[#allocation7 + $0x420] sm:$0xff]
    %v687 = vld [vmem:[#allocation7 + $0x428] sm:$0xff]
    %v688 = vld [vmem:[#allocation7 + $0x430] sm:$0xff]
    %v689 = vld [vmem:[#allocation7 + $0x438] sm:$0xff]
    %v690 = vld [vmem:[#allocation7 + $0x440] sm:$0xff]
    %v691 = vld [vmem:[#allocation7 + $0x448] sm:$0xff]
    %v692 = vld [vmem:[#allocation7 + $0x450] sm:$0xff]
    %v693 = vld [vmem:[#allocation7 + $0x458] sm:$0xff]
    %v694 = vld [vmem:[#allocation7 + $0x460] sm:$0xff]
    %v695 = vld [vmem:[#allocation7 + $0x468] sm:$0xff]
    %v696 = vld [vmem:[#allocation7 + $0x470] sm:$0xff]
    %v697 = vld [vmem:[#allocation7 + $0x478] sm:$0xff]
    %v698 = vunpack.c.l.s8.bf16 %v554
    %v699 = vunpack.c.l.s8.bf16 %v555
    %v700 = vunpack.c.l.s8.bf16 %v556
    %v701 = vunpack.c.l.s8.bf16 %v557
    %v702 = vunpack.c.l.s8.bf16 %v558
    %v703 = vunpack.c.l.s8.bf16 %v559
    %v704 = vunpack.c.h.s8.bf16 %v554
    %v705 = vunpack.c.h.s8.bf16 %v555
    %v706 = vunpack.c.h.s8.bf16 %v556
    %v707 = vunpack.c.h.s8.bf16 %v557
    %v708 = vunpack.c.h.s8.bf16 %v558
    %v709 = vunpack.c.h.s8.bf16 %v559
    %v710 = vunpack.c.l.s8.bf16 %v560
    %v711 = vunpack.c.l.s8.bf16 %v561
    %v712 = vunpack.c.l.s8.bf16 %v562
    %v713 = vunpack.c.l.s8.bf16 %v563
    %v714 = vunpack.c.l.s8.bf16 %v564
    %v715 = vunpack.c.l.s8.bf16 %v565
    %v716 = vunpack.c.h.s8.bf16 %v560
    %v717 = vunpack.c.h.s8.bf16 %v561
    %v718 = vunpack.c.h.s8.bf16 %v562
    %v719 = vunpack.c.h.s8.bf16 %v563
    %v720 = vunpack.c.h.s8.bf16 %v564
    %v721 = vunpack.c.h.s8.bf16 %v565
    %v722 = vunpack.c.l.s8.bf16 %v566
    %v723 = vunpack.c.l.s8.bf16 %v567
    %v724 = vunpack.c.l.s8.bf16 %v568
    %v725 = vunpack.c.l.s8.bf16 %v569
    %v726 = vunpack.c.l.s8.bf16 %v570
    %v727 = vunpack.c.l.s8.bf16 %v571
    %v728 = vunpack.c.h.s8.bf16 %v566
    %v729 = vunpack.c.h.s8.bf16 %v567
    %v730 = vunpack.c.h.s8.bf16 %v568
    %v731 = vunpack.c.h.s8.bf16 %v569
    %v732 = vunpack.c.h.s8.bf16 %v570
    %v733 = vunpack.c.h.s8.bf16 %v571
    %v734 = vunpack.c.l.s8.bf16 %v572
    %v735 = vunpack.c.l.s8.bf16 %v573
    %v736 = vunpack.c.l.s8.bf16 %v574
    %v737 = vunpack.c.l.s8.bf16 %v575
    %v738 = vunpack.c.l.s8.bf16 %v576
    %v739 = vunpack.c.l.s8.bf16 %v577
    %v740 = vunpack.c.h.s8.bf16 %v572
    %v741 = vunpack.c.h.s8.bf16 %v573
    %v742 = vunpack.c.h.s8.bf16 %v574
    %v743 = vunpack.c.h.s8.bf16 %v575
    %v744 = vunpack.c.h.s8.bf16 %v576
    %v745 = vunpack.c.h.s8.bf16 %v577
    %v746 = vunpack.c.l.s8.bf16 %v578
    %v747 = vunpack.c.l.s8.bf16 %v579
    %v748 = vunpack.c.l.s8.bf16 %v580
    %v749 = vunpack.c.l.s8.bf16 %v581
    %v750 = vunpack.c.l.s8.bf16 %v582
    %v751 = vunpack.c.l.s8.bf16 %v583
    %v752 = vunpack.c.h.s8.bf16 %v578
    %v753 = vunpack.c.h.s8.bf16 %v579
    %v754 = vunpack.c.h.s8.bf16 %v580
    %v755 = vunpack.c.h.s8.bf16 %v581
    %v756 = vunpack.c.h.s8.bf16 %v582
    %v757 = vunpack.c.h.s8.bf16 %v583
    %v758 = vunpack.c.l.s8.bf16 %v584
    %v759 = vunpack.c.l.s8.bf16 %v585
    %v760 = vunpack.c.l.s8.bf16 %v586
    %v761 = vunpack.c.l.s8.bf16 %v587
    %v762 = vunpack.c.l.s8.bf16 %v588
    %v763 = vunpack.c.l.s8.bf16 %v589
    %v764 = vunpack.c.h.s8.bf16 %v584
    %v765 = vunpack.c.h.s8.bf16 %v585
    %v766 = vunpack.c.h.s8.bf16 %v586
    %v767 = vunpack.c.h.s8.bf16 %v587
    %v768 = vunpack.c.h.s8.bf16 %v588
    %v769 = vunpack.c.h.s8.bf16 %v589
    %v770 = vunpack.c.l.s8.bf16 %v590
    %v771 = vunpack.c.l.s8.bf16 %v591
    %v772 = vunpack.c.l.s8.bf16 %v592
    %v773 = vunpack.c.l.s8.bf16 %v593
    %v774 = vunpack.c.l.s8.bf16 %v594
    %v775 = vunpack.c.l.s8.bf16 %v595
    %v776 = vunpack.c.h.s8.bf16 %v590
    %v777 = vunpack.c.h.s8.bf16 %v591
    %v778 = vunpack.c.h.s8.bf16 %v592
    %v779 = vunpack.c.h.s8.bf16 %v593
    %v780 = vunpack.c.h.s8.bf16 %v594
    %v781 = vunpack.c.h.s8.bf16 %v595
    %v782 = vunpack.c.l.s8.bf16 %v596
    %v783 = vunpack.c.l.s8.bf16 %v597
    %v784 = vunpack.c.l.s8.bf16 %v598
    %v785 = vunpack.c.l.s8.bf16 %v599
    %v786 = vunpack.c.l.s8.bf16 %v600
    %v787 = vunpack.c.l.s8.bf16 %v601
    %v788 = vunpack.c.h.s8.bf16 %v596
    %v789 = vunpack.c.h.s8.bf16 %v597
    %v790 = vunpack.c.h.s8.bf16 %v598
    %v791 = vunpack.c.h.s8.bf16 %v599
    %v792 = vunpack.c.h.s8.bf16 %v600
    %v793 = vunpack.c.h.s8.bf16 %v601
    %v794 = vunpack.c.l.s8.bf16 %v602
    %v795 = vunpack.c.l.s8.bf16 %v603
    %v796 = vunpack.c.l.s8.bf16 %v604
    %v797 = vunpack.c.l.s8.bf16 %v605
    %v798 = vunpack.c.l.s8.bf16 %v606
    %v799 = vunpack.c.l.s8.bf16 %v607
    %v800 = vunpack.c.h.s8.bf16 %v602
    %v801 = vunpack.c.h.s8.bf16 %v603
    %v802 = vunpack.c.h.s8.bf16 %v604
    %v803 = vunpack.c.h.s8.bf16 %v605
    %v804 = vunpack.c.h.s8.bf16 %v606
    %v805 = vunpack.c.h.s8.bf16 %v607
    %v806 = vunpack.c.l.s8.bf16 %v608
    %v807 = vunpack.c.l.s8.bf16 %v609
    %v808 = vunpack.c.l.s8.bf16 %v610
    %v809 = vunpack.c.l.s8.bf16 %v611
    %v810 = vunpack.c.l.s8.bf16 %v612
    %v811 = vunpack.c.l.s8.bf16 %v613
    %v812 = vunpack.c.h.s8.bf16 %v608
    %v813 = vunpack.c.h.s8.bf16 %v609
    %v814 = vunpack.c.h.s8.bf16 %v610
    %v815 = vunpack.c.h.s8.bf16 %v611
    %v816 = vunpack.c.h.s8.bf16 %v612
    %v817 = vunpack.c.h.s8.bf16 %v613
    %v818 = vunpack.c.l.s8.bf16 %v614
    %v819 = vunpack.c.l.s8.bf16 %v615
    %v820 = vunpack.c.l.s8.bf16 %v616
    %v821 = vunpack.c.l.s8.bf16 %v617
    %v822 = vunpack.c.l.s8.bf16 %v618
    %v823 = vunpack.c.l.s8.bf16 %v619
    %v824 = vunpack.c.h.s8.bf16 %v614
    %v825 = vunpack.c.h.s8.bf16 %v615
    %v826 = vunpack.c.h.s8.bf16 %v616
    %v827 = vunpack.c.h.s8.bf16 %v617
    %v828 = vunpack.c.h.s8.bf16 %v618
    %v829 = vunpack.c.h.s8.bf16 %v619
    %v830 = vunpack.c.l.s8.bf16 %v620
    %v831 = vunpack.c.l.s8.bf16 %v621
    %v832 = vunpack.c.l.s8.bf16 %v622
    %v833 = vunpack.c.l.s8.bf16 %v623
    %v834 = vunpack.c.l.s8.bf16 %v624
    %v835 = vunpack.c.l.s8.bf16 %v625
    %v836 = vunpack.c.h.s8.bf16 %v620
    %v837 = vunpack.c.h.s8.bf16 %v621
    %v838 = vunpack.c.h.s8.bf16 %v622
    %v839 = vunpack.c.h.s8.bf16 %v623
    %v840 = vunpack.c.h.s8.bf16 %v624
    %v841 = vunpack.c.h.s8.bf16 %v625
    %v842 = vunpack.c.l.s8.bf16 %v626
    %v843 = vunpack.c.l.s8.bf16 %v627
    %v844 = vunpack.c.l.s8.bf16 %v628
    %v845 = vunpack.c.l.s8.bf16 %v629
    %v846 = vunpack.c.l.s8.bf16 %v630
    %v847 = vunpack.c.l.s8.bf16 %v631
    %v848 = vunpack.c.h.s8.bf16 %v626
    %v849 = vunpack.c.h.s8.bf16 %v627
    %v850 = vunpack.c.h.s8.bf16 %v628
    %v851 = vunpack.c.h.s8.bf16 %v629
    %v852 = vunpack.c.h.s8.bf16 %v630
    %v853 = vunpack.c.h.s8.bf16 %v631
    %v854 = vunpack.c.l.s8.bf16 %v632
    %v855 = vunpack.c.l.s8.bf16 %v633
    %v856 = vunpack.c.l.s8.bf16 %v634
    %v857 = vunpack.c.l.s8.bf16 %v635
    %v858 = vunpack.c.l.s8.bf16 %v636
    %v859 = vunpack.c.l.s8.bf16 %v637
    %v860 = vunpack.c.h.s8.bf16 %v632
    %v861 = vunpack.c.h.s8.bf16 %v633
    %v862 = vunpack.c.h.s8.bf16 %v634
    %v863 = vunpack.c.h.s8.bf16 %v635
    %v864 = vunpack.c.h.s8.bf16 %v636
    %v865 = vunpack.c.h.s8.bf16 %v637
    %v866 = vunpack.c.l.s8.bf16 %v638
    %v867 = vunpack.c.l.s8.bf16 %v639
    %v868 = vunpack.c.l.s8.bf16 %v640
    %v869 = vunpack.c.l.s8.bf16 %v641
    %v870 = vunpack.c.l.s8.bf16 %v642
    %v871 = vunpack.c.l.s8.bf16 %v643
    %v872 = vunpack.c.h.s8.bf16 %v638
    %v873 = vunpack.c.h.s8.bf16 %v639
    %v874 = vunpack.c.h.s8.bf16 %v640
    %v875 = vunpack.c.h.s8.bf16 %v641
    %v876 = vunpack.c.h.s8.bf16 %v642
    %v877 = vunpack.c.h.s8.bf16 %v643
    %v878 = vunpack.c.l.s8.bf16 %v644
    %v879 = vunpack.c.l.s8.bf16 %v645
    %v880 = vunpack.c.l.s8.bf16 %v646
    %v881 = vunpack.c.l.s8.bf16 %v647
    %v882 = vunpack.c.l.s8.bf16 %v648
    %v883 = vunpack.c.l.s8.bf16 %v649
    %v884 = vunpack.c.h.s8.bf16 %v644
    %v885 = vunpack.c.h.s8.bf16 %v645
    %v886 = vunpack.c.h.s8.bf16 %v646
    %v887 = vunpack.c.h.s8.bf16 %v647
    %v888 = vunpack.c.h.s8.bf16 %v648
    %v889 = vunpack.c.h.s8.bf16 %v649
    %v890 = vunpack.c.l.s8.bf16 %v650
    %v891 = vunpack.c.l.s8.bf16 %v651
    %v892 = vunpack.c.l.s8.bf16 %v652
    %v893 = vunpack.c.l.s8.bf16 %v653
    %v894 = vunpack.c.l.s8.bf16 %v654
    %v895 = vunpack.c.l.s8.bf16 %v655
    %v896 = vunpack.c.h.s8.bf16 %v650
    %v897 = vunpack.c.h.s8.bf16 %v651
    %v898 = vunpack.c.h.s8.bf16 %v652
    %v899 = vunpack.c.h.s8.bf16 %v653
    %v900 = vunpack.c.h.s8.bf16 %v654
    %v901 = vunpack.c.h.s8.bf16 %v655
    %v902 = vunpack.c.l.s8.bf16 %v656
    %v903 = vunpack.c.l.s8.bf16 %v657
    %v904 = vunpack.c.l.s8.bf16 %v658
    %v905 = vunpack.c.l.s8.bf16 %v659
    %v906 = vunpack.c.l.s8.bf16 %v660
    %v907 = vunpack.c.l.s8.bf16 %v661
    %v908 = vunpack.c.h.s8.bf16 %v656
    %v909 = vunpack.c.h.s8.bf16 %v657
    %v910 = vunpack.c.h.s8.bf16 %v658
    %v911 = vunpack.c.h.s8.bf16 %v659
    %v912 = vunpack.c.h.s8.bf16 %v660
    %v913 = vunpack.c.h.s8.bf16 %v661
    %v914 = vunpack.c.l.s8.bf16 %v662
    %v915 = vunpack.c.l.s8.bf16 %v663
    %v916 = vunpack.c.l.s8.bf16 %v664
    %v917 = vunpack.c.l.s8.bf16 %v665
    %v918 = vunpack.c.l.s8.bf16 %v666
    %v919 = vunpack.c.l.s8.bf16 %v667
    %v920 = vunpack.c.h.s8.bf16 %v662
    %v921 = vunpack.c.h.s8.bf16 %v663
    %v922 = vunpack.c.h.s8.bf16 %v664
    %v923 = vunpack.c.h.s8.bf16 %v665
    %v924 = vunpack.c.h.s8.bf16 %v666
    %v925 = vunpack.c.h.s8.bf16 %v667
    %v926 = vunpack.c.l.s8.bf16 %v668
    %v927 = vunpack.c.l.s8.bf16 %v669
    %v928 = vunpack.c.l.s8.bf16 %v670
    %v929 = vunpack.c.l.s8.bf16 %v671
    %v930 = vunpack.c.l.s8.bf16 %v672
    %v931 = vunpack.c.l.s8.bf16 %v673
    %v932 = vunpack.c.h.s8.bf16 %v668
    %v933 = vunpack.c.h.s8.bf16 %v669
    %v934 = vunpack.c.h.s8.bf16 %v670
    %v935 = vunpack.c.h.s8.bf16 %v671
    %v936 = vunpack.c.h.s8.bf16 %v672
    %v937 = vunpack.c.h.s8.bf16 %v673
    %v938 = vunpack.c.l.s8.bf16 %v674
    %v939 = vunpack.c.l.s8.bf16 %v675
    %v940 = vunpack.c.l.s8.bf16 %v676
    %v941 = vunpack.c.l.s8.bf16 %v677
    %v942 = vunpack.c.l.s8.bf16 %v678
    %v943 = vunpack.c.l.s8.bf16 %v679
    %v944 = vunpack.c.h.s8.bf16 %v674
    %v945 = vunpack.c.h.s8.bf16 %v675
    %v946 = vunpack.c.h.s8.bf16 %v676
    %v947 = vunpack.c.h.s8.bf16 %v677
    %v948 = vunpack.c.h.s8.bf16 %v678
    %v949 = vunpack.c.h.s8.bf16 %v679
    %v950 = vunpack.c.l.s8.bf16 %v680
    %v951 = vunpack.c.l.s8.bf16 %v681
    %v952 = vunpack.c.l.s8.bf16 %v682
    %v953 = vunpack.c.l.s8.bf16 %v683
    %v954 = vunpack.c.l.s8.bf16 %v684
    %v955 = vunpack.c.l.s8.bf16 %v685
    %v956 = vunpack.c.h.s8.bf16 %v680
    %v957 = vunpack.c.h.s8.bf16 %v681
    %v958 = vunpack.c.h.s8.bf16 %v682
    %v959 = vunpack.c.h.s8.bf16 %v683
    %v960 = vunpack.c.h.s8.bf16 %v684
    %v961 = vunpack.c.h.s8.bf16 %v685
    %v962 = vunpack.c.l.s8.bf16 %v686
    %v963 = vunpack.c.l.s8.bf16 %v687
    %v964 = vunpack.c.l.s8.bf16 %v688
    %v965 = vunpack.c.l.s8.bf16 %v689
    %v966 = vunpack.c.l.s8.bf16 %v690
    %v967 = vunpack.c.l.s8.bf16 %v691
    %v968 = vunpack.c.h.s8.bf16 %v686
    %v969 = vunpack.c.h.s8.bf16 %v687
    %v970 = vunpack.c.h.s8.bf16 %v688
    %v971 = vunpack.c.h.s8.bf16 %v689
    %v972 = vunpack.c.h.s8.bf16 %v690
    %v973 = vunpack.c.h.s8.bf16 %v691
    %v974 = vunpack.c.l.s8.bf16 %v692
    %v975 = vunpack.c.l.s8.bf16 %v693
    %v976 = vunpack.c.l.s8.bf16 %v694
    %v977 = vunpack.c.l.s8.bf16 %v695
    %v978 = vunpack.c.l.s8.bf16 %v696
    %v979 = vunpack.c.l.s8.bf16 %v697
    %v980 = vunpack.c.h.s8.bf16 %v692
    %v981 = vunpack.c.h.s8.bf16 %v693
    %v982 = vunpack.c.h.s8.bf16 %v694
    %v983 = vunpack.c.h.s8.bf16 %v695
    %v984 = vunpack.c.h.s8.bf16 %v696
    %v985 = vunpack.c.h.s8.bf16 %v697
    %986 = vmatprep.subr.bf16.mxu0 %v741
    %987 = vmatpush1.bf16.msra.mxu0 %v740
    %988 = vmatprep.subr.bf16.mxu0 %v735
    %989 = vmatpush1.bf16.msra.mxu0 %v734
    %990 = vmatprep.subr.bf16.mxu0 %v729
    %991 = vmatpush1.bf16.msra.mxu0 %v728
    %992 = vmatprep.subr.bf16.mxu0 %v723
    %993 = vmatpush1.bf16.msra.mxu0 %v722
    %994 = vmatprep.subr.bf16.mxu0 %v717
    %995 = vmatpush1.bf16.msra.mxu0 %v716
    %996 = vmatprep.subr.bf16.mxu0 %v711
    %997 = vmatpush1.bf16.msra.mxu0 %v710
    %998 = vmatprep.subr.bf16.mxu0 %v705
    %999 = vmatpush1.bf16.msra.mxu0 %v704
    %1000 = vmatprep.subr.bf16.mxu0 %v699
    %1001 = vmatpush1.bf16.msra.mxu0 %v698
    %1002 = vmatprep.subr.bf16.mxu0 %v789
    %1003 = vmatpush2.bf16.msra.mxu0 %v788
    %1004 = vmatprep.subr.bf16.mxu0 %v783
    %1005 = vmatpush2.bf16.msra.mxu0 %v782
    %1006 = vmatprep.subr.bf16.mxu0 %v777
    %1007 = vmatpush2.bf16.msra.mxu0 %v776
    %1008 = vmatprep.subr.bf16.mxu0 %v771
    %1009 = vmatpush2.bf16.msra.mxu0 %v770
    %1010 = vmatprep.subr.bf16.mxu0 %v765
    %1011 = vmatpush2.bf16.msra.mxu0 %v764
    %1012 = vmatprep.subr.bf16.mxu0 %v759
    %1013 = vmatpush2.bf16.msra.mxu0 %v758
    %1014 = vmatprep.subr.bf16.mxu0 %v753
    %1015 = vmatpush2.bf16.msra.mxu0 %v752
    %1016 = vmatprep.subr.bf16.mxu0 %v747
    %1017 = vmatpush2.bf16.msra.mxu0 %v746
    %1018 = vmatprep.mubr.bf16.mxu0 %v543
    %1019 = vmatmul.mubr.bf16.gmra.mxu0 %v542
    %v1020 = vpop.f32.mrf.mxu0
    %v1021 = vadd.f32 0.0, %v1020
    %v1022 = vpop.f32.mrf.mxu0
    %v1023 = vadd.f32 0.0, %v1022
    %v1024 = vpop.f32.mrf.mxu0
    %v1025 = vadd.f32 0.0, %v1024
    %v1026 = vpop.f32.mrf.mxu0
    %v1027 = vadd.f32 0.0, %v1026
    %1028 = vmatprep.mubr.bf16.mxu0 %v549
    %1029 = vmatmul.mubr.bf16.gmra.mxu0 %v548
    %v1030 = vpop.f32.mrf.mxu0
    %v1031 = vadd.f32 0.0, %v1030
    %v1032 = vpop.f32.mrf.mxu0
    %v1033 = vadd.f32 0.0, %v1032
    %v1034 = vpop.f32.mrf.mxu0
    %v1035 = vadd.f32 0.0, %v1034
    %v1036 = vpop.f32.mrf.mxu0
    %v1037 = vadd.f32 0.0, %v1036
    %1038 = vdwg.mxu0
    %1039 = vmatprep.subr.bf16.mxu0 %v837
    %1040 = vmatpush1.bf16.msra.mxu0 %v836
    %1041 = vmatprep.subr.bf16.mxu0 %v831
    %1042 = vmatpush1.bf16.msra.mxu0 %v830
    %1043 = vmatprep.subr.bf16.mxu0 %v825
    %1044 = vmatpush1.bf16.msra.mxu0 %v824
    %1045 = vmatprep.subr.bf16.mxu0 %v819
    %1046 = vmatpush1.bf16.msra.mxu0 %v818
    %1047 = vmatprep.subr.bf16.mxu0 %v813
    %1048 = vmatpush1.bf16.msra.mxu0 %v812
    %1049 = vmatprep.subr.bf16.mxu0 %v807
    %1050 = vmatpush1.bf16.msra.mxu0 %v806
    %1051 = vmatprep.subr.bf16.mxu0 %v801
    %1052 = vmatpush1.bf16.msra.mxu0 %v800
    %1053 = vmatprep.subr.bf16.mxu0 %v795
    %1054 = vmatpush1.bf16.msra.mxu0 %v794
    %1055 = vmatprep.subr.bf16.mxu0 %v885
    %1056 = vmatpush2.bf16.msra.mxu0 %v884
    %1057 = vmatprep.subr.bf16.mxu0 %v879
    %1058 = vmatpush2.bf16.msra.mxu0 %v878
    %1059 = vmatprep.subr.bf16.mxu0 %v873
    %1060 = vmatpush2.bf16.msra.mxu0 %v872
    %1061 = vmatprep.subr.bf16.mxu0 %v867
    %1062 = vmatpush2.bf16.msra.mxu0 %v866
    %1063 = vmatprep.subr.bf16.mxu0 %v861
    %1064 = vmatpush2.bf16.msra.mxu0 %v860
    %1065 = vmatprep.subr.bf16.mxu0 %v855
    %1066 = vmatpush2.bf16.msra.mxu0 %v854
    %1067 = vmatprep.subr.bf16.mxu0 %v849
    %1068 = vmatpush2.bf16.msra.mxu0 %v848
    %1069 = vmatprep.subr.bf16.mxu0 %v843
    %1070 = vmatpush2.bf16.msra.mxu0 %v842
    %1071 = vmatprep.mubr.bf16.mxu0 %v545
    %1072 = vmatmul.mubr.bf16.gmra.mxu0 %v544
    %v1073 = vpop.f32.mrf.mxu0
    %v1074 = vadd.f32 %v1021, %v1073
    %v1075 = vpop.f32.mrf.mxu0
    %v1076 = vadd.f32 %v1023, %v1075
    %v1077 = vpop.f32.mrf.mxu0
    %v1078 = vadd.f32 %v1025, %v1077
    %v1079 = vpop.f32.mrf.mxu0
    %v1080 = vadd.f32 %v1027, %v1079
    %1081 = vmatprep.mubr.bf16.mxu0 %v551
    %1082 = vmatmul.mubr.bf16.gmra.mxu0 %v550
    %v1083 = vpop.f32.mrf.mxu0
    %v1084 = vadd.f32 %v1031, %v1083
    %v1085 = vpop.f32.mrf.mxu0
    %v1086 = vadd.f32 %v1033, %v1085
    %v1087 = vpop.f32.mrf.mxu0
    %v1088 = vadd.f32 %v1035, %v1087
    %v1089 = vpop.f32.mrf.mxu0
    %v1090 = vadd.f32 %v1037, %v1089
    %1091 = vdwg.mxu0
    %1092 = vmatprep.subr.bf16.mxu0 %v933
    %1093 = vmatpush1.bf16.msra.mxu0 %v932
    %1094 = vmatprep.subr.bf16.mxu0 %v927
    %1095 = vmatpush1.bf16.msra.mxu0 %v926
    %1096 = vmatprep.subr.bf16.mxu0 %v921
    %1097 = vmatpush1.bf16.msra.mxu0 %v920
    %1098 = vmatprep.subr.bf16.mxu0 %v915
    %1099 = vmatpush1.bf16.msra.mxu0 %v914
    %1100 = vmatprep.subr.bf16.mxu0 %v909
    %1101 = vmatpush1.bf16.msra.mxu0 %v908
    %1102 = vmatprep.subr.bf16.mxu0 %v903
    %1103 = vmatpush1.bf16.msra.mxu0 %v902
    %1104 = vmatprep.subr.bf16.mxu0 %v897
    %1105 = vmatpush1.bf16.msra.mxu0 %v896
    %1106 = vmatprep.subr.bf16.mxu0 %v891
    %1107 = vmatpush1.bf16.msra.mxu0 %v890
    %1108 = vmatprep.subr.bf16.mxu0 %v981
    %1109 = vmatpush2.bf16.msra.mxu0 %v980
    %1110 = vmatprep.subr.bf16.mxu0 %v975
    %1111 = vmatpush2.bf16.msra.mxu0 %v974
    %1112 = vmatprep.subr.bf16.mxu0 %v969
    %1113 = vmatpush2.bf16.msra.mxu0 %v968
    %1114 = vmatprep.subr.bf16.mxu0 %v963
    %1115 = vmatpush2.bf16.msra.mxu0 %v962
    %1116 = vmatprep.subr.bf16.mxu0 %v957
    %1117 = vmatpush2.bf16.msra.mxu0 %v956
    %1118 = vmatprep.subr.bf16.mxu0 %v951
    %1119 = vmatpush2.bf16.msra.mxu0 %v950
    %1120 = vmatprep.subr.bf16.mxu0 %v945
    %1121 = vmatpush2.bf16.msra.mxu0 %v944
    %1122 = vmatprep.subr.bf16.mxu0 %v939
    %1123 = vmatpush2.bf16.msra.mxu0 %v938
    %1124 = vmatprep.mubr.bf16.mxu0 %v547
    %1125 = vmatmul.mubr.bf16.gmra.mxu0 %v546
    %v1126 = vpop.f32.mrf.mxu0
    %v1127 = vadd.f32 %v1074, %v1126
    %v1128 = vpop.f32.mrf.mxu0
    %v1129 = vadd.f32 %v1076, %v1128
    %v1130 = vpop.f32.mrf.mxu0
    %v1131 = vadd.f32 %v1078, %v1130
    %v1132 = vpop.f32.mrf.mxu0
    %v1133 = vadd.f32 %v1080, %v1132
    %1134 = vmatprep.mubr.bf16.mxu0 %v553
    %1135 = vmatmul.mubr.bf16.gmra.mxu0 %v552
    %v1136 = vpop.f32.mrf.mxu0
    %v1137 = vadd.f32 %v1084, %v1136
    %v1138 = vpop.f32.mrf.mxu0
    %v1139 = vadd.f32 %v1086, %v1138
    %v1140 = vpop.f32.mrf.mxu0
    %v1141 = vadd.f32 %v1088, %v1140
    %v1142 = vpop.f32.mrf.mxu0
    %v1143 = vadd.f32 %v1090, %v1142
    %1144 = vdwg.mxu0
    %1145 = vmatprep.subr.bf16.mxu0 %v743
    %1146 = vmatpush1.bf16.msra.mxu0 %v742
    %1147 = vmatprep.subr.bf16.mxu0 %v737
    %1148 = vmatpush1.bf16.msra.mxu0 %v736
    %1149 = vmatprep.subr.bf16.mxu0 %v731
    %1150 = vmatpush1.bf16.msra.mxu0 %v730
    %1151 = vmatprep.subr.bf16.mxu0 %v725
    %1152 = vmatpush1.bf16.msra.mxu0 %v724
    %1153 = vmatprep.subr.bf16.mxu0 %v719
    %1154 = vmatpush1.bf16.msra.mxu0 %v718
    %1155 = vmatprep.subr.bf16.mxu0 %v713
    %1156 = vmatpush1.bf16.msra.mxu0 %v712
    %1157 = vmatprep.subr.bf16.mxu0 %v707
    %1158 = vmatpush1.bf16.msra.mxu0 %v706
    %1159 = vmatprep.subr.bf16.mxu0 %v701
    %1160 = vmatpush1.bf16.msra.mxu0 %v700
    %1161 = vmatprep.subr.bf16.mxu0 %v791
    %1162 = vmatpush2.bf16.msra.mxu0 %v790
    %1163 = vmatprep.subr.bf16.mxu0 %v785
    %1164 = vmatpush2.bf16.msra.mxu0 %v784
    %1165 = vmatprep.subr.bf16.mxu0 %v779
    %1166 = vmatpush2.bf16.msra.mxu0 %v778
    %1167 = vmatprep.subr.bf16.mxu0 %v773
    %1168 = vmatpush2.bf16.msra.mxu0 %v772
    %1169 = vmatprep.subr.bf16.mxu0 %v767
    %1170 = vmatpush2.bf16.msra.mxu0 %v766
    %1171 = vmatprep.subr.bf16.mxu0 %v761
    %1172 = vmatpush2.bf16.msra.mxu0 %v760
    %1173 = vmatprep.subr.bf16.mxu0 %v755
    %1174 = vmatpush2.bf16.msra.mxu0 %v754
    %1175 = vmatprep.subr.bf16.mxu0 %v749
    %1176 = vmatpush2.bf16.msra.mxu0 %v748
    %1177 = vmatprep.mubr.bf16.mxu0 %v543
    %1178 = vmatmul.mubr.bf16.gmra.mxu0 %v542
    %v1179 = vpop.f32.mrf.mxu0
    %v1180 = vadd.f32 0.0, %v1179
    %v1181 = vpop.f32.mrf.mxu0
    %v1182 = vadd.f32 0.0, %v1181
    %v1183 = vpop.f32.mrf.mxu0
    %v1184 = vadd.f32 0.0, %v1183
    %v1185 = vpop.f32.mrf.mxu0
    %v1186 = vadd.f32 0.0, %v1185
    %1187 = vmatprep.mubr.bf16.mxu0 %v549
    %1188 = vmatmul.mubr.bf16.gmra.mxu0 %v548
    %v1189 = vpop.f32.mrf.mxu0
    %v1190 = vadd.f32 0.0, %v1189
    %v1191 = vpop.f32.mrf.mxu0
    %v1192 = vadd.f32 0.0, %v1191
    %v1193 = vpop.f32.mrf.mxu0
    %v1194 = vadd.f32 0.0, %v1193
    %v1195 = vpop.f32.mrf.mxu0
    %v1196 = vadd.f32 0.0, %v1195
    %1197 = vdwg.mxu0
    %1198 = vmatprep.subr.bf16.mxu0 %v839
    %1199 = vmatpush1.bf16.msra.mxu0 %v838
    %1200 = vmatprep.subr.bf16.mxu0 %v833
    %1201 = vmatpush1.bf16.msra.mxu0 %v832
    %1202 = vmatprep.subr.bf16.mxu0 %v827
    %1203 = vmatpush1.bf16.msra.mxu0 %v826
    %1204 = vmatprep.subr.bf16.mxu0 %v821
    %1205 = vmatpush1.bf16.msra.mxu0 %v820
    %1206 = vmatprep.subr.bf16.mxu0 %v815
    %1207 = vmatpush1.bf16.msra.mxu0 %v814
    %1208 = vmatprep.subr.bf16.mxu0 %v809
    %1209 = vmatpush1.bf16.msra.mxu0 %v808
    %1210 = vmatprep.subr.bf16.mxu0 %v803
    %1211 = vmatpush1.bf16.msra.mxu0 %v802
    %1212 = vmatprep.subr.bf16.mxu0 %v797
    %1213 = vmatpush1.bf16.msra.mxu0 %v796
    %1214 = vmatprep.subr.bf16.mxu0 %v887
    %1215 = vmatpush2.bf16.msra.mxu0 %v886
    %1216 = vmatprep.subr.bf16.mxu0 %v881
    %1217 = vmatpush2.bf16.msra.mxu0 %v880
    %1218 = vmatprep.subr.bf16.mxu0 %v875
    %1219 = vmatpush2.bf16.msra.mxu0 %v874
    %1220 = vmatprep.subr.bf16.mxu0 %v869
    %1221 = vmatpush2.bf16.msra.mxu0 %v868
    %1222 = vmatprep.subr.bf16.mxu0 %v863
    %1223 = vmatpush2.bf16.msra.mxu0 %v862
    %1224 = vmatprep.subr.bf16.mxu0 %v857
    %1225 = vmatpush2.bf16.msra.mxu0 %v856
    %1226 = vmatprep.subr.bf16.mxu0 %v851
    %1227 = vmatpush2.bf16.msra.mxu0 %v850
    %1228 = vmatprep.subr.bf16.mxu0 %v845
    %1229 = vmatpush2.bf16.msra.mxu0 %v844
    %1230 = vmatprep.mubr.bf16.mxu0 %v545
    %1231 = vmatmul.mubr.bf16.gmra.mxu0 %v544
    %v1232 = vpop.f32.mrf.mxu0
    %v1233 = vadd.f32 %v1180, %v1232
    %v1234 = vpop.f32.mrf.mxu0
    %v1235 = vadd.f32 %v1182, %v1234
    %v1236 = vpop.f32.mrf.mxu0
    %v1237 = vadd.f32 %v1184, %v1236
    %v1238 = vpop.f32.mrf.mxu0
    %v1239 = vadd.f32 %v1186, %v1238
    %1240 = vmatprep.mubr.bf16.mxu0 %v551
    %1241 = vmatmul.mubr.bf16.gmra.mxu0 %v550
    %v1242 = vpop.f32.mrf.mxu0
    %v1243 = vadd.f32 %v1190, %v1242
    %v1244 = vpop.f32.mrf.mxu0
    %v1245 = vadd.f32 %v1192, %v1244
    %v1246 = vpop.f32.mrf.mxu0
    %v1247 = vadd.f32 %v1194, %v1246
    %v1248 = vpop.f32.mrf.mxu0
    %v1249 = vadd.f32 %v1196, %v1248
    %1250 = vdwg.mxu0
    %1251 = vmatprep.subr.bf16.mxu0 %v935
    %1252 = vmatpush1.bf16.msra.mxu0 %v934
    %1253 = vmatprep.subr.bf16.mxu0 %v929
    %1254 = vmatpush1.bf16.msra.mxu0 %v928
    %1255 = vmatprep.subr.bf16.mxu0 %v923
    %1256 = vmatpush1.bf16.msra.mxu0 %v922
    %1257 = vmatprep.subr.bf16.mxu0 %v917
    %1258 = vmatpush1.bf16.msra.mxu0 %v916
    %1259 = vmatprep.subr.bf16.mxu0 %v911
    %1260 = vmatpush1.bf16.msra.mxu0 %v910
    %1261 = vmatprep.subr.bf16.mxu0 %v905
    %1262 = vmatpush1.bf16.msra.mxu0 %v904
    %1263 = vmatprep.subr.bf16.mxu0 %v899
    %1264 = vmatpush1.bf16.msra.mxu0 %v898
    %1265 = vmatprep.subr.bf16.mxu0 %v893
    %1266 = vmatpush1.bf16.msra.mxu0 %v892
    %1267 = vmatprep.subr.bf16.mxu0 %v983
    %1268 = vmatpush2.bf16.msra.mxu0 %v982
    %1269 = vmatprep.subr.bf16.mxu0 %v977
    %1270 = vmatpush2.bf16.msra.mxu0 %v976
    %1271 = vmatprep.subr.bf16.mxu0 %v971
    %1272 = vmatpush2.bf16.msra.mxu0 %v970
    %1273 = vmatprep.subr.bf16.mxu0 %v965
    %1274 = vmatpush2.bf16.msra.mxu0 %v964
    %1275 = vmatprep.subr.bf16.mxu0 %v959
    %1276 = vmatpush2.bf16.msra.mxu0 %v958
    %1277 = vmatprep.subr.bf16.mxu0 %v953
    %1278 = vmatpush2.bf16.msra.mxu0 %v952
    %1279 = vmatprep.subr.bf16.mxu0 %v947
    %1280 = vmatpush2.bf16.msra.mxu0 %v946
    %1281 = vmatprep.subr.bf16.mxu0 %v941
    %1282 = vmatpush2.bf16.msra.mxu0 %v940
    %1283 = vmatprep.mubr.bf16.mxu0 %v547
    %1284 = vmatmul.mubr.bf16.gmra.mxu0 %v546
    %v1285 = vpop.f32.mrf.mxu0
    %v1286 = vadd.f32 %v1233, %v1285
    %v1287 = vpop.f32.mrf.mxu0
    %v1288 = vadd.f32 %v1235, %v1287
    %v1289 = vpop.f32.mrf.mxu0
    %v1290 = vadd.f32 %v1237, %v1289
    %v1291 = vpop.f32.mrf.mxu0
    %v1292 = vadd.f32 %v1239, %v1291
    %1293 = vmatprep.mubr.bf16.mxu0 %v553
    %1294 = vmatmul.mubr.bf16.gmra.mxu0 %v552
    %v1295 = vpop.f32.mrf.mxu0
    %v1296 = vadd.f32 %v1243, %v1295
    %v1297 = vpop.f32.mrf.mxu0
    %v1298 = vadd.f32 %v1245, %v1297
    %v1299 = vpop.f32.mrf.mxu0
    %v1300 = vadd.f32 %v1247, %v1299
    %v1301 = vpop.f32.mrf.mxu0
    %v1302 = vadd.f32 %v1249, %v1301
    %1303 = vdwg.mxu0
    %1304 = vmatprep.subr.bf16.mxu0 %v745
    %1305 = vmatpush1.bf16.msra.mxu0 %v744
    %1306 = vmatprep.subr.bf16.mxu0 %v739
    %1307 = vmatpush1.bf16.msra.mxu0 %v738
    %1308 = vmatprep.subr.bf16.mxu0 %v733
    %1309 = vmatpush1.bf16.msra.mxu0 %v732
    %1310 = vmatprep.subr.bf16.mxu0 %v727
    %1311 = vmatpush1.bf16.msra.mxu0 %v726
    %1312 = vmatprep.subr.bf16.mxu0 %v721
    %1313 = vmatpush1.bf16.msra.mxu0 %v720
    %1314 = vmatprep.subr.bf16.mxu0 %v715
    %1315 = vmatpush1.bf16.msra.mxu0 %v714
    %1316 = vmatprep.subr.bf16.mxu0 %v709
    %1317 = vmatpush1.bf16.msra.mxu0 %v708
    %1318 = vmatprep.subr.bf16.mxu0 %v703
    %1319 = vmatpush1.bf16.msra.mxu0 %v702
    %1320 = vmatprep.subr.bf16.mxu0 %v793
    %1321 = vmatpush2.bf16.msra.mxu0 %v792
    %1322 = vmatprep.subr.bf16.mxu0 %v787
    %1323 = vmatpush2.bf16.msra.mxu0 %v786
    %1324 = vmatprep.subr.bf16.mxu0 %v781
    %1325 = vmatpush2.bf16.msra.mxu0 %v780
    %1326 = vmatprep.subr.bf16.mxu0 %v775
    %1327 = vmatpush2.bf16.msra.mxu0 %v774
    %1328 = vmatprep.subr.bf16.mxu0 %v769
    %1329 = vmatpush2.bf16.msra.mxu0 %v768
    %1330 = vmatprep.subr.bf16.mxu0 %v763
    %1331 = vmatpush2.bf16.msra.mxu0 %v762
    %1332 = vmatprep.subr.bf16.mxu0 %v757
    %1333 = vmatpush2.bf16.msra.mxu0 %v756
    %1334 = vmatprep.subr.bf16.mxu0 %v751
    %1335 = vmatpush2.bf16.msra.mxu0 %v750
    %1336 = vmatprep.mubr.bf16.mxu0 %v543
    %1337 = vmatmul.mubr.bf16.gmra.mxu0 %v542
    %v1338 = vpop.f32.mrf.mxu0
    %v1339 = vadd.f32 0.0, %v1338
    %v1340 = vpop.f32.mrf.mxu0
    %v1341 = vadd.f32 0.0, %v1340
    %v1342 = vpop.f32.mrf.mxu0
    %v1343 = vadd.f32 0.0, %v1342
    %v1344 = vpop.f32.mrf.mxu0
    %v1345 = vadd.f32 0.0, %v1344
    %1346 = vmatprep.mubr.bf16.mxu0 %v549
    %1347 = vmatmul.mubr.bf16.gmra.mxu0 %v548
    %v1348 = vpop.f32.mrf.mxu0
    %v1349 = vadd.f32 0.0, %v1348
    %v1350 = vpop.f32.mrf.mxu0
    %v1351 = vadd.f32 0.0, %v1350
    %v1352 = vpop.f32.mrf.mxu0
    %v1353 = vadd.f32 0.0, %v1352
    %v1354 = vpop.f32.mrf.mxu0
    %v1355 = vadd.f32 0.0, %v1354
    %1356 = vdwg.mxu0
    %1357 = vmatprep.subr.bf16.mxu0 %v841
    %1358 = vmatpush1.bf16.msra.mxu0 %v840
    %1359 = vmatprep.subr.bf16.mxu0 %v835
    %1360 = vmatpush1.bf16.msra.mxu0 %v834
    %1361 = vmatprep.subr.bf16.mxu0 %v829
    %1362 = vmatpush1.bf16.msra.mxu0 %v828
    %1363 = vmatprep.subr.bf16.mxu0 %v823
    %1364 = vmatpush1.bf16.msra.mxu0 %v822
    %1365 = vmatprep.subr.bf16.mxu0 %v817
    %1366 = vmatpush1.bf16.msra.mxu0 %v816
    %1367 = vmatprep.subr.bf16.mxu0 %v811
    %1368 = vmatpush1.bf16.msra.mxu0 %v810
    %1369 = vmatprep.subr.bf16.mxu0 %v805
    %1370 = vmatpush1.bf16.msra.mxu0 %v804
    %1371 = vmatprep.subr.bf16.mxu0 %v799
    %1372 = vmatpush1.bf16.msra.mxu0 %v798
    %1373 = vmatprep.subr.bf16.mxu0 %v889
    %1374 = vmatpush2.bf16.msra.mxu0 %v888
    %1375 = vmatprep.subr.bf16.mxu0 %v883
    %1376 = vmatpush2.bf16.msra.mxu0 %v882
    %1377 = vmatprep.subr.bf16.mxu0 %v877
    %1378 = vmatpush2.bf16.msra.mxu0 %v876
    %1379 = vmatprep.subr.bf16.mxu0 %v871
    %1380 = vmatpush2.bf16.msra.mxu0 %v870
    %1381 = vmatprep.subr.bf16.mxu0 %v865
    %1382 = vmatpush2.bf16.msra.mxu0 %v864
    %1383 = vmatprep.subr.bf16.mxu0 %v859
    %1384 = vmatpush2.bf16.msra.mxu0 %v858
    %1385 = vmatprep.subr.bf16.mxu0 %v853
    %1386 = vmatpush2.bf16.msra.mxu0 %v852
    %1387 = vmatprep.subr.bf16.mxu0 %v847
    %1388 = vmatpush2.bf16.msra.mxu0 %v846
    %1389 = vmatprep.mubr.bf16.mxu0 %v545
    %1390 = vmatmul.mubr.bf16.gmra.mxu0 %v544
    %v1391 = vpop.f32.mrf.mxu0
    %v1392 = vadd.f32 %v1339, %v1391
    %v1393 = vpop.f32.mrf.mxu0
    %v1394 = vadd.f32 %v1341, %v1393
    %v1395 = vpop.f32.mrf.mxu0
    %v1396 = vadd.f32 %v1343, %v1395
    %v1397 = vpop.f32.mrf.mxu0
    %v1398 = vadd.f32 %v1345, %v1397
    %1399 = vmatprep.mubr.bf16.mxu0 %v551
    %1400 = vmatmul.mubr.bf16.gmra.mxu0 %v550
    %v1401 = vpop.f32.mrf.mxu0
    %v1402 = vadd.f32 %v1349, %v1401
    %v1403 = vpop.f32.mrf.mxu0
    %v1404 = vadd.f32 %v1351, %v1403
    %v1405 = vpop.f32.mrf.mxu0
    %v1406 = vadd.f32 %v1353, %v1405
    %v1407 = vpop.f32.mrf.mxu0
    %v1408 = vadd.f32 %v1355, %v1407
    %1409 = vdwg.mxu0
    %1410 = vmatprep.subr.bf16.mxu0 %v937
    %1411 = vmatpush1.bf16.msra.mxu0 %v936
    %1412 = vmatprep.subr.bf16.mxu0 %v931
    %1413 = vmatpush1.bf16.msra.mxu0 %v930
    %1414 = vmatprep.subr.bf16.mxu0 %v925
    %1415 = vmatpush1.bf16.msra.mxu0 %v924
    %1416 = vmatprep.subr.bf16.mxu0 %v919
    %1417 = vmatpush1.bf16.msra.mxu0 %v918
    %1418 = vmatprep.subr.bf16.mxu0 %v913
    %1419 = vmatpush1.bf16.msra.mxu0 %v912
    %1420 = vmatprep.subr.bf16.mxu0 %v907
    %1421 = vmatpush1.bf16.msra.mxu0 %v906
    %1422 = vmatprep.subr.bf16.mxu0 %v901
    %1423 = vmatpush1.bf16.msra.mxu0 %v900
    %1424 = vmatprep.subr.bf16.mxu0 %v895
    %1425 = vmatpush1.bf16.msra.mxu0 %v894
    %1426 = vmatprep.subr.bf16.mxu0 %v985
    %1427 = vmatpush2.bf16.msra.mxu0 %v984
    %1428 = vmatprep.subr.bf16.mxu0 %v979
    %1429 = vmatpush2.bf16.msra.mxu0 %v978
    %1430 = vmatprep.subr.bf16.mxu0 %v973
    %1431 = vmatpush2.bf16.msra.mxu0 %v972
    %1432 = vmatprep.subr.bf16.mxu0 %v967
    %1433 = vmatpush2.bf16.msra.mxu0 %v966
    %1434 = vmatprep.subr.bf16.mxu0 %v961
    %1435 = vmatpush2.bf16.msra.mxu0 %v960
    %1436 = vmatprep.subr.bf16.mxu0 %v955
    %1437 = vmatpush2.bf16.msra.mxu0 %v954
    %1438 = vmatprep.subr.bf16.mxu0 %v949
    %1439 = vmatpush2.bf16.msra.mxu0 %v948
    %1440 = vmatprep.subr.bf16.mxu0 %v943
    %1441 = vmatpush2.bf16.msra.mxu0 %v942
    %1442 = vmatprep.mubr.bf16.mxu0 %v547
    %1443 = vmatmul.mubr.bf16.gmra.mxu0 %v546
    %v1444 = vpop.f32.mrf.mxu0
    %v1445 = vadd.f32 %v1392, %v1444
    %v1446 = vpop.f32.mrf.mxu0
    %v1447 = vadd.f32 %v1394, %v1446
    %v1448 = vpop.f32.mrf.mxu0
    %v1449 = vadd.f32 %v1396, %v1448
    %v1450 = vpop.f32.mrf.mxu0
    %v1451 = vadd.f32 %v1398, %v1450
    %1452 = vmatprep.mubr.bf16.mxu0 %v553
    %1453 = vmatmul.mubr.bf16.gmra.mxu0 %v552
    %v1454 = vpop.f32.mrf.mxu0
    %v1455 = vadd.f32 %v1402, %v1454
    %v1456 = vpop.f32.mrf.mxu0
    %v1457 = vadd.f32 %v1404, %v1456
    %v1458 = vpop.f32.mrf.mxu0
    %v1459 = vadd.f32 %v1406, %v1458
    %v1460 = vpop.f32.mrf.mxu0
    %v1461 = vadd.f32 %v1408, %v1460
    %1462 = vdwg.mxu0
    %v1463 = vld [vmem:[#allocation8] sm:$0x3f]
    %v1465 = vlaneseq
    %v1466 = vshrl.u32 %v1465, 7
    %v1467 = vsub.s32 0, %v1466
    %v1468 = vrot.slane %v1463, %v1467
    %v1469 = vlaneseq
    %v1470 = vshrl.u32 %v1469, 7
    %v1471 = vsub.s32 1, %v1470
    %v1472 = vrot.slane %v1463, %v1471
    %v1473 = vlaneseq
    %v1474 = vshrl.u32 %v1473, 7
    %v1475 = vsub.s32 2, %v1474
    %v1476 = vrot.slane %v1463, %v1475
    %v1477 = vlaneseq
    %v1478 = vshrl.u32 %v1477, 7
    %v1479 = vsub.s32 3, %v1478
    %v1480 = vrot.slane %v1463, %v1479
    %v1481 = vlaneseq
    %v1482 = vshrl.u32 %v1481, 7
    %v1483 = vsub.s32 4, %v1482
    %v1484 = vrot.slane %v1463, %v1483
    %v1485 = vlaneseq
    %v1486 = vshrl.u32 %v1485, 7
    %v1487 = vsub.s32 5, %v1486
    %v1488 = vrot.slane %v1463, %v1487
    %v1495 = vmul.f32 %v1127, %v1468
    %v1496 = vmul.f32 %v1129, %v1472
    %v1497 = vmul.f32 %v1286, %v1476
    %v1498 = vmul.f32 %v1288, %v1480
    %v1499 = vmul.f32 %v1445, %v1484
    %v1500 = vmul.f32 %v1447, %v1488
    %v1501 = vmul.f32 %v1131, %v1468
    %v1502 = vmul.f32 %v1133, %v1472
    %v1503 = vmul.f32 %v1290, %v1476
    %v1504 = vmul.f32 %v1292, %v1480
    %v1505 = vmul.f32 %v1449, %v1484
    %v1506 = vmul.f32 %v1451, %v1488
    %v1507 = vmul.f32 %v1137, %v1468
    %v1508 = vmul.f32 %v1139, %v1472
    %v1509 = vmul.f32 %v1296, %v1476
    %v1510 = vmul.f32 %v1298, %v1480
    %v1511 = vmul.f32 %v1455, %v1484
    %v1512 = vmul.f32 %v1457, %v1488
    %v1513 = vmul.f32 %v1141, %v1468
    %v1514 = vmul.f32 %v1143, %v1472
    %v1515 = vmul.f32 %v1300, %v1476
    %v1516 = vmul.f32 %v1302, %v1480
    %v1517 = vmul.f32 %v1459, %v1484
    %v1518 = vmul.f32 %v1461, %v1488
    %v1519 = vld [vmem:[#allocation10] sm:$0x3f]
    %v1521 = vlaneseq
    %v1522 = vshrl.u32 %v1521, 7
    %v1523 = vsub.s32 0, %v1522
    %v1524 = vrot.slane %v1519, %v1523
    %v1525 = vlaneseq
    %v1526 = vshrl.u32 %v1525, 7
    %v1527 = vsub.s32 1, %v1526
    %v1528 = vrot.slane %v1519, %v1527
    %v1529 = vlaneseq
    %v1530 = vshrl.u32 %v1529, 7
    %v1531 = vsub.s32 2, %v1530
    %v1532 = vrot.slane %v1519, %v1531
    %v1533 = vlaneseq
    %v1534 = vshrl.u32 %v1533, 7
    %v1535 = vsub.s32 3, %v1534
    %v1536 = vrot.slane %v1519, %v1535
    %v1537 = vlaneseq
    %v1538 = vshrl.u32 %v1537, 7
    %v1539 = vsub.s32 4, %v1538
    %v1540 = vrot.slane %v1519, %v1539
    %v1541 = vlaneseq
    %v1542 = vshrl.u32 %v1541, 7
    %v1543 = vsub.s32 5, %v1542
    %v1544 = vrot.slane %v1519, %v1543
    %v1551 = vadd.f32 %v1495, %v1524
    %v1552 = vadd.f32 %v1496, %v1528
    %v1553 = vadd.f32 %v1497, %v1532
    %v1554 = vadd.f32 %v1498, %v1536
    %v1555 = vadd.f32 %v1499, %v1540
    %v1556 = vadd.f32 %v1500, %v1544
    %v1557 = vadd.f32 %v1501, %v1524
    %v1558 = vadd.f32 %v1502, %v1528
    %v1559 = vadd.f32 %v1503, %v1532
    %v1560 = vadd.f32 %v1504, %v1536
    %v1561 = vadd.f32 %v1505, %v1540
    %v1562 = vadd.f32 %v1506, %v1544
    %v1563 = vadd.f32 %v1507, %v1524
    %v1564 = vadd.f32 %v1508, %v1528
    %v1565 = vadd.f32 %v1509, %v1532
    %v1566 = vadd.f32 %v1510, %v1536
    %v1567 = vadd.f32 %v1511, %v1540
    %v1568 = vadd.f32 %v1512, %v1544
    %v1569 = vadd.f32 %v1513, %v1524
    %v1570 = vadd.f32 %v1514, %v1528
    %v1571 = vadd.f32 %v1515, %v1532
    %v1572 = vadd.f32 %v1516, %v1536
    %v1573 = vadd.f32 %v1517, %v1540
    %v1574 = vadd.f32 %v1518, %v1544
    %v1575 = vmax.f32 %v1551, 0.0
    %v1576 = vmax.f32 %v1552, 0.0
    %v1577 = vmax.f32 %v1553, 0.0
    %v1578 = vmax.f32 %v1554, 0.0
    %v1579 = vmax.f32 %v1555, 0.0
    %v1580 = vmax.f32 %v1556, 0.0
    %v1581 = vmax.f32 %v1557, 0.0
    %v1582 = vmax.f32 %v1558, 0.0
    %v1583 = vmax.f32 %v1559, 0.0
    %v1584 = vmax.f32 %v1560, 0.0
    %v1585 = vmax.f32 %v1561, 0.0
    %v1586 = vmax.f32 %v1562, 0.0
    %v1587 = vmax.f32 %v1563, 0.0
    %v1588 = vmax.f32 %v1564, 0.0
    %v1589 = vmax.f32 %v1565, 0.0
    %v1590 = vmax.f32 %v1566, 0.0
    %v1591 = vmax.f32 %v1567, 0.0
    %v1592 = vmax.f32 %v1568, 0.0
    %v1593 = vmax.f32 %v1569, 0.0
    %v1594 = vmax.f32 %v1570, 0.0
    %v1595 = vmax.f32 %v1571, 0.0
    %v1596 = vmax.f32 %v1572, 0.0
    %v1597 = vmax.f32 %v1573, 0.0
    %v1598 = vmax.f32 %v1574, 0.0
    %v1599 = vpack.c.bf16 %v1581, %v1575
    %v1600 = vpack.c.bf16 %v1582, %v1576
    %v1601 = vpack.c.bf16 %v1583, %v1577
    %v1602 = vpack.c.bf16 %v1584, %v1578
    %v1603 = vpack.c.bf16 %v1585, %v1579
    %v1604 = vpack.c.bf16 %v1586, %v1580
    %v1605 = vpack.c.bf16 %v1593, %v1587
    %v1606 = vpack.c.bf16 %v1594, %v1588
    %v1607 = vpack.c.bf16 %v1595, %v1589
    %v1608 = vpack.c.bf16 %v1596, %v1590
    %v1609 = vpack.c.bf16 %v1597, %v1591
    %v1610 = vpack.c.bf16 %v1598, %v1592
    %v1611 = vld [vmem:[#allocation11] sm:$0xf]
    %v1612 = vld [vmem:[#allocation11 + $0x4] sm:$0xf]
    %v1613 = vld [vmem:[#allocation11 + $0x8] sm:$0xf]
    %v1614 = vld [vmem:[#allocation11 + $0xc] sm:$0xf]
    %v1615 = vld [vmem:[#allocation11 + $0x10] sm:$0xf]
    %v1616 = vld [vmem:[#allocation11 + $0x14] sm:$0xf]
    %v1617 = vld [vmem:[#allocation11 + $0x18] sm:$0xf]
    %v1618 = vld [vmem:[#allocation11 + $0x1c] sm:$0xf]
    %v1619 = vld [vmem:[#allocation11 + $0x20] sm:$0xf]
    %v1620 = vld [vmem:[#allocation11 + $0x24] sm:$0xf]
    %v1621 = vld [vmem:[#allocation11 + $0x28] sm:$0xf]
    %v1622 = vld [vmem:[#allocation11 + $0x2c] sm:$0xf]
    %v1623 = vld [vmem:[#allocation11 + $0x30] sm:$0xf]
    %v1624 = vld [vmem:[#allocation11 + $0x34] sm:$0xf]
    %v1625 = vld [vmem:[#allocation11 + $0x38] sm:$0xf]
    %v1626 = vld [vmem:[#allocation11 + $0x3c] sm:$0xf]
    %v1627 = vld [vmem:[#allocation11 + $0x40] sm:$0xf]
    %v1628 = vld [vmem:[#allocation11 + $0x44] sm:$0xf]
    %v1629 = vld [vmem:[#allocation11 + $0x48] sm:$0xf]
    %v1630 = vld [vmem:[#allocation11 + $0x4c] sm:$0xf]
    %v1631 = vld [vmem:[#allocation11 + $0x50] sm:$0xf]
    %v1632 = vld [vmem:[#allocation11 + $0x54] sm:$0xf]
    %v1633 = vld [vmem:[#allocation11 + $0x58] sm:$0xf]
    %v1634 = vld [vmem:[#allocation11 + $0x5c] sm:$0xf]
    %v1635 = vld [vmem:[#allocation11 + $0x60] sm:$0xf]
    %v1636 = vld [vmem:[#allocation11 + $0x64] sm:$0xf]
    %v1637 = vld [vmem:[#allocation11 + $0x68] sm:$0xf]
    %v1638 = vld [vmem:[#allocation11 + $0x6c] sm:$0xf]
    %v1639 = vld [vmem:[#allocation11 + $0x70] sm:$0xf]
    %v1640 = vld [vmem:[#allocation11 + $0x74] sm:$0xf]
    %v1641 = vld [vmem:[#allocation11 + $0x78] sm:$0xf]
    %v1642 = vld [vmem:[#allocation11 + $0x7c] sm:$0xf]
    %v1643 = vld [vmem:[#allocation11 + $0x80] sm:$0xf]
    %v1644 = vld [vmem:[#allocation11 + $0x84] sm:$0xf]
    %v1645 = vld [vmem:[#allocation11 + $0x88] sm:$0xf]
    %v1646 = vld [vmem:[#allocation11 + $0x8c] sm:$0xf]
    %v1647 = vld [vmem:[#allocation11 + $0x90] sm:$0xf]
    %v1648 = vld [vmem:[#allocation11 + $0x94] sm:$0xf]
    %v1649 = vld [vmem:[#allocation11 + $0x98] sm:$0xf]
    %v1650 = vld [vmem:[#allocation11 + $0x9c] sm:$0xf]
    %v1651 = vld [vmem:[#allocation11 + $0xa0] sm:$0xf]
    %v1652 = vld [vmem:[#allocation11 + $0xa4] sm:$0xf]
    %v1653 = vld [vmem:[#allocation11 + $0xa8] sm:$0xf]
    %v1654 = vld [vmem:[#allocation11 + $0xac] sm:$0xf]
    %v1655 = vld [vmem:[#allocation11 + $0xb0] sm:$0xf]
    %v1656 = vld [vmem:[#allocation11 + $0xb4] sm:$0xf]
    %v1657 = vld [vmem:[#allocation11 + $0xb8] sm:$0xf]
    %v1658 = vld [vmem:[#allocation11 + $0xbc] sm:$0xf]
    %v1659 = vld [vmem:[#allocation11 + $0xc0] sm:$0xf]
    %v1660 = vld [vmem:[#allocation11 + $0xc4] sm:$0xf]
    %v1661 = vld [vmem:[#allocation11 + $0xc8] sm:$0xf]
    %v1662 = vld [vmem:[#allocation11 + $0xcc] sm:$0xf]
    %v1663 = vld [vmem:[#allocation11 + $0xd0] sm:$0xf]
    %v1664 = vld [vmem:[#allocation11 + $0xd4] sm:$0xf]
    %v1665 = vld [vmem:[#allocation11 + $0xd8] sm:$0xf]
    %v1666 = vld [vmem:[#allocation11 + $0xdc] sm:$0xf]
    %v1667 = vld [vmem:[#allocation11 + $0xe0] sm:$0xf]
    %v1668 = vld [vmem:[#allocation11 + $0xe4] sm:$0xf]
    %v1669 = vld [vmem:[#allocation11 + $0xe8] sm:$0xf]
    %v1670 = vld [vmem:[#allocation11 + $0xec] sm:$0xf]
    %v1671 = vld [vmem:[#allocation11 + $0xf0] sm:$0xf]
    %v1672 = vld [vmem:[#allocation11 + $0xf4] sm:$0xf]
    %v1673 = vld [vmem:[#allocation11 + $0xf8] sm:$0xf]
    %v1674 = vld [vmem:[#allocation11 + $0xfc] sm:$0xf]
    %v1675 = vld [vmem:[#allocation11 + $0x100] sm:$0xf]
    %v1676 = vld [vmem:[#allocation11 + $0x104] sm:$0xf]
    %v1677 = vld [vmem:[#allocation11 + $0x108] sm:$0xf]
    %v1678 = vld [vmem:[#allocation11 + $0x10c] sm:$0xf]
    %v1679 = vld [vmem:[#allocation11 + $0x110] sm:$0xf]
    %v1680 = vld [vmem:[#allocation11 + $0x114] sm:$0xf]
    %v1681 = vld [vmem:[#allocation11 + $0x118] sm:$0xf]
    %v1682 = vld [vmem:[#allocation11 + $0x11c] sm:$0xf]
    %v1683 = vld [vmem:[#allocation11 + $0x120] sm:$0xf]
    %v1684 = vld [vmem:[#allocation11 + $0x124] sm:$0xf]
    %v1685 = vld [vmem:[#allocation11 + $0x128] sm:$0xf]
    %v1686 = vld [vmem:[#allocation11 + $0x12c] sm:$0xf]
    %v1687 = vld [vmem:[#allocation11 + $0x130] sm:$0xf]
    %v1688 = vld [vmem:[#allocation11 + $0x134] sm:$0xf]
    %v1689 = vld [vmem:[#allocation11 + $0x138] sm:$0xf]
    %v1690 = vld [vmem:[#allocation11 + $0x13c] sm:$0xf]
    %v1691 = vld [vmem:[#allocation11 + $0x140] sm:$0xf]
    %v1692 = vld [vmem:[#allocation11 + $0x144] sm:$0xf]
    %v1693 = vld [vmem:[#allocation11 + $0x148] sm:$0xf]
    %v1694 = vld [vmem:[#allocation11 + $0x14c] sm:$0xf]
    %v1695 = vld [vmem:[#allocation11 + $0x150] sm:$0xf]
    %v1696 = vld [vmem:[#allocation11 + $0x154] sm:$0xf]
    %v1697 = vld [vmem:[#allocation11 + $0x158] sm:$0xf]
    %v1698 = vld [vmem:[#allocation11 + $0x15c] sm:$0xf]
    %v1699 = vld [vmem:[#allocation11 + $0x160] sm:$0xf]
    %v1700 = vld [vmem:[#allocation11 + $0x164] sm:$0xf]
    %v1701 = vld [vmem:[#allocation11 + $0x168] sm:$0xf]
    %v1702 = vld [vmem:[#allocation11 + $0x16c] sm:$0xf]
    %v1703 = vld [vmem:[#allocation11 + $0x170] sm:$0xf]
    %v1704 = vld [vmem:[#allocation11 + $0x174] sm:$0xf]
    %v1705 = vld [vmem:[#allocation11 + $0x178] sm:$0xf]
    %v1706 = vld [vmem:[#allocation11 + $0x17c] sm:$0xf]
    %v1707 = vld [vmem:[%s8] sm:$0x1]
    %v1709 = vlaneseq
    %v1710 = vshrl.u32 %v1709, 7
    %v1711 = vsub.s32 0, %v1710
    %v1712 = vrot.slane %v1707, %v1711
    %v1810 = vunpack.c.l.b16 %v1611
    %v1811 = vunpack.c.l.b16 %v1612
    %v1812 = vunpack.c.l.b16 %v1613
    %v1813 = vunpack.c.l.b16 %v1614
    %v1814 = vunpack.c.l.b16 %v1615
    %v1815 = vunpack.c.l.b16 %v1616
    %v1816 = vunpack.c.l.b16 %v1617
    %v1817 = vunpack.c.l.b16 %v1618
    %v1818 = vunpack.c.l.b16 %v1619
    %v1819 = vunpack.c.l.b16 %v1620
    %v1820 = vunpack.c.l.b16 %v1621
    %v1821 = vunpack.c.l.b16 %v1622
    %v1822 = vunpack.c.l.b16 %v1623
    %v1823 = vunpack.c.l.b16 %v1624
    %v1824 = vunpack.c.l.b16 %v1625
    %v1825 = vunpack.c.l.b16 %v1626
    %v1826 = vunpack.c.l.b16 %v1627
    %v1827 = vunpack.c.l.b16 %v1628
    %v1828 = vunpack.c.l.b16 %v1629
    %v1829 = vunpack.c.l.b16 %v1630
    %v1830 = vunpack.c.l.b16 %v1631
    %v1831 = vunpack.c.l.b16 %v1632
    %v1832 = vunpack.c.l.b16 %v1633
    %v1833 = vunpack.c.l.b16 %v1634
    %v1834 = vunpack.c.l.b16 %v1635
    %v1835 = vunpack.c.l.b16 %v1636
    %v1836 = vunpack.c.l.b16 %v1637
    %v1837 = vunpack.c.l.b16 %v1638
    %v1838 = vunpack.c.l.b16 %v1639
    %v1839 = vunpack.c.l.b16 %v1640
    %v1840 = vunpack.c.l.b16 %v1641
    %v1841 = vunpack.c.l.b16 %v1642
    %v1842 = vunpack.c.l.b16 %v1643
    %v1843 = vunpack.c.l.b16 %v1644
    %v1844 = vunpack.c.l.b16 %v1645
    %v1845 = vunpack.c.l.b16 %v1646
    %v1846 = vunpack.c.l.b16 %v1647
    %v1847 = vunpack.c.l.b16 %v1648
    %v1848 = vunpack.c.l.b16 %v1649
    %v1849 = vunpack.c.l.b16 %v1650
    %v1850 = vunpack.c.l.b16 %v1651
    %v1851 = vunpack.c.l.b16 %v1652
    %v1852 = vunpack.c.l.b16 %v1653
    %v1853 = vunpack.c.l.b16 %v1654
    %v1854 = vunpack.c.l.b16 %v1655
    %v1855 = vunpack.c.l.b16 %v1656
    %v1856 = vunpack.c.l.b16 %v1657
    %v1857 = vunpack.c.l.b16 %v1658
    %v1858 = vunpack.c.l.b16 %v1659
    %v1859 = vunpack.c.l.b16 %v1660
    %v1860 = vunpack.c.l.b16 %v1661
    %v1861 = vunpack.c.l.b16 %v1662
    %v1862 = vunpack.c.l.b16 %v1663
    %v1863 = vunpack.c.l.b16 %v1664
    %v1864 = vunpack.c.l.b16 %v1665
    %v1865 = vunpack.c.l.b16 %v1666
    %v1866 = vunpack.c.l.b16 %v1667
    %v1867 = vunpack.c.l.b16 %v1668
    %v1868 = vunpack.c.l.b16 %v1669
    %v1869 = vunpack.c.l.b16 %v1670
    %v1870 = vunpack.c.l.b16 %v1671
    %v1871 = vunpack.c.l.b16 %v1672
    %v1872 = vunpack.c.l.b16 %v1673
    %v1873 = vunpack.c.l.b16 %v1674
    %v1874 = vunpack.c.l.b16 %v1675
    %v1875 = vunpack.c.l.b16 %v1676
    %v1876 = vunpack.c.l.b16 %v1677
    %v1877 = vunpack.c.l.b16 %v1678
    %v1878 = vunpack.c.l.b16 %v1679
    %v1879 = vunpack.c.l.b16 %v1680
    %v1880 = vunpack.c.l.b16 %v1681
    %v1881 = vunpack.c.l.b16 %v1682
    %v1882 = vunpack.c.l.b16 %v1683
    %v1883 = vunpack.c.l.b16 %v1684
    %v1884 = vunpack.c.l.b16 %v1685
    %v1885 = vunpack.c.l.b16 %v1686
    %v1886 = vunpack.c.l.b16 %v1687
    %v1887 = vunpack.c.l.b16 %v1688
    %v1888 = vunpack.c.l.b16 %v1689
    %v1889 = vunpack.c.l.b16 %v1690
    %v1890 = vunpack.c.l.b16 %v1691
    %v1891 = vunpack.c.l.b16 %v1692
    %v1892 = vunpack.c.l.b16 %v1693
    %v1893 = vunpack.c.l.b16 %v1694
    %v1894 = vunpack.c.l.b16 %v1695
    %v1895 = vunpack.c.l.b16 %v1696
    %v1896 = vunpack.c.l.b16 %v1697
    %v1897 = vunpack.c.l.b16 %v1698
    %v1898 = vunpack.c.l.b16 %v1699
    %v1899 = vunpack.c.l.b16 %v1700
    %v1900 = vunpack.c.l.b16 %v1701
    %v1901 = vunpack.c.l.b16 %v1702
    %v1902 = vunpack.c.l.b16 %v1703
    %v1903 = vunpack.c.l.b16 %v1704
    %v1904 = vunpack.c.l.b16 %v1705
    %v1905 = vunpack.c.l.b16 %v1706
    %v1906 = vpack.c.b16 %v1811, %v1810
    %v1907 = vpack.c.b16 %v1813, %v1812
    %v1908 = vpack.c.b16 %v1815, %v1814
    %v1909 = vpack.c.b16 %v1817, %v1816
    %v1910 = vpack.c.b16 %v1819, %v1818
    %v1911 = vpack.c.b16 %v1821, %v1820
    %v1912 = vpack.c.b16 %v1823, %v1822
    %v1913 = vpack.c.b16 %v1825, %v1824
    %v1914 = vpack.c.b16 %v1827, %v1826
    %v1915 = vpack.c.b16 %v1829, %v1828
    %v1916 = vpack.c.b16 %v1831, %v1830
    %v1917 = vpack.c.b16 %v1833, %v1832
    %v1918 = vpack.c.b16 %v1835, %v1834
    %v1919 = vpack.c.b16 %v1837, %v1836
    %v1920 = vpack.c.b16 %v1839, %v1838
    %v1921 = vpack.c.b16 %v1841, %v1840
    %v1922 = vpack.c.b16 %v1843, %v1842
    %v1923 = vpack.c.b16 %v1845, %v1844
    %v1924 = vpack.c.b16 %v1847, %v1846
    %v1925 = vpack.c.b16 %v1849, %v1848
    %v1926 = vpack.c.b16 %v1851, %v1850
    %v1927 = vpack.c.b16 %v1853, %v1852
    %v1928 = vpack.c.b16 %v1855, %v1854
    %v1929 = vpack.c.b16 %v1857, %v1856
    %v1930 = vpack.c.b16 %v1859, %v1858
    %v1931 = vpack.c.b16 %v1861, %v1860
    %v1932 = vpack.c.b16 %v1863, %v1862
    %v1933 = vpack.c.b16 %v1865, %v1864
    %v1934 = vpack.c.b16 %v1867, %v1866
    %v1935 = vpack.c.b16 %v1869, %v1868
    %v1936 = vpack.c.b16 %v1871, %v1870
    %v1937 = vpack.c.b16 %v1873, %v1872
    %v1938 = vpack.c.b16 %v1875, %v1874
    %v1939 = vpack.c.b16 %v1877, %v1876
    %v1940 = vpack.c.b16 %v1879, %v1878
    %v1941 = vpack.c.b16 %v1881, %v1880
    %v1942 = vpack.c.b16 %v1883, %v1882
    %v1943 = vpack.c.b16 %v1885, %v1884
    %v1944 = vpack.c.b16 %v1887, %v1886
    %v1945 = vpack.c.b16 %v1889, %v1888
    %v1946 = vpack.c.b16 %v1891, %v1890
    %v1947 = vpack.c.b16 %v1893, %v1892
    %v1948 = vpack.c.b16 %v1895, %v1894
    %v1949 = vpack.c.b16 %v1897, %v1896
    %v1950 = vpack.c.b16 %v1899, %v1898
    %v1951 = vpack.c.b16 %v1901, %v1900
    %v1952 = vpack.c.b16 %v1903, %v1902
    %v1953 = vpack.c.b16 %v1905, %v1904
    %2002 = vmatprep.subr.bf16.mxu0 0
    %2003 = vmatpush1.bf16.msra.mxu0 %v1913
    %2004 = vmatprep.subr.bf16.mxu0 0
    %2005 = vmatpush1.bf16.msra.mxu0 %v1912
    %2006 = vmatprep.subr.bf16.mxu0 0
    %2007 = vmatpush1.bf16.msra.mxu0 %v1911
    %2008 = vmatprep.subr.bf16.mxu0 0
    %2009 = vmatpush1.bf16.msra.mxu0 %v1910
    %2010 = vmatprep.subr.bf16.mxu0 0
    %2011 = vmatpush1.bf16.msra.mxu0 %v1909
    %2012 = vmatprep.subr.bf16.mxu0 0
    %2013 = vmatpush1.bf16.msra.mxu0 %v1908
    %2014 = vmatprep.subr.bf16.mxu0 0
    %2015 = vmatpush1.bf16.msra.mxu0 %v1907
    %2016 = vmatprep.subr.bf16.mxu0 0
    %2017 = vmatpush1.bf16.msra.mxu0 %v1906
    %2018 = vmatprep.subr.bf16.mxu0 0
    %2019 = vmatpush2.bf16.msra.mxu0 %v1921
    %2020 = vmatprep.subr.bf16.mxu0 0
    %2021 = vmatpush2.bf16.msra.mxu0 %v1920
    %2022 = vmatprep.subr.bf16.mxu0 0
    %2023 = vmatpush2.bf16.msra.mxu0 %v1919
    %2024 = vmatprep.subr.bf16.mxu0 0
    %2025 = vmatpush2.bf16.msra.mxu0 %v1918
    %2026 = vmatprep.subr.bf16.mxu0 0
    %2027 = vmatpush2.bf16.msra.mxu0 %v1917
    %2028 = vmatprep.subr.bf16.mxu0 0
    %2029 = vmatpush2.bf16.msra.mxu0 %v1916
    %2030 = vmatprep.subr.bf16.mxu0 0
    %2031 = vmatpush2.bf16.msra.mxu0 %v1915
    %2032 = vmatprep.subr.bf16.mxu0 0
    %2033 = vmatpush2.bf16.msra.mxu0 %v1914
    %2034 = vmatprep.mubr.bf16.mxu0 %v1600
    %2035 = vmatmul.mubr.bf16.gmra.mxu0 %v1599
    %v2036 = vpop.f32.mrf.mxu0
    %v2037 = vadd.f32 %v1712, %v2036
    %v2038 = vpop.f32.mrf.mxu0
    %v2039 = vpop.f32.mrf.mxu0
    %v2040 = vadd.f32 %v1712, %v2039
    %v2041 = vpop.f32.mrf.mxu0
    %2042 = vmatprep.mubr.bf16.mxu0 %v1606
    %2043 = vmatmul.mubr.bf16.gmra.mxu0 %v1605
    %v2044 = vpop.f32.mrf.mxu0
    %v2045 = vadd.f32 %v1712, %v2044
    %v2046 = vpop.f32.mrf.mxu0
    %v2047 = vpop.f32.mrf.mxu0
    %v2048 = vadd.f32 %v1712, %v2047
    %v2049 = vpop.f32.mrf.mxu0
    %2050 = vdwg.mxu0
    %2051 = vmatprep.subr.bf16.mxu0 0
    %2052 = vmatpush1.bf16.msra.mxu0 %v1929
    %2053 = vmatprep.subr.bf16.mxu0 0
    %2054 = vmatpush1.bf16.msra.mxu0 %v1928
    %2055 = vmatprep.subr.bf16.mxu0 0
    %2056 = vmatpush1.bf16.msra.mxu0 %v1927
    %2057 = vmatprep.subr.bf16.mxu0 0
    %2058 = vmatpush1.bf16.msra.mxu0 %v1926
    %2059 = vmatprep.subr.bf16.mxu0 0
    %2060 = vmatpush1.bf16.msra.mxu0 %v1925
    %2061 = vmatprep.subr.bf16.mxu0 0
    %2062 = vmatpush1.bf16.msra.mxu0 %v1924
    %2063 = vmatprep.subr.bf16.mxu0 0
    %2064 = vmatpush1.bf16.msra.mxu0 %v1923
    %2065 = vmatprep.subr.bf16.mxu0 0
    %2066 = vmatpush1.bf16.msra.mxu0 %v1922
    %2067 = vmatprep.subr.bf16.mxu0 0
    %2068 = vmatpush2.bf16.msra.mxu0 %v1937
    %2069 = vmatprep.subr.bf16.mxu0 0
    %2070 = vmatpush2.bf16.msra.mxu0 %v1936
    %2071 = vmatprep.subr.bf16.mxu0 0
    %2072 = vmatpush2.bf16.msra.mxu0 %v1935
    %2073 = vmatprep.subr.bf16.mxu0 0
    %2074 = vmatpush2.bf16.msra.mxu0 %v1934
    %2075 = vmatprep.subr.bf16.mxu0 0
    %2076 = vmatpush2.bf16.msra.mxu0 %v1933
    %2077 = vmatprep.subr.bf16.mxu0 0
    %2078 = vmatpush2.bf16.msra.mxu0 %v1932
    %2079 = vmatprep.subr.bf16.mxu0 0
    %2080 = vmatpush2.bf16.msra.mxu0 %v1931
    %2081 = vmatprep.subr.bf16.mxu0 0
    %2082 = vmatpush2.bf16.msra.mxu0 %v1930
    %2083 = vmatprep.mubr.bf16.mxu0 %v1602
    %2084 = vmatmul.mubr.bf16.gmra.mxu0 %v1601
    %v2085 = vpop.f32.mrf.mxu0
    %v2086 = vadd.f32 %v2037, %v2085
    %v2087 = vpop.f32.mrf.mxu0
    %v2088 = vpop.f32.mrf.mxu0
    %v2089 = vadd.f32 %v2040, %v2088
    %v2090 = vpop.f32.mrf.mxu0
    %2091 = vmatprep.mubr.bf16.mxu0 %v1608
    %2092 = vmatmul.mubr.bf16.gmra.mxu0 %v1607
    %v2093 = vpop.f32.mrf.mxu0
    %v2094 = vadd.f32 %v2045, %v2093
    %v2095 = vpop.f32.mrf.mxu0
    %v2096 = vpop.f32.mrf.mxu0
    %v2097 = vadd.f32 %v2048, %v2096
    %v2098 = vpop.f32.mrf.mxu0
    %2099 = vdwg.mxu0
    %2100 = vmatprep.subr.bf16.mxu0 0
    %2101 = vmatpush1.bf16.msra.mxu0 %v1945
    %2102 = vmatprep.subr.bf16.mxu0 0
    %2103 = vmatpush1.bf16.msra.mxu0 %v1944
    %2104 = vmatprep.subr.bf16.mxu0 0
    %2105 = vmatpush1.bf16.msra.mxu0 %v1943
    %2106 = vmatprep.subr.bf16.mxu0 0
    %2107 = vmatpush1.bf16.msra.mxu0 %v1942
    %2108 = vmatprep.subr.bf16.mxu0 0
    %2109 = vmatpush1.bf16.msra.mxu0 %v1941
    %2110 = vmatprep.subr.bf16.mxu0 0
    %2111 = vmatpush1.bf16.msra.mxu0 %v1940
    %2112 = vmatprep.subr.bf16.mxu0 0
    %2113 = vmatpush1.bf16.msra.mxu0 %v1939
    %2114 = vmatprep.subr.bf16.mxu0 0
    %2115 = vmatpush1.bf16.msra.mxu0 %v1938
    %2116 = vmatprep.subr.bf16.mxu0 0
    %2117 = vmatpush2.bf16.msra.mxu0 %v1953
    %2118 = vmatprep.subr.bf16.mxu0 0
    %2119 = vmatpush2.bf16.msra.mxu0 %v1952
    %2120 = vmatprep.subr.bf16.mxu0 0
    %2121 = vmatpush2.bf16.msra.mxu0 %v1951
    %2122 = vmatprep.subr.bf16.mxu0 0
    %2123 = vmatpush2.bf16.msra.mxu0 %v1950
    %2124 = vmatprep.subr.bf16.mxu0 0
    %2125 = vmatpush2.bf16.msra.mxu0 %v1949
    %2126 = vmatprep.subr.bf16.mxu0 0
    %2127 = vmatpush2.bf16.msra.mxu0 %v1948
    %2128 = vmatprep.subr.bf16.mxu0 0
    %2129 = vmatpush2.bf16.msra.mxu0 %v1947
    %2130 = vmatprep.subr.bf16.mxu0 0
    %2131 = vmatpush2.bf16.msra.mxu0 %v1946
    %2132 = vmatprep.mubr.bf16.mxu0 %v1604
    %2133 = vmatmul.mubr.bf16.gmra.mxu0 %v1603
    %v2134 = vpop.f32.mrf.mxu0
    %v2135 = vadd.f32 %v2086, %v2134
    %v2136 = vpop.f32.mrf.mxu0
    %v2137 = vpop.f32.mrf.mxu0
    %v2138 = vadd.f32 %v2089, %v2137
    %v2139 = vpop.f32.mrf.mxu0
    %2140 = vmatprep.mubr.bf16.mxu0 %v1610
    %2141 = vmatmul.mubr.bf16.gmra.mxu0 %v1609
    %v2142 = vpop.f32.mrf.mxu0
    %v2143 = vadd.f32 %v2094, %v2142
    %v2144 = vpop.f32.mrf.mxu0
    %v2145 = vpop.f32.mrf.mxu0
    %v2146 = vadd.f32 %v2097, %v2145
    %v2147 = vpop.f32.mrf.mxu0
    %2148 = vdwg.mxu0
    %v2149 = vmax.f32 %v2135, -4.0
    %v2150 = vmax.f32 %v2138, -4.0
    %v2151 = vmax.f32 %v2143, -4.0
    %v2152 = vmax.f32 %v2146, -4.0
    %v2153 = vmin.f32 %v2149, 15.0
    %v2154 = vmin.f32 %v2150, 15.0
    %v2155 = vmin.f32 %v2151, 15.0
    %v2156 = vmin.f32 %v2152, 15.0
    %v2157 = vmul.f32 %v2153, 1.442695
    %v2158 = vpow.pop %v2157
    %v2159 = vmul.f32 %v2154, 1.442695
    %v2160 = vpow.pop %v2159
    %v2161 = vmul.f32 %v2155, 1.442695
    %v2162 = vpow.pop %v2161
    %v2163 = vmul.f32 %v2156, 1.442695
    %v2164 = vpow.pop %v2163
    %v2165 = vld [vmem:[%s1] sm:$0xff]
    %v2166 = vld [vmem:[%s1 + $0x8] sm:$0xff]
    %v2167 = vld [vmem:[%s1 + $0x10] sm:$0xff]
    %v2168 = vld [vmem:[%s1 + $0x18] sm:$0xff]
    %2173 = vrot.lane.b32.xlu0 %v2165, 16
    %v2174 = vpop.permute.xlu0 %2173
    %2175 = vrot.lane.b32.xlu0 %v2166, 16
    %v2176 = vpop.permute.xlu0 %2175
    %2177 = vrot.lane.b32.xlu0 %v2167, 16
    %v2178 = vpop.permute.xlu0 %2177
    %2179 = vrot.lane.b32.xlu0 %v2168, 16
    %v2180 = vpop.permute.xlu0 %2179
    %v2185 = vmul.f32 %v2158, %v2174
    %v2186 = vmul.f32 %v2160, %v2176
    %v2187 = vmul.f32 %v2162, %v2178
    %v2188 = vmul.f32 %v2164, %v2180
    %2193 = vrot.lane.b32.xlu0 %v2185, 112
    %v2194 = vpop.permute.xlu0 %2193
    %2195 = vrot.lane.b32.xlu0 %v2186, 112
    %v2196 = vpop.permute.xlu0 %2195
    %2197 = vrot.lane.b32.xlu0 %v2187, 112
    %v2198 = vpop.permute.xlu0 %2197
    %2199 = vrot.lane.b32.xlu0 %v2188, 112
    %v2200 = vpop.permute.xlu0 %2199
    %v2205 = vadd.f32 %v2135, %v2194
    %v2206 = vadd.f32 %v2138, %v2196
    %v2207 = vadd.f32 %v2143, %v2198
    %v2208 = vadd.f32 %v2146, %v2200
    %v2209 = vld [vmem:[#allocation13] sm:$0xff]
    %v2210 = vld [vmem:[#allocation13 + $0x8] sm:$0xff]
    %v2211 = vld [vmem:[#allocation13 + $0x10] sm:$0xff]
    %v2212 = vld [vmem:[#allocation13 + $0x18] sm:$0xff]
    %v2213 = vld [vmem:[#allocation13 + $0x20] sm:$0xff]
    %v2214 = vld [vmem:[#allocation13 + $0x28] sm:$0xff]
    %v2215 = vld [vmem:[#allocation13 + $0x30] sm:$0xff]
    %v2216 = vld [vmem:[#allocation13 + $0x38] sm:$0xff]
    %v2217 = vld [vmem:[#allocation13 + $0x40] sm:$0xff]
    %v2218 = vld [vmem:[#allocation13 + $0x48] sm:$0xff]
    %v2219 = vld [vmem:[#allocation13 + $0x50] sm:$0xff]
    %v2220 = vld [vmem:[#allocation13 + $0x58] sm:$0xff]
    %v2221 = vld [vmem:[#allocation13 + $0x60] sm:$0xff]
    %v2222 = vld [vmem:[#allocation13 + $0x68] sm:$0xff]
    %v2223 = vld [vmem:[#allocation13 + $0x70] sm:$0xff]
    %v2224 = vpack.c.bf16 %v2206, %v2205
    %v2225 = vpack.c.bf16 %v2208, %v2207
    %v2226 = vld [vmem:[%s10] sm:$0xff]
    %v2227 = vld [vmem:[%s10 + $0x8] sm:$0xff]
    %v2228 = vld [vmem:[%s10 + $0x10] sm:$0xff]
    %v2229 = vld [vmem:[%s10 + $0x18] sm:$0xff]
    %v2230 = vld [vmem:[%s10 + $0x20] sm:$0xff]
    %v2231 = vld [vmem:[%s10 + $0x28] sm:$0xff]
    %v2238 = vunpack.c.l.b16 %v2226
    %v2239 = vunpack.c.h.b16 %v2226
    %v2240 = vunpack.c.l.b16 %v2227
    %v2241 = vunpack.c.h.b16 %v2227
    %v2242 = vunpack.c.l.b16 %v2228
    %v2243 = vunpack.c.h.b16 %v2228
    %v2244 = vunpack.c.l.b16 %v2229
    %v2245 = vunpack.c.h.b16 %v2229
    %v2246 = vunpack.c.l.b16 %v2230
    %v2247 = vunpack.c.h.b16 %v2230
    %v2248 = vunpack.c.l.b16 %v2231
    %v2249 = vunpack.c.h.b16 %v2231
    %v2250 = vpack.c.b16 %v2244, %v2238
    %v2251 = vpack.c.b16 %v2245, %v2239
    %v2252 = vpack.c.b16 %v2246, %v2240
    %v2253 = vpack.c.b16 %v2247, %v2241
    %v2254 = vpack.c.b16 %v2248, %v2242
    %v2255 = vpack.c.b16 %v2249, %v2243
    %vm2262 = vcmask 130048
    %v2264 = vsel %vm2262, %v2224, 0
    %v2267 = vsel %vm2262, %v2225, 0
    %2269 = vmatprep.subr.bf16.mxu0 0
    %2270 = vmatpush1.bf16.msra.mxu0 0
    %2271 = vmatprep.subr.bf16.mxu0 0
    %2272 = vmatpush1.bf16.msra.mxu0 0
    %2273 = vmatprep.subr.bf16.mxu0 0
    %2274 = vmatpush1.bf16.msra.mxu0 0
    %2275 = vmatprep.subr.bf16.mxu0 0
    %2276 = vmatpush1.bf16.msra.mxu0 0
    %2277 = vmatprep.subr.bf16.mxu0 0
    %2278 = vmatpush1.bf16.msra.mxu0 0
    %2279 = vmatprep.subr.bf16.mxu0 0
    %2280 = vmatpush1.bf16.msra.mxu0 0
    %2281 = vmatprep.subr.bf16.mxu0 0
    %2282 = vmatpush1.bf16.msra.mxu0 0
    %2283 = vmatprep.subr.bf16.mxu0 %v2251
    %2284 = vmatpush1.bf16.msra.mxu0 %v2250
    %2285 = vmatprep.subr.bf16.mxu0 0
    %2286 = vmatpush2.bf16.msra.mxu0 0
    %2287 = vmatprep.subr.bf16.mxu0 0
    %2288 = vmatpush2.bf16.msra.mxu0 0
    %2289 = vmatprep.subr.bf16.mxu0 0
    %2290 = vmatpush2.bf16.msra.mxu0 0
    %2291 = vmatprep.subr.bf16.mxu0 0
    %2292 = vmatpush2.bf16.msra.mxu0 0
    %2293 = vmatprep.subr.bf16.mxu0 0
    %2294 = vmatpush2.bf16.msra.mxu0 0
    %2295 = vmatprep.subr.bf16.mxu0 0
    %2296 = vmatpush2.bf16.msra.mxu0 0
    %2297 = vmatprep.subr.bf16.mxu0 0
    %2298 = vmatpush2.bf16.msra.mxu0 0
    %2299 = vmatprep.subr.bf16.mxu0 0
    %2300 = vmatpush2.bf16.msra.mxu0 0
    %2301 = vmatprep.mubr.bf16.mxu0 0
    %2302 = vmatmul.mubr.bf16.gmra.mxu0 %v2264
    %v2303 = vpop.f32.mrf.mxu0
    %v2304 = vadd.f32 0.0, %v2303
    %v2305 = vpop.f32.mrf.mxu0
    %v2306 = vadd.f32 0.0, %v2305
    %v2307 = vpop.f32.mrf.mxu0
    %v2308 = vadd.f32 0.0, %v2307
    %v2309 = vpop.f32.mrf.mxu0
    %v2310 = vadd.f32 0.0, %v2309
    %2311 = vmatprep.mubr.bf16.mxu0 0
    %2312 = vmatmul.mubr.bf16.gmra.mxu0 %v2267
    %v2313 = vpop.f32.mrf.mxu0
    %v2314 = vadd.f32 0.0, %v2313
    %v2315 = vpop.f32.mrf.mxu0
    %v2316 = vadd.f32 0.0, %v2315
    %v2317 = vpop.f32.mrf.mxu0
    %v2318 = vadd.f32 0.0, %v2317
    %v2319 = vpop.f32.mrf.mxu0
    %v2320 = vadd.f32 0.0, %v2319
    %2321 = vdwg.mxu0
    %2322 = vmatprep.subr.bf16.mxu0 0
    %2323 = vmatpush1.bf16.msra.mxu0 0
    %2324 = vmatprep.subr.bf16.mxu0 0
    %2325 = vmatpush1.bf16.msra.mxu0 0
    %2326 = vmatprep.subr.bf16.mxu0 0
    %2327 = vmatpush1.bf16.msra.mxu0 0
    %2328 = vmatprep.subr.bf16.mxu0 0
    %2329 = vmatpush1.bf16.msra.mxu0 0
    %2330 = vmatprep.subr.bf16.mxu0 0
    %2331 = vmatpush1.bf16.msra.mxu0 0
    %2332 = vmatprep.subr.bf16.mxu0 0
    %2333 = vmatpush1.bf16.msra.mxu0 0
    %2334 = vmatprep.subr.bf16.mxu0 0
    %2335 = vmatpush1.bf16.msra.mxu0 0
    %2336 = vmatprep.subr.bf16.mxu0 %v2253
    %2337 = vmatpush1.bf16.msra.mxu0 %v2252
    %2338 = vmatprep.subr.bf16.mxu0 0
    %2339 = vmatpush2.bf16.msra.mxu0 0
    %2340 = vmatprep.subr.bf16.mxu0 0
    %2341 = vmatpush2.bf16.msra.mxu0 0
    %2342 = vmatprep.subr.bf16.mxu0 0
    %2343 = vmatpush2.bf16.msra.mxu0 0
    %2344 = vmatprep.subr.bf16.mxu0 0
    %2345 = vmatpush2.bf16.msra.mxu0 0
    %2346 = vmatprep.subr.bf16.mxu0 0
    %2347 = vmatpush2.bf16.msra.mxu0 0
    %2348 = vmatprep.subr.bf16.mxu0 0
    %2349 = vmatpush2.bf16.msra.mxu0 0
    %2350 = vmatprep.subr.bf16.mxu0 0
    %2351 = vmatpush2.bf16.msra.mxu0 0
    %2352 = vmatprep.subr.bf16.mxu0 0
    %2353 = vmatpush2.bf16.msra.mxu0 0
    %2354 = vmatprep.mubr.bf16.mxu0 0
    %2355 = vmatmul.mubr.bf16.gmra.mxu0 %v2264
    %v2356 = vpop.f32.mrf.mxu0
    %v2357 = vadd.f32 0.0, %v2356
    %v2358 = vpop.f32.mrf.mxu0
    %v2359 = vadd.f32 0.0, %v2358
    %v2360 = vpop.f32.mrf.mxu0
    %v2361 = vadd.f32 0.0, %v2360
    %v2362 = vpop.f32.mrf.mxu0
    %v2363 = vadd.f32 0.0, %v2362
    %2364 = vmatprep.mubr.bf16.mxu0 0
    %2365 = vmatmul.mubr.bf16.gmra.mxu0 %v2267
    %v2366 = vpop.f32.mrf.mxu0
    %v2367 = vadd.f32 0.0, %v2366
    %v2368 = vpop.f32.mrf.mxu0
    %v2369 = vadd.f32 0.0, %v2368
    %v2370 = vpop.f32.mrf.mxu0
    %v2371 = vadd.f32 0.0, %v2370
    %v2372 = vpop.f32.mrf.mxu0
    %v2373 = vadd.f32 0.0, %v2372
    %2374 = vdwg.mxu0
    %2375 = vmatprep.subr.bf16.mxu0 0
    %2376 = vmatpush1.bf16.msra.mxu0 0
    %2377 = vmatprep.subr.bf16.mxu0 0
    %2378 = vmatpush1.bf16.msra.mxu0 0
    %2379 = vmatprep.subr.bf16.mxu0 0
    %2380 = vmatpush1.bf16.msra.mxu0 0
    %2381 = vmatprep.subr.bf16.mxu0 0
    %2382 = vmatpush1.bf16.msra.mxu0 0
    %2383 = vmatprep.subr.bf16.mxu0 0
    %2384 = vmatpush1.bf16.msra.mxu0 0
    %2385 = vmatprep.subr.bf16.mxu0 0
    %2386 = vmatpush1.bf16.msra.mxu0 0
    %2387 = vmatprep.subr.bf16.mxu0 0
    %2388 = vmatpush1.bf16.msra.mxu0 0
    %2389 = vmatprep.subr.bf16.mxu0 %v2255
    %2390 = vmatpush1.bf16.msra.mxu0 %v2254
    %2391 = vmatprep.subr.bf16.mxu0 0
    %2392 = vmatpush2.bf16.msra.mxu0 0
    %2393 = vmatprep.subr.bf16.mxu0 0
    %2394 = vmatpush2.bf16.msra.mxu0 0
    %2395 = vmatprep.subr.bf16.mxu0 0
    %2396 = vmatpush2.bf16.msra.mxu0 0
    %2397 = vmatprep.subr.bf16.mxu0 0
    %2398 = vmatpush2.bf16.msra.mxu0 0
    %2399 = vmatprep.subr.bf16.mxu0 0
    %2400 = vmatpush2.bf16.msra.mxu0 0
    %2401 = vmatprep.subr.bf16.mxu0 0
    %2402 = vmatpush2.bf16.msra.mxu0 0
    %2403 = vmatprep.subr.bf16.mxu0 0
    %2404 = vmatpush2.bf16.msra.mxu0 0
    %2405 = vmatprep.subr.bf16.mxu0 0
    %2406 = vmatpush2.bf16.msra.mxu0 0
    %2407 = vmatprep.mubr.bf16.mxu0 0
    %2408 = vmatmul.mubr.bf16.gmra.mxu0 %v2264
    %v2409 = vpop.f32.mrf.mxu0
    %v2410 = vadd.f32 0.0, %v2409
    %v2411 = vpop.f32.mrf.mxu0
    %v2412 = vadd.f32 0.0, %v2411
    %v2413 = vpop.f32.mrf.mxu0
    %v2414 = vadd.f32 0.0, %v2413
    %v2415 = vpop.f32.mrf.mxu0
    %v2416 = vadd.f32 0.0, %v2415
    %2417 = vmatprep.mubr.bf16.mxu0 0
    %2418 = vmatmul.mubr.bf16.gmra.mxu0 %v2267
    %v2419 = vpop.f32.mrf.mxu0
    %v2420 = vadd.f32 0.0, %v2419
    %v2421 = vpop.f32.mrf.mxu0
    %v2422 = vadd.f32 0.0, %v2421
    %v2423 = vpop.f32.mrf.mxu0
    %v2424 = vadd.f32 0.0, %v2423
    %v2425 = vpop.f32.mrf.mxu0
    %v2426 = vadd.f32 0.0, %v2425
    %2427 = vdwg.mxu0
    %v2443 = vunpack.c.l.b16 %v2209
    %v2444 = vunpack.c.h.b16 %v2209
    %v2445 = vunpack.c.l.b16 %v2210
    %v2446 = vunpack.c.h.b16 %v2210
    %v2447 = vunpack.c.l.b16 %v2211
    %v2448 = vunpack.c.h.b16 %v2211
    %v2449 = vunpack.c.l.b16 %v2212
    %v2450 = vunpack.c.h.b16 %v2212
    %v2451 = vunpack.c.l.b16 %v2213
    %v2452 = vunpack.c.h.b16 %v2213
    %v2453 = vunpack.c.l.b16 %v2214
    %v2454 = vunpack.c.h.b16 %v2214
    %v2455 = vunpack.c.l.b16 %v2215
    %v2456 = vunpack.c.h.b16 %v2215
    %v2457 = vunpack.c.l.b16 %v2216
    %v2458 = vunpack.c.h.b16 %v2216
    %v2459 = vunpack.c.l.b16 %v2217
    %v2460 = vunpack.c.h.b16 %v2217
    %v2461 = vunpack.c.l.b16 %v2218
    %v2462 = vunpack.c.h.b16 %v2218
    %v2463 = vunpack.c.l.b16 %v2219
    %v2464 = vunpack.c.h.b16 %v2219
    %v2465 = vunpack.c.l.b16 %v2220
    %v2466 = vunpack.c.h.b16 %v2220
    %v2467 = vunpack.c.l.b16 %v2221
    %v2468 = vunpack.c.h.b16 %v2221
    %v2469 = vunpack.c.l.b16 %v2222
    %v2470 = vunpack.c.h.b16 %v2222
    %v2471 = vunpack.c.l.b16 %v2223
    %v2472 = vunpack.c.h.b16 %v2223
    %v2473 = vpack.c.b16 %v2449, %v2443
    %v2474 = vpack.c.b16 %v2450, %v2444
    %v2475 = vpack.c.b16 %v2451, %v2445
    %v2476 = vpack.c.b16 %v2452, %v2446
    %v2477 = vpack.c.b16 %v2453, %v2447
    %v2478 = vpack.c.b16 %v2454, %v2448
    %v2479 = vpack.c.b16 %v2461, %v2455
    %v2480 = vpack.c.b16 %v2462, %v2456
    %v2481 = vpack.c.b16 %v2463, %v2457
    %v2482 = vpack.c.b16 %v2464, %v2458
    %v2483 = vpack.c.b16 %v2465, %v2459
    %v2484 = vpack.c.b16 %v2466, %v2460
    %v2485 = vpack.c.b16 %v2467, %v2467
    %v2486 = vpack.c.b16 %v2468, %v2468
    %v2487 = vpack.c.b16 %v2469, %v2469
    %v2488 = vpack.c.b16 %v2470, %v2470
    %v2489 = vpack.c.b16 %v2471, %v2471
    %v2490 = vpack.c.b16 %v2472, %v2472
    %v2504 = vsel %vm340, %v2485, 0
    %v2507 = vsel %vm340, %v2486, 0
    %v2510 = vsel %vm340, %v2487, 0
    %v2513 = vsel %vm340, %v2488, 0
    %v2516 = vsel %vm340, %v2489, 0
    %v2519 = vsel %vm340, %v2490, 0
    %2521 = vmatprep.subr.bf16.mxu0 0
    %2522 = vmatpush1.bf16.msra.mxu0 0
    %2523 = vmatprep.subr.bf16.mxu0 0
    %2524 = vmatpush1.bf16.msra.mxu0 0
    %2525 = vmatprep.subr.bf16.mxu0 0
    %2526 = vmatpush1.bf16.msra.mxu0 0
    %2527 = vmatprep.subr.bf16.mxu0 0
    %2528 = vmatpush1.bf16.msra.mxu0 0
    %2529 = vmatprep.subr.bf16.mxu0 0
    %2530 = vmatpush1.bf16.msra.mxu0 0
    %2531 = vmatprep.subr.bf16.mxu0 %v2507
    %2532 = vmatpush1.bf16.msra.mxu0 %v2504
    %2533 = vmatprep.subr.bf16.mxu0 %v2480
    %2534 = vmatpush1.bf16.msra.mxu0 %v2479
    %2535 = vmatprep.subr.bf16.mxu0 %v2474
    %2536 = vmatpush1.bf16.msra.mxu0 %v2473
    %2537 = vmatprep.subr.bf16.mxu0 0
    %2538 = vmatpush2.bf16.msra.mxu0 0
    %2539 = vmatprep.subr.bf16.mxu0 0
    %2540 = vmatpush2.bf16.msra.mxu0 0
    %2541 = vmatprep.subr.bf16.mxu0 0
    %2542 = vmatpush2.bf16.msra.mxu0 0
    %2543 = vmatprep.subr.bf16.mxu0 0
    %2544 = vmatpush2.bf16.msra.mxu0 0
    %2545 = vmatprep.subr.bf16.mxu0 0
    %2546 = vmatpush2.bf16.msra.mxu0 0
    %2547 = vmatprep.subr.bf16.mxu0 0
    %2548 = vmatpush2.bf16.msra.mxu0 0
    %2549 = vmatprep.subr.bf16.mxu0 0
    %2550 = vmatpush2.bf16.msra.mxu0 0
    %2551 = vmatprep.subr.bf16.mxu0 0
    %2552 = vmatpush2.bf16.msra.mxu0 0
    %2553 = vmatprep.mubr.bf16.mxu0 0
    %2554 = vmatmul.mubr.bf16.gmra.mxu0 %v335
    %v2555 = vpop.f32.mrf.mxu0
    %v2556 = vadd.f32 %v2304, %v2555
    %v2557 = vpop.f32.mrf.mxu0
    %v2558 = vadd.f32 %v2306, %v2557
    %v2559 = vpop.f32.mrf.mxu0
    %v2560 = vadd.f32 %v2308, %v2559
    %v2561 = vpop.f32.mrf.mxu0
    %v2562 = vadd.f32 %v2310, %v2561
    %2563 = vmatprep.mubr.bf16.mxu0 0
    %2564 = vmatmul.mubr.bf16.gmra.mxu0 %v338
    %v2565 = vpop.f32.mrf.mxu0
    %v2566 = vadd.f32 %v2314, %v2565
    %v2567 = vpop.f32.mrf.mxu0
    %v2568 = vadd.f32 %v2316, %v2567
    %v2569 = vpop.f32.mrf.mxu0
    %v2570 = vadd.f32 %v2318, %v2569
    %v2571 = vpop.f32.mrf.mxu0
    %v2572 = vadd.f32 %v2320, %v2571
    %2573 = vdwg.mxu0
    %2574 = vmatprep.subr.bf16.mxu0 0
    %2575 = vmatpush1.bf16.msra.mxu0 0
    %2576 = vmatprep.subr.bf16.mxu0 0
    %2577 = vmatpush1.bf16.msra.mxu0 0
    %2578 = vmatprep.subr.bf16.mxu0 0
    %2579 = vmatpush1.bf16.msra.mxu0 0
    %2580 = vmatprep.subr.bf16.mxu0 0
    %2581 = vmatpush1.bf16.msra.mxu0 0
    %2582 = vmatprep.subr.bf16.mxu0 0
    %2583 = vmatpush1.bf16.msra.mxu0 0
    %2584 = vmatprep.subr.bf16.mxu0 %v2513
    %2585 = vmatpush1.bf16.msra.mxu0 %v2510
    %2586 = vmatprep.subr.bf16.mxu0 %v2482
    %2587 = vmatpush1.bf16.msra.mxu0 %v2481
    %2588 = vmatprep.subr.bf16.mxu0 %v2476
    %2589 = vmatpush1.bf16.msra.mxu0 %v2475
    %2590 = vmatprep.subr.bf16.mxu0 0
    %2591 = vmatpush2.bf16.msra.mxu0 0
    %2592 = vmatprep.subr.bf16.mxu0 0
    %2593 = vmatpush2.bf16.msra.mxu0 0
    %2594 = vmatprep.subr.bf16.mxu0 0
    %2595 = vmatpush2.bf16.msra.mxu0 0
    %2596 = vmatprep.subr.bf16.mxu0 0
    %2597 = vmatpush2.bf16.msra.mxu0 0
    %2598 = vmatprep.subr.bf16.mxu0 0
    %2599 = vmatpush2.bf16.msra.mxu0 0
    %2600 = vmatprep.subr.bf16.mxu0 0
    %2601 = vmatpush2.bf16.msra.mxu0 0
    %2602 = vmatprep.subr.bf16.mxu0 0
    %2603 = vmatpush2.bf16.msra.mxu0 0
    %2604 = vmatprep.subr.bf16.mxu0 0
    %2605 = vmatpush2.bf16.msra.mxu0 0
    %2606 = vmatprep.mubr.bf16.mxu0 0
    %2607 = vmatmul.mubr.bf16.gmra.mxu0 %v335
    %v2608 = vpop.f32.mrf.mxu0
    %v2609 = vadd.f32 %v2357, %v2608
    %v2610 = vpop.f32.mrf.mxu0
    %v2611 = vadd.f32 %v2359, %v2610
    %v2612 = vpop.f32.mrf.mxu0
    %v2613 = vadd.f32 %v2361, %v2612
    %v2614 = vpop.f32.mrf.mxu0
    %v2615 = vadd.f32 %v2363, %v2614
    %2616 = vmatprep.mubr.bf16.mxu0 0
    %2617 = vmatmul.mubr.bf16.gmra.mxu0 %v338
    %v2618 = vpop.f32.mrf.mxu0
    %v2619 = vadd.f32 %v2367, %v2618
    %v2620 = vpop.f32.mrf.mxu0
    %v2621 = vadd.f32 %v2369, %v2620
    %v2622 = vpop.f32.mrf.mxu0
    %v2623 = vadd.f32 %v2371, %v2622
    %v2624 = vpop.f32.mrf.mxu0
    %v2625 = vadd.f32 %v2373, %v2624
    %2626 = vdwg.mxu0
    %2627 = vmatprep.subr.bf16.mxu0 0
    %2628 = vmatpush1.bf16.msra.mxu0 0
    %2629 = vmatprep.subr.bf16.mxu0 0
    %2630 = vmatpush1.bf16.msra.mxu0 0
    %2631 = vmatprep.subr.bf16.mxu0 0
    %2632 = vmatpush1.bf16.msra.mxu0 0
    %2633 = vmatprep.subr.bf16.mxu0 0
    %2634 = vmatpush1.bf16.msra.mxu0 0
    %2635 = vmatprep.subr.bf16.mxu0 0
    %2636 = vmatpush1.bf16.msra.mxu0 0
    %2637 = vmatprep.subr.bf16.mxu0 %v2519
    %2638 = vmatpush1.bf16.msra.mxu0 %v2516
    %2639 = vmatprep.subr.bf16.mxu0 %v2484
    %2640 = vmatpush1.bf16.msra.mxu0 %v2483
    %2641 = vmatprep.subr.bf16.mxu0 %v2478
    %2642 = vmatpush1.bf16.msra.mxu0 %v2477
    %2643 = vmatprep.subr.bf16.mxu0 0
    %2644 = vmatpush2.bf16.msra.mxu0 0
    %2645 = vmatprep.subr.bf16.mxu0 0
    %2646 = vmatpush2.bf16.msra.mxu0 0
    %2647 = vmatprep.subr.bf16.mxu0 0
    %2648 = vmatpush2.bf16.msra.mxu0 0
    %2649 = vmatprep.subr.bf16.mxu0 0
    %2650 = vmatpush2.bf16.msra.mxu0 0
    %2651 = vmatprep.subr.bf16.mxu0 0
    %2652 = vmatpush2.bf16.msra.mxu0 0
    %2653 = vmatprep.subr.bf16.mxu0 0
    %2654 = vmatpush2.bf16.msra.mxu0 0
    %2655 = vmatprep.subr.bf16.mxu0 0
    %2656 = vmatpush2.bf16.msra.mxu0 0
    %2657 = vmatprep.subr.bf16.mxu0 0
    %2658 = vmatpush2.bf16.msra.mxu0 0
    %2659 = vmatprep.mubr.bf16.mxu0 0
    %2660 = vmatmul.mubr.bf16.gmra.mxu0 %v335
    %v2661 = vpop.f32.mrf.mxu0
    %v2662 = vadd.f32 %v2410, %v2661
    %v2663 = vpop.f32.mrf.mxu0
    %v2664 = vadd.f32 %v2412, %v2663
    %v2665 = vpop.f32.mrf.mxu0
    %v2666 = vadd.f32 %v2414, %v2665
    %v2667 = vpop.f32.mrf.mxu0
    %v2668 = vadd.f32 %v2416, %v2667
    %2669 = vmatprep.mubr.bf16.mxu0 0
    %2670 = vmatmul.mubr.bf16.gmra.mxu0 %v338
    %v2671 = vpop.f32.mrf.mxu0
    %v2672 = vadd.f32 %v2420, %v2671
    %v2673 = vpop.f32.mrf.mxu0
    %v2674 = vadd.f32 %v2422, %v2673
    %v2675 = vpop.f32.mrf.mxu0
    %v2676 = vadd.f32 %v2424, %v2675
    %v2677 = vpop.f32.mrf.mxu0
    %v2678 = vadd.f32 %v2426, %v2677
    %2679 = vdwg.mxu0
    %v2680 = vld [vmem:[#allocation14] sm:$0x3f]
    %v2682 = vlaneseq
    %v2683 = vshrl.u32 %v2682, 7
    %v2684 = vsub.s32 0, %v2683
    %v2685 = vrot.slane %v2680, %v2684
    %v2686 = vlaneseq
    %v2687 = vshrl.u32 %v2686, 7
    %v2688 = vsub.s32 1, %v2687
    %v2689 = vrot.slane %v2680, %v2688
    %v2690 = vlaneseq
    %v2691 = vshrl.u32 %v2690, 7
    %v2692 = vsub.s32 2, %v2691
    %v2693 = vrot.slane %v2680, %v2692
    %v2694 = vlaneseq
    %v2695 = vshrl.u32 %v2694, 7
    %v2696 = vsub.s32 3, %v2695
    %v2697 = vrot.slane %v2680, %v2696
    %v2698 = vlaneseq
    %v2699 = vshrl.u32 %v2698, 7
    %v2700 = vsub.s32 4, %v2699
    %v2701 = vrot.slane %v2680, %v2700
    %v2702 = vlaneseq
    %v2703 = vshrl.u32 %v2702, 7
    %v2704 = vsub.s32 5, %v2703
    %v2705 = vrot.slane %v2680, %v2704
    %v2712 = vadd.f32 %v2556, %v2685
    %v2713 = vadd.f32 %v2558, %v2689
    %v2714 = vadd.f32 %v2609, %v2693
    %v2715 = vadd.f32 %v2611, %v2697
    %v2716 = vadd.f32 %v2662, %v2701
    %v2717 = vadd.f32 %v2664, %v2705
    %v2718 = vadd.f32 %v2560, %v2685
    %v2719 = vadd.f32 %v2562, %v2689
    %v2720 = vadd.f32 %v2613, %v2693
    %v2721 = vadd.f32 %v2615, %v2697
    %v2722 = vadd.f32 %v2666, %v2701
    %v2723 = vadd.f32 %v2668, %v2705
    %v2724 = vadd.f32 %v2566, %v2685
    %v2725 = vadd.f32 %v2568, %v2689
    %v2726 = vadd.f32 %v2619, %v2693
    %v2727 = vadd.f32 %v2621, %v2697
    %v2728 = vadd.f32 %v2672, %v2701
    %v2729 = vadd.f32 %v2674, %v2705
    %v2730 = vadd.f32 %v2570, %v2685
    %v2731 = vadd.f32 %v2572, %v2689
    %v2732 = vadd.f32 %v2623, %v2693
    %v2733 = vadd.f32 %v2625, %v2697
    %v2734 = vadd.f32 %v2676, %v2701
    %v2735 = vadd.f32 %v2678, %v2705
    %v2736 = vmax.f32 %v2712, 0.0
    %v2737 = vmax.f32 %v2713, 0.0
    %v2738 = vmax.f32 %v2714, 0.0
    %v2739 = vmax.f32 %v2715, 0.0
    %v2740 = vmax.f32 %v2716, 0.0
    %v2741 = vmax.f32 %v2717, 0.0
    %v2742 = vmax.f32 %v2718, 0.0
    %v2743 = vmax.f32 %v2719, 0.0
    %v2744 = vmax.f32 %v2720, 0.0
    %v2745 = vmax.f32 %v2721, 0.0
    %v2746 = vmax.f32 %v2722, 0.0
    %v2747 = vmax.f32 %v2723, 0.0
    %v2748 = vmax.f32 %v2724, 0.0
    %v2749 = vmax.f32 %v2725, 0.0
    %v2750 = vmax.f32 %v2726, 0.0
    %v2751 = vmax.f32 %v2727, 0.0
    %v2752 = vmax.f32 %v2728, 0.0
    %v2753 = vmax.f32 %v2729, 0.0
    %v2754 = vmax.f32 %v2730, 0.0
    %v2755 = vmax.f32 %v2731, 0.0
    %v2756 = vmax.f32 %v2732, 0.0
    %v2757 = vmax.f32 %v2733, 0.0
    %v2758 = vmax.f32 %v2734, 0.0
    %v2759 = vmax.f32 %v2735, 0.0
    %v2760 = vpack.c.bf16 %v2742, %v2736
    %v2761 = vpack.c.bf16 %v2743, %v2737
    %v2762 = vpack.c.bf16 %v2744, %v2738
    %v2763 = vpack.c.bf16 %v2745, %v2739
    %v2764 = vpack.c.bf16 %v2746, %v2740
    %v2765 = vpack.c.bf16 %v2747, %v2741
    %v2766 = vpack.c.bf16 %v2754, %v2748
    %v2767 = vpack.c.bf16 %v2755, %v2749
    %v2768 = vpack.c.bf16 %v2756, %v2750
    %v2769 = vpack.c.bf16 %v2757, %v2751
    %v2770 = vpack.c.bf16 %v2758, %v2752
    %v2771 = vpack.c.bf16 %v2759, %v2753
    %v2772 = vld [vmem:[#allocation16] sm:$0xff]
    %v2773 = vld [vmem:[#allocation16 + $0x8] sm:$0xff]
    %v2774 = vld [vmem:[#allocation16 + $0x10] sm:$0xff]
    %v2775 = vld [vmem:[#allocation16 + $0x18] sm:$0xff]
    %v2776 = vld [vmem:[#allocation16 + $0x20] sm:$0xff]
    %v2777 = vld [vmem:[#allocation16 + $0x28] sm:$0xff]
    %v2778 = vld [vmem:[#allocation16 + $0x30] sm:$0xff]
    %v2779 = vld [vmem:[#allocation16 + $0x38] sm:$0xff]
    %v2780 = vld [vmem:[#allocation16 + $0x40] sm:$0xff]
    %v2781 = vld [vmem:[#allocation16 + $0x48] sm:$0xff]
    %v2782 = vld [vmem:[#allocation16 + $0x50] sm:$0xff]
    %v2783 = vld [vmem:[#allocation16 + $0x58] sm:$0xff]
    %v2784 = vld [vmem:[#allocation16 + $0x60] sm:$0xff]
    %v2785 = vld [vmem:[#allocation16 + $0x68] sm:$0xff]
    %v2786 = vld [vmem:[#allocation16 + $0x70] sm:$0xff]
    %v2787 = vld [vmem:[#allocation16 + $0x78] sm:$0xff]
    %v2788 = vld [vmem:[#allocation16 + $0x80] sm:$0xff]
    %v2789 = vld [vmem:[#allocation16 + $0x88] sm:$0xff]
    %v2790 = vld [vmem:[#allocation16 + $0x90] sm:$0xff]
    %v2791 = vld [vmem:[#allocation16 + $0x98] sm:$0xff]
    %v2792 = vld [vmem:[#allocation16 + $0xa0] sm:$0xff]
    %v2793 = vld [vmem:[#allocation16 + $0xa8] sm:$0xff]
    %v2794 = vld [vmem:[#allocation16 + $0xb0] sm:$0xff]
    %v2795 = vld [vmem:[#allocation16 + $0xb8] sm:$0xff]
    %v2796 = vld [vmem:[#allocation16 + $0xc0] sm:$0xff]
    %v2797 = vld [vmem:[#allocation16 + $0xc8] sm:$0xff]
    %v2798 = vld [vmem:[#allocation16 + $0xd0] sm:$0xff]
    %v2799 = vld [vmem:[#allocation16 + $0xd8] sm:$0xff]
    %v2800 = vld [vmem:[#allocation16 + $0xe0] sm:$0xff]
    %v2801 = vld [vmem:[#allocation16 + $0xe8] sm:$0xff]
    %v2802 = vld [vmem:[#allocation16 + $0xf0] sm:$0xff]
    %v2803 = vld [vmem:[#allocation16 + $0xf8] sm:$0xff]
    %v2804 = vld [vmem:[#allocation16 + $0x100] sm:$0xff]
    %v2805 = vld [vmem:[#allocation16 + $0x108] sm:$0xff]
    %v2806 = vld [vmem:[#allocation16 + $0x110] sm:$0xff]
    %v2807 = vld [vmem:[#allocation16 + $0x118] sm:$0xff]
    %v2808 = vld [vmem:[#allocation16 + $0x120] sm:$0xff]
    %v2809 = vld [vmem:[#allocation16 + $0x128] sm:$0xff]
    %v2810 = vld [vmem:[#allocation16 + $0x130] sm:$0xff]
    %v2811 = vld [vmem:[#allocation16 + $0x138] sm:$0xff]
    %v2812 = vld [vmem:[#allocation16 + $0x140] sm:$0xff]
    %v2813 = vld [vmem:[#allocation16 + $0x148] sm:$0xff]
    %v2814 = vld [vmem:[#allocation16 + $0x150] sm:$0xff]
    %v2815 = vld [vmem:[#allocation16 + $0x158] sm:$0xff]
    %v2816 = vld [vmem:[#allocation16 + $0x160] sm:$0xff]
    %v2817 = vld [vmem:[#allocation16 + $0x168] sm:$0xff]
    %v2818 = vld [vmem:[#allocation16 + $0x170] sm:$0xff]
    %v2819 = vld [vmem:[#allocation16 + $0x178] sm:$0xff]
    %v2820 = vld [vmem:[#allocation16 + $0x180] sm:$0xff]
    %v2821 = vld [vmem:[#allocation16 + $0x188] sm:$0xff]
    %v2822 = vld [vmem:[#allocation16 + $0x190] sm:$0xff]
    %v2823 = vld [vmem:[#allocation16 + $0x198] sm:$0xff]
    %v2824 = vld [vmem:[#allocation16 + $0x1a0] sm:$0xff]
    %v2825 = vld [vmem:[#allocation16 + $0x1a8] sm:$0xff]
    %v2826 = vld [vmem:[#allocation16 + $0x1b0] sm:$0xff]
    %v2827 = vld [vmem:[#allocation16 + $0x1b8] sm:$0xff]
    %v2828 = vld [vmem:[#allocation16 + $0x1c0] sm:$0xff]
    %v2829 = vld [vmem:[#allocation16 + $0x1c8] sm:$0xff]
    %v2830 = vld [vmem:[#allocation16 + $0x1d0] sm:$0xff]
    %v2831 = vld [vmem:[#allocation16 + $0x1d8] sm:$0xff]
    %v2832 = vld [vmem:[#allocation16 + $0x1e0] sm:$0xff]
    %v2833 = vld [vmem:[#allocation16 + $0x1e8] sm:$0xff]
    %v2834 = vld [vmem:[#allocation16 + $0x1f0] sm:$0xff]
    %v2835 = vld [vmem:[#allocation16 + $0x1f8] sm:$0xff]
    %v2836 = vld [vmem:[#allocation16 + $0x200] sm:$0xff]
    %v2837 = vld [vmem:[#allocation16 + $0x208] sm:$0xff]
    %v2838 = vld [vmem:[#allocation16 + $0x210] sm:$0xff]
    %v2839 = vld [vmem:[#allocation16 + $0x218] sm:$0xff]
    %v2840 = vld [vmem:[#allocation16 + $0x220] sm:$0xff]
    %v2841 = vld [vmem:[#allocation16 + $0x228] sm:$0xff]
    %v2842 = vld [vmem:[#allocation16 + $0x230] sm:$0xff]
    %v2843 = vld [vmem:[#allocation16 + $0x238] sm:$0xff]
    %v2844 = vld [vmem:[#allocation16 + $0x240] sm:$0xff]
    %v2845 = vld [vmem:[#allocation16 + $0x248] sm:$0xff]
    %v2846 = vld [vmem:[#allocation16 + $0x250] sm:$0xff]
    %v2847 = vld [vmem:[#allocation16 + $0x258] sm:$0xff]
    %v2848 = vld [vmem:[#allocation16 + $0x260] sm:$0xff]
    %v2849 = vld [vmem:[#allocation16 + $0x268] sm:$0xff]
    %v2850 = vld [vmem:[#allocation16 + $0x270] sm:$0xff]
    %v2851 = vld [vmem:[#allocation16 + $0x278] sm:$0xff]
    %v2852 = vld [vmem:[#allocation16 + $0x280] sm:$0xff]
    %v2853 = vld [vmem:[#allocation16 + $0x288] sm:$0xff]
    %v2854 = vld [vmem:[#allocation16 + $0x290] sm:$0xff]
    %v2855 = vld [vmem:[#allocation16 + $0x298] sm:$0xff]
    %v2856 = vld [vmem:[#allocation16 + $0x2a0] sm:$0xff]
    %v2857 = vld [vmem:[#allocation16 + $0x2a8] sm:$0xff]
    %v2858 = vld [vmem:[#allocation16 + $0x2b0] sm:$0xff]
    %v2859 = vld [vmem:[#allocation16 + $0x2b8] sm:$0xff]
    %v2860 = vld [vmem:[#allocation16 + $0x2c0] sm:$0xff]
    %v2861 = vld [vmem:[#allocation16 + $0x2c8] sm:$0xff]
    %v2862 = vld [vmem:[#allocation16 + $0x2d0] sm:$0xff]
    %v2863 = vld [vmem:[#allocation16 + $0x2d8] sm:$0xff]
    %v2864 = vld [vmem:[#allocation16 + $0x2e0] sm:$0xff]
    %v2865 = vld [vmem:[#allocation16 + $0x2e8] sm:$0xff]
    %v2866 = vld [vmem:[#allocation16 + $0x2f0] sm:$0xff]
    %v2867 = vld [vmem:[#allocation16 + $0x2f8] sm:$0xff]
    %v2868 = vld [vmem:[#allocation16 + $0x300] sm:$0xff]
    %v2869 = vld [vmem:[#allocation16 + $0x308] sm:$0xff]
    %v2870 = vld [vmem:[#allocation16 + $0x310] sm:$0xff]
    %v2871 = vld [vmem:[#allocation16 + $0x318] sm:$0xff]
    %v2872 = vld [vmem:[#allocation16 + $0x320] sm:$0xff]
    %v2873 = vld [vmem:[#allocation16 + $0x328] sm:$0xff]
    %v2874 = vld [vmem:[#allocation16 + $0x330] sm:$0xff]
    %v2875 = vld [vmem:[#allocation16 + $0x338] sm:$0xff]
    %v2876 = vld [vmem:[#allocation16 + $0x340] sm:$0xff]
    %v2877 = vld [vmem:[#allocation16 + $0x348] sm:$0xff]
    %v2878 = vld [vmem:[#allocation16 + $0x350] sm:$0xff]
    %v2879 = vld [vmem:[#allocation16 + $0x358] sm:$0xff]
    %v2880 = vld [vmem:[#allocation16 + $0x360] sm:$0xff]
    %v2881 = vld [vmem:[#allocation16 + $0x368] sm:$0xff]
    %v2882 = vld [vmem:[#allocation16 + $0x370] sm:$0xff]
    %v2883 = vld [vmem:[#allocation16 + $0x378] sm:$0xff]
    %v2884 = vld [vmem:[#allocation16 + $0x380] sm:$0xff]
    %v2885 = vld [vmem:[#allocation16 + $0x388] sm:$0xff]
    %v2886 = vld [vmem:[#allocation16 + $0x390] sm:$0xff]
    %v2887 = vld [vmem:[#allocation16 + $0x398] sm:$0xff]
    %v2888 = vld [vmem:[#allocation16 + $0x3a0] sm:$0xff]
    %v2889 = vld [vmem:[#allocation16 + $0x3a8] sm:$0xff]
    %v2890 = vld [vmem:[#allocation16 + $0x3b0] sm:$0xff]
    %v2891 = vld [vmem:[#allocation16 + $0x3b8] sm:$0xff]
    %v2892 = vld [vmem:[#allocation16 + $0x3c0] sm:$0xff]
    %v2893 = vld [vmem:[#allocation16 + $0x3c8] sm:$0xff]
    %v2894 = vld [vmem:[#allocation16 + $0x3d0] sm:$0xff]
    %v2895 = vld [vmem:[#allocation16 + $0x3d8] sm:$0xff]
    %v2896 = vld [vmem:[#allocation16 + $0x3e0] sm:$0xff]
    %v2897 = vld [vmem:[#allocation16 + $0x3e8] sm:$0xff]
    %v2898 = vld [vmem:[#allocation16 + $0x3f0] sm:$0xff]
    %v2899 = vld [vmem:[#allocation16 + $0x3f8] sm:$0xff]
    %v2900 = vld [vmem:[#allocation16 + $0x400] sm:$0xff]
    %v2901 = vld [vmem:[#allocation16 + $0x408] sm:$0xff]
    %v2902 = vld [vmem:[#allocation16 + $0x410] sm:$0xff]
    %v2903 = vld [vmem:[#allocation16 + $0x418] sm:$0xff]
    %v2904 = vld [vmem:[#allocation16 + $0x420] sm:$0xff]
    %v2905 = vld [vmem:[#allocation16 + $0x428] sm:$0xff]
    %v2906 = vld [vmem:[#allocation16 + $0x430] sm:$0xff]
    %v2907 = vld [vmem:[#allocation16 + $0x438] sm:$0xff]
    %v2908 = vld [vmem:[#allocation16 + $0x440] sm:$0xff]
    %v2909 = vld [vmem:[#allocation16 + $0x448] sm:$0xff]
    %v2910 = vld [vmem:[#allocation16 + $0x450] sm:$0xff]
    %v2911 = vld [vmem:[#allocation16 + $0x458] sm:$0xff]
    %v2912 = vld [vmem:[#allocation16 + $0x460] sm:$0xff]
    %v2913 = vld [vmem:[#allocation16 + $0x468] sm:$0xff]
    %v2914 = vld [vmem:[#allocation16 + $0x470] sm:$0xff]
    %v2915 = vld [vmem:[#allocation16 + $0x478] sm:$0xff]
    %v2916 = vunpack.c.l.s8.bf16 %v2772
    %v2917 = vunpack.c.l.s8.bf16 %v2773
    %v2918 = vunpack.c.l.s8.bf16 %v2774
    %v2919 = vunpack.c.l.s8.bf16 %v2775
    %v2920 = vunpack.c.l.s8.bf16 %v2776
    %v2921 = vunpack.c.l.s8.bf16 %v2777
    %v2922 = vunpack.c.h.s8.bf16 %v2772
    %v2923 = vunpack.c.h.s8.bf16 %v2773
    %v2924 = vunpack.c.h.s8.bf16 %v2774
    %v2925 = vunpack.c.h.s8.bf16 %v2775
    %v2926 = vunpack.c.h.s8.bf16 %v2776
    %v2927 = vunpack.c.h.s8.bf16 %v2777
    %v2928 = vunpack.c.l.s8.bf16 %v2778
    %v2929 = vunpack.c.l.s8.bf16 %v2779
    %v2930 = vunpack.c.l.s8.bf16 %v2780
    %v2931 = vunpack.c.l.s8.bf16 %v2781
    %v2932 = vunpack.c.l.s8.bf16 %v2782
    %v2933 = vunpack.c.l.s8.bf16 %v2783
    %v2934 = vunpack.c.h.s8.bf16 %v2778
    %v2935 = vunpack.c.h.s8.bf16 %v2779
    %v2936 = vunpack.c.h.s8.bf16 %v2780
    %v2937 = vunpack.c.h.s8.bf16 %v2781
    %v2938 = vunpack.c.h.s8.bf16 %v2782
    %v2939 = vunpack.c.h.s8.bf16 %v2783
    %v2940 = vunpack.c.l.s8.bf16 %v2784
    %v2941 = vunpack.c.l.s8.bf16 %v2785
    %v2942 = vunpack.c.l.s8.bf16 %v2786
    %v2943 = vunpack.c.l.s8.bf16 %v2787
    %v2944 = vunpack.c.l.s8.bf16 %v2788
    %v2945 = vunpack.c.l.s8.bf16 %v2789
    %v2946 = vunpack.c.h.s8.bf16 %v2784
    %v2947 = vunpack.c.h.s8.bf16 %v2785
    %v2948 = vunpack.c.h.s8.bf16 %v2786
    %v2949 = vunpack.c.h.s8.bf16 %v2787
    %v2950 = vunpack.c.h.s8.bf16 %v2788
    %v2951 = vunpack.c.h.s8.bf16 %v2789
    %v2952 = vunpack.c.l.s8.bf16 %v2790
    %v2953 = vunpack.c.l.s8.bf16 %v2791
    %v2954 = vunpack.c.l.s8.bf16 %v2792
    %v2955 = vunpack.c.l.s8.bf16 %v2793
    %v2956 = vunpack.c.l.s8.bf16 %v2794
    %v2957 = vunpack.c.l.s8.bf16 %v2795
    %v2958 = vunpack.c.h.s8.bf16 %v2790
    %v2959 = vunpack.c.h.s8.bf16 %v2791
    %v2960 = vunpack.c.h.s8.bf16 %v2792
    %v2961 = vunpack.c.h.s8.bf16 %v2793
    %v2962 = vunpack.c.h.s8.bf16 %v2794
    %v2963 = vunpack.c.h.s8.bf16 %v2795
    %v2964 = vunpack.c.l.s8.bf16 %v2796
    %v2965 = vunpack.c.l.s8.bf16 %v2797
    %v2966 = vunpack.c.l.s8.bf16 %v2798
    %v2967 = vunpack.c.l.s8.bf16 %v2799
    %v2968 = vunpack.c.l.s8.bf16 %v2800
    %v2969 = vunpack.c.l.s8.bf16 %v2801
    %v2970 = vunpack.c.h.s8.bf16 %v2796
    %v2971 = vunpack.c.h.s8.bf16 %v2797
    %v2972 = vunpack.c.h.s8.bf16 %v2798
    %v2973 = vunpack.c.h.s8.bf16 %v2799
    %v2974 = vunpack.c.h.s8.bf16 %v2800
    %v2975 = vunpack.c.h.s8.bf16 %v2801
    %v2976 = vunpack.c.l.s8.bf16 %v2802
    %v2977 = vunpack.c.l.s8.bf16 %v2803
    %v2978 = vunpack.c.l.s8.bf16 %v2804
    %v2979 = vunpack.c.l.s8.bf16 %v2805
    %v2980 = vunpack.c.l.s8.bf16 %v2806
    %v2981 = vunpack.c.l.s8.bf16 %v2807
    %v2982 = vunpack.c.h.s8.bf16 %v2802
    %v2983 = vunpack.c.h.s8.bf16 %v2803
    %v2984 = vunpack.c.h.s8.bf16 %v2804
    %v2985 = vunpack.c.h.s8.bf16 %v2805
    %v2986 = vunpack.c.h.s8.bf16 %v2806
    %v2987 = vunpack.c.h.s8.bf16 %v2807
    %v2988 = vunpack.c.l.s8.bf16 %v2808
    %v2989 = vunpack.c.l.s8.bf16 %v2809
    %v2990 = vunpack.c.l.s8.bf16 %v2810
    %v2991 = vunpack.c.l.s8.bf16 %v2811
    %v2992 = vunpack.c.l.s8.bf16 %v2812
    %v2993 = vunpack.c.l.s8.bf16 %v2813
    %v2994 = vunpack.c.h.s8.bf16 %v2808
    %v2995 = vunpack.c.h.s8.bf16 %v2809
    %v2996 = vunpack.c.h.s8.bf16 %v2810
    %v2997 = vunpack.c.h.s8.bf16 %v2811
    %v2998 = vunpack.c.h.s8.bf16 %v2812
    %v2999 = vunpack.c.h.s8.bf16 %v2813
    %v3000 = vunpack.c.l.s8.bf16 %v2814
    %v3001 = vunpack.c.l.s8.bf16 %v2815
    %v3002 = vunpack.c.l.s8.bf16 %v2816
    %v3003 = vunpack.c.l.s8.bf16 %v2817
    %v3004 = vunpack.c.l.s8.bf16 %v2818
    %v3005 = vunpack.c.l.s8.bf16 %v2819
    %v3006 = vunpack.c.h.s8.bf16 %v2814
    %v3007 = vunpack.c.h.s8.bf16 %v2815
    %v3008 = vunpack.c.h.s8.bf16 %v2816
    %v3009 = vunpack.c.h.s8.bf16 %v2817
    %v3010 = vunpack.c.h.s8.bf16 %v2818
    %v3011 = vunpack.c.h.s8.bf16 %v2819
    %v3012 = vunpack.c.l.s8.bf16 %v2820
    %v3013 = vunpack.c.l.s8.bf16 %v2821
    %v3014 = vunpack.c.l.s8.bf16 %v2822
    %v3015 = vunpack.c.l.s8.bf16 %v2823
    %v3016 = vunpack.c.l.s8.bf16 %v2824
    %v3017 = vunpack.c.l.s8.bf16 %v2825
    %v3018 = vunpack.c.h.s8.bf16 %v2820
    %v3019 = vunpack.c.h.s8.bf16 %v2821
    %v3020 = vunpack.c.h.s8.bf16 %v2822
    %v3021 = vunpack.c.h.s8.bf16 %v2823
    %v3022 = vunpack.c.h.s8.bf16 %v2824
    %v3023 = vunpack.c.h.s8.bf16 %v2825
    %v3024 = vunpack.c.l.s8.bf16 %v2826
    %v3025 = vunpack.c.l.s8.bf16 %v2827
    %v3026 = vunpack.c.l.s8.bf16 %v2828
    %v3027 = vunpack.c.l.s8.bf16 %v2829
    %v3028 = vunpack.c.l.s8.bf16 %v2830
    %v3029 = vunpack.c.l.s8.bf16 %v2831
    %v3030 = vunpack.c.h.s8.bf16 %v2826
    %v3031 = vunpack.c.h.s8.bf16 %v2827
    %v3032 = vunpack.c.h.s8.bf16 %v2828
    %v3033 = vunpack.c.h.s8.bf16 %v2829
    %v3034 = vunpack.c.h.s8.bf16 %v2830
    %v3035 = vunpack.c.h.s8.bf16 %v2831
    %v3036 = vunpack.c.l.s8.bf16 %v2832
    %v3037 = vunpack.c.l.s8.bf16 %v2833
    %v3038 = vunpack.c.l.s8.bf16 %v2834
    %v3039 = vunpack.c.l.s8.bf16 %v2835
    %v3040 = vunpack.c.l.s8.bf16 %v2836
    %v3041 = vunpack.c.l.s8.bf16 %v2837
    %v3042 = vunpack.c.h.s8.bf16 %v2832
    %v3043 = vunpack.c.h.s8.bf16 %v2833
    %v3044 = vunpack.c.h.s8.bf16 %v2834
    %v3045 = vunpack.c.h.s8.bf16 %v2835
    %v3046 = vunpack.c.h.s8.bf16 %v2836
    %v3047 = vunpack.c.h.s8.bf16 %v2837
    %v3048 = vunpack.c.l.s8.bf16 %v2838
    %v3049 = vunpack.c.l.s8.bf16 %v2839
    %v3050 = vunpack.c.l.s8.bf16 %v2840
    %v3051 = vunpack.c.l.s8.bf16 %v2841
    %v3052 = vunpack.c.l.s8.bf16 %v2842
    %v3053 = vunpack.c.l.s8.bf16 %v2843
    %v3054 = vunpack.c.h.s8.bf16 %v2838
    %v3055 = vunpack.c.h.s8.bf16 %v2839
    %v3056 = vunpack.c.h.s8.bf16 %v2840
    %v3057 = vunpack.c.h.s8.bf16 %v2841
    %v3058 = vunpack.c.h.s8.bf16 %v2842
    %v3059 = vunpack.c.h.s8.bf16 %v2843
    %v3060 = vunpack.c.l.s8.bf16 %v2844
    %v3061 = vunpack.c.l.s8.bf16 %v2845
    %v3062 = vunpack.c.l.s8.bf16 %v2846
    %v3063 = vunpack.c.l.s8.bf16 %v2847
    %v3064 = vunpack.c.l.s8.bf16 %v2848
    %v3065 = vunpack.c.l.s8.bf16 %v2849
    %v3066 = vunpack.c.h.s8.bf16 %v2844
    %v3067 = vunpack.c.h.s8.bf16 %v2845
    %v3068 = vunpack.c.h.s8.bf16 %v2846
    %v3069 = vunpack.c.h.s8.bf16 %v2847
    %v3070 = vunpack.c.h.s8.bf16 %v2848
    %v3071 = vunpack.c.h.s8.bf16 %v2849
    %v3072 = vunpack.c.l.s8.bf16 %v2850
    %v3073 = vunpack.c.l.s8.bf16 %v2851
    %v3074 = vunpack.c.l.s8.bf16 %v2852
    %v3075 = vunpack.c.l.s8.bf16 %v2853
    %v3076 = vunpack.c.l.s8.bf16 %v2854
    %v3077 = vunpack.c.l.s8.bf16 %v2855
    %v3078 = vunpack.c.h.s8.bf16 %v2850
    %v3079 = vunpack.c.h.s8.bf16 %v2851
    %v3080 = vunpack.c.h.s8.bf16 %v2852
    %v3081 = vunpack.c.h.s8.bf16 %v2853
    %v3082 = vunpack.c.h.s8.bf16 %v2854
    %v3083 = vunpack.c.h.s8.bf16 %v2855
    %v3084 = vunpack.c.l.s8.bf16 %v2856
    %v3085 = vunpack.c.l.s8.bf16 %v2857
    %v3086 = vunpack.c.l.s8.bf16 %v2858
    %v3087 = vunpack.c.l.s8.bf16 %v2859
    %v3088 = vunpack.c.l.s8.bf16 %v2860
    %v3089 = vunpack.c.l.s8.bf16 %v2861
    %v3090 = vunpack.c.h.s8.bf16 %v2856
    %v3091 = vunpack.c.h.s8.bf16 %v2857
    %v3092 = vunpack.c.h.s8.bf16 %v2858
    %v3093 = vunpack.c.h.s8.bf16 %v2859
    %v3094 = vunpack.c.h.s8.bf16 %v2860
    %v3095 = vunpack.c.h.s8.bf16 %v2861
    %v3096 = vunpack.c.l.s8.bf16 %v2862
    %v3097 = vunpack.c.l.s8.bf16 %v2863
    %v3098 = vunpack.c.l.s8.bf16 %v2864
    %v3099 = vunpack.c.l.s8.bf16 %v2865
    %v3100 = vunpack.c.l.s8.bf16 %v2866
    %v3101 = vunpack.c.l.s8.bf16 %v2867
    %v3102 = vunpack.c.h.s8.bf16 %v2862
    %v3103 = vunpack.c.h.s8.bf16 %v2863
    %v3104 = vunpack.c.h.s8.bf16 %v2864
    %v3105 = vunpack.c.h.s8.bf16 %v2865
    %v3106 = vunpack.c.h.s8.bf16 %v2866
    %v3107 = vunpack.c.h.s8.bf16 %v2867
    %v3108 = vunpack.c.l.s8.bf16 %v2868
    %v3109 = vunpack.c.l.s8.bf16 %v2869
    %v3110 = vunpack.c.l.s8.bf16 %v2870
    %v3111 = vunpack.c.l.s8.bf16 %v2871
    %v3112 = vunpack.c.l.s8.bf16 %v2872
    %v3113 = vunpack.c.l.s8.bf16 %v2873
    %v3114 = vunpack.c.h.s8.bf16 %v2868
    %v3115 = vunpack.c.h.s8.bf16 %v2869
    %v3116 = vunpack.c.h.s8.bf16 %v2870
    %v3117 = vunpack.c.h.s8.bf16 %v2871
    %v3118 = vunpack.c.h.s8.bf16 %v2872
    %v3119 = vunpack.c.h.s8.bf16 %v2873
    %v3120 = vunpack.c.l.s8.bf16 %v2874
    %v3121 = vunpack.c.l.s8.bf16 %v2875
    %v3122 = vunpack.c.l.s8.bf16 %v2876
    %v3123 = vunpack.c.l.s8.bf16 %v2877
    %v3124 = vunpack.c.l.s8.bf16 %v2878
    %v3125 = vunpack.c.l.s8.bf16 %v2879
    %v3126 = vunpack.c.h.s8.bf16 %v2874
    %v3127 = vunpack.c.h.s8.bf16 %v2875
    %v3128 = vunpack.c.h.s8.bf16 %v2876
    %v3129 = vunpack.c.h.s8.bf16 %v2877
    %v3130 = vunpack.c.h.s8.bf16 %v2878
    %v3131 = vunpack.c.h.s8.bf16 %v2879
    %v3132 = vunpack.c.l.s8.bf16 %v2880
    %v3133 = vunpack.c.l.s8.bf16 %v2881
    %v3134 = vunpack.c.l.s8.bf16 %v2882
    %v3135 = vunpack.c.l.s8.bf16 %v2883
    %v3136 = vunpack.c.l.s8.bf16 %v2884
    %v3137 = vunpack.c.l.s8.bf16 %v2885
    %v3138 = vunpack.c.h.s8.bf16 %v2880
    %v3139 = vunpack.c.h.s8.bf16 %v2881
    %v3140 = vunpack.c.h.s8.bf16 %v2882
    %v3141 = vunpack.c.h.s8.bf16 %v2883
    %v3142 = vunpack.c.h.s8.bf16 %v2884
    %v3143 = vunpack.c.h.s8.bf16 %v2885
    %v3144 = vunpack.c.l.s8.bf16 %v2886
    %v3145 = vunpack.c.l.s8.bf16 %v2887
    %v3146 = vunpack.c.l.s8.bf16 %v2888
    %v3147 = vunpack.c.l.s8.bf16 %v2889
    %v3148 = vunpack.c.l.s8.bf16 %v2890
    %v3149 = vunpack.c.l.s8.bf16 %v2891
    %v3150 = vunpack.c.h.s8.bf16 %v2886
    %v3151 = vunpack.c.h.s8.bf16 %v2887
    %v3152 = vunpack.c.h.s8.bf16 %v2888
    %v3153 = vunpack.c.h.s8.bf16 %v2889
    %v3154 = vunpack.c.h.s8.bf16 %v2890
    %v3155 = vunpack.c.h.s8.bf16 %v2891
    %v3156 = vunpack.c.l.s8.bf16 %v2892
    %v3157 = vunpack.c.l.s8.bf16 %v2893
    %v3158 = vunpack.c.l.s8.bf16 %v2894
    %v3159 = vunpack.c.l.s8.bf16 %v2895
    %v3160 = vunpack.c.l.s8.bf16 %v2896
    %v3161 = vunpack.c.l.s8.bf16 %v2897
    %v3162 = vunpack.c.h.s8.bf16 %v2892
    %v3163 = vunpack.c.h.s8.bf16 %v2893
    %v3164 = vunpack.c.h.s8.bf16 %v2894
    %v3165 = vunpack.c.h.s8.bf16 %v2895
    %v3166 = vunpack.c.h.s8.bf16 %v2896
    %v3167 = vunpack.c.h.s8.bf16 %v2897
    %v3168 = vunpack.c.l.s8.bf16 %v2898
    %v3169 = vunpack.c.l.s8.bf16 %v2899
    %v3170 = vunpack.c.l.s8.bf16 %v2900
    %v3171 = vunpack.c.l.s8.bf16 %v2901
    %v3172 = vunpack.c.l.s8.bf16 %v2902
    %v3173 = vunpack.c.l.s8.bf16 %v2903
    %v3174 = vunpack.c.h.s8.bf16 %v2898
    %v3175 = vunpack.c.h.s8.bf16 %v2899
    %v3176 = vunpack.c.h.s8.bf16 %v2900
    %v3177 = vunpack.c.h.s8.bf16 %v2901
    %v3178 = vunpack.c.h.s8.bf16 %v2902
    %v3179 = vunpack.c.h.s8.bf16 %v2903
    %v3180 = vunpack.c.l.s8.bf16 %v2904
    %v3181 = vunpack.c.l.s8.bf16 %v2905
    %v3182 = vunpack.c.l.s8.bf16 %v2906
    %v3183 = vunpack.c.l.s8.bf16 %v2907
    %v3184 = vunpack.c.l.s8.bf16 %v2908
    %v3185 = vunpack.c.l.s8.bf16 %v2909
    %v3186 = vunpack.c.h.s8.bf16 %v2904
    %v3187 = vunpack.c.h.s8.bf16 %v2905
    %v3188 = vunpack.c.h.s8.bf16 %v2906
    %v3189 = vunpack.c.h.s8.bf16 %v2907
    %v3190 = vunpack.c.h.s8.bf16 %v2908
    %v3191 = vunpack.c.h.s8.bf16 %v2909
    %v3192 = vunpack.c.l.s8.bf16 %v2910
    %v3193 = vunpack.c.l.s8.bf16 %v2911
    %v3194 = vunpack.c.l.s8.bf16 %v2912
    %v3195 = vunpack.c.l.s8.bf16 %v2913
    %v3196 = vunpack.c.l.s8.bf16 %v2914
    %v3197 = vunpack.c.l.s8.bf16 %v2915
    %v3198 = vunpack.c.h.s8.bf16 %v2910
    %v3199 = vunpack.c.h.s8.bf16 %v2911
    %v3200 = vunpack.c.h.s8.bf16 %v2912
    %v3201 = vunpack.c.h.s8.bf16 %v2913
    %v3202 = vunpack.c.h.s8.bf16 %v2914
    %v3203 = vunpack.c.h.s8.bf16 %v2915
    %3204 = vmatprep.subr.bf16.mxu0 %v2959
    %3205 = vmatpush1.bf16.msra.mxu0 %v2958
    %3206 = vmatprep.subr.bf16.mxu0 %v2953
    %3207 = vmatpush1.bf16.msra.mxu0 %v2952
    %3208 = vmatprep.subr.bf16.mxu0 %v2947
    %3209 = vmatpush1.bf16.msra.mxu0 %v2946
    %3210 = vmatprep.subr.bf16.mxu0 %v2941
    %3211 = vmatpush1.bf16.msra.mxu0 %v2940
    %3212 = vmatprep.subr.bf16.mxu0 %v2935
    %3213 = vmatpush1.bf16.msra.mxu0 %v2934
    %3214 = vmatprep.subr.bf16.mxu0 %v2929
    %3215 = vmatpush1.bf16.msra.mxu0 %v2928
    %3216 = vmatprep.subr.bf16.mxu0 %v2923
    %3217 = vmatpush1.bf16.msra.mxu0 %v2922
    %3218 = vmatprep.subr.bf16.mxu0 %v2917
    %3219 = vmatpush1.bf16.msra.mxu0 %v2916
    %3220 = vmatprep.subr.bf16.mxu0 %v3007
    %3221 = vmatpush2.bf16.msra.mxu0 %v3006
    %3222 = vmatprep.subr.bf16.mxu0 %v3001
    %3223 = vmatpush2.bf16.msra.mxu0 %v3000
    %3224 = vmatprep.subr.bf16.mxu0 %v2995
    %3225 = vmatpush2.bf16.msra.mxu0 %v2994
    %3226 = vmatprep.subr.bf16.mxu0 %v2989
    %3227 = vmatpush2.bf16.msra.mxu0 %v2988
    %3228 = vmatprep.subr.bf16.mxu0 %v2983
    %3229 = vmatpush2.bf16.msra.mxu0 %v2982
    %3230 = vmatprep.subr.bf16.mxu0 %v2977
    %3231 = vmatpush2.bf16.msra.mxu0 %v2976
    %3232 = vmatprep.subr.bf16.mxu0 %v2971
    %3233 = vmatpush2.bf16.msra.mxu0 %v2970
    %3234 = vmatprep.subr.bf16.mxu0 %v2965
    %3235 = vmatpush2.bf16.msra.mxu0 %v2964
    %3236 = vmatprep.mubr.bf16.mxu0 %v2761
    %3237 = vmatmul.mubr.bf16.gmra.mxu0 %v2760
    %v3238 = vpop.f32.mrf.mxu0
    %v3239 = vadd.f32 0.0, %v3238
    %v3240 = vpop.f32.mrf.mxu0
    %v3241 = vadd.f32 0.0, %v3240
    %v3242 = vpop.f32.mrf.mxu0
    %v3243 = vadd.f32 0.0, %v3242
    %v3244 = vpop.f32.mrf.mxu0
    %v3245 = vadd.f32 0.0, %v3244
    %3246 = vmatprep.mubr.bf16.mxu0 %v2767
    %3247 = vmatmul.mubr.bf16.gmra.mxu0 %v2766
    %v3248 = vpop.f32.mrf.mxu0
    %v3249 = vadd.f32 0.0, %v3248
    %v3250 = vpop.f32.mrf.mxu0
    %v3251 = vadd.f32 0.0, %v3250
    %v3252 = vpop.f32.mrf.mxu0
    %v3253 = vadd.f32 0.0, %v3252
    %v3254 = vpop.f32.mrf.mxu0
    %v3255 = vadd.f32 0.0, %v3254
    %3256 = vdwg.mxu0
    %3257 = vmatprep.subr.bf16.mxu0 %v3055
    %3258 = vmatpush1.bf16.msra.mxu0 %v3054
    %3259 = vmatprep.subr.bf16.mxu0 %v3049
    %3260 = vmatpush1.bf16.msra.mxu0 %v3048
    %3261 = vmatprep.subr.bf16.mxu0 %v3043
    %3262 = vmatpush1.bf16.msra.mxu0 %v3042
    %3263 = vmatprep.subr.bf16.mxu0 %v3037
    %3264 = vmatpush1.bf16.msra.mxu0 %v3036
    %3265 = vmatprep.subr.bf16.mxu0 %v3031
    %3266 = vmatpush1.bf16.msra.mxu0 %v3030
    %3267 = vmatprep.subr.bf16.mxu0 %v3025
    %3268 = vmatpush1.bf16.msra.mxu0 %v3024
    %3269 = vmatprep.subr.bf16.mxu0 %v3019
    %3270 = vmatpush1.bf16.msra.mxu0 %v3018
    %3271 = vmatprep.subr.bf16.mxu0 %v3013
    %3272 = vmatpush1.bf16.msra.mxu0 %v3012
    %3273 = vmatprep.subr.bf16.mxu0 %v3103
    %3274 = vmatpush2.bf16.msra.mxu0 %v3102
    %3275 = vmatprep.subr.bf16.mxu0 %v3097
    %3276 = vmatpush2.bf16.msra.mxu0 %v3096
    %3277 = vmatprep.subr.bf16.mxu0 %v3091
    %3278 = vmatpush2.bf16.msra.mxu0 %v3090
    %3279 = vmatprep.subr.bf16.mxu0 %v3085
    %3280 = vmatpush2.bf16.msra.mxu0 %v3084
    %3281 = vmatprep.subr.bf16.mxu0 %v3079
    %3282 = vmatpush2.bf16.msra.mxu0 %v3078
    %3283 = vmatprep.subr.bf16.mxu0 %v3073
    %3284 = vmatpush2.bf16.msra.mxu0 %v3072
    %3285 = vmatprep.subr.bf16.mxu0 %v3067
    %3286 = vmatpush2.bf16.msra.mxu0 %v3066
    %3287 = vmatprep.subr.bf16.mxu0 %v3061
    %3288 = vmatpush2.bf16.msra.mxu0 %v3060
    %3289 = vmatprep.mubr.bf16.mxu0 %v2763
    %3290 = vmatmul.mubr.bf16.gmra.mxu0 %v2762
    %v3291 = vpop.f32.mrf.mxu0
    %v3292 = vadd.f32 %v3239, %v3291
    %v3293 = vpop.f32.mrf.mxu0
    %v3294 = vadd.f32 %v3241, %v3293
    %v3295 = vpop.f32.mrf.mxu0
    %v3296 = vadd.f32 %v3243, %v3295
    %v3297 = vpop.f32.mrf.mxu0
    %v3298 = vadd.f32 %v3245, %v3297
    %3299 = vmatprep.mubr.bf16.mxu0 %v2769
    %3300 = vmatmul.mubr.bf16.gmra.mxu0 %v2768
    %v3301 = vpop.f32.mrf.mxu0
    %v3302 = vadd.f32 %v3249, %v3301
    %v3303 = vpop.f32.mrf.mxu0
    %v3304 = vadd.f32 %v3251, %v3303
    %v3305 = vpop.f32.mrf.mxu0
    %v3306 = vadd.f32 %v3253, %v3305
    %v3307 = vpop.f32.mrf.mxu0
    %v3308 = vadd.f32 %v3255, %v3307
    %3309 = vdwg.mxu0
    %3310 = vmatprep.subr.bf16.mxu0 %v3151
    %3311 = vmatpush1.bf16.msra.mxu0 %v3150
    %3312 = vmatprep.subr.bf16.mxu0 %v3145
    %3313 = vmatpush1.bf16.msra.mxu0 %v3144
    %3314 = vmatprep.subr.bf16.mxu0 %v3139
    %3315 = vmatpush1.bf16.msra.mxu0 %v3138
    %3316 = vmatprep.subr.bf16.mxu0 %v3133
    %3317 = vmatpush1.bf16.msra.mxu0 %v3132
    %3318 = vmatprep.subr.bf16.mxu0 %v3127
    %3319 = vmatpush1.bf16.msra.mxu0 %v3126
    %3320 = vmatprep.subr.bf16.mxu0 %v3121
    %3321 = vmatpush1.bf16.msra.mxu0 %v3120
    %3322 = vmatprep.subr.bf16.mxu0 %v3115
    %3323 = vmatpush1.bf16.msra.mxu0 %v3114
    %3324 = vmatprep.subr.bf16.mxu0 %v3109
    %3325 = vmatpush1.bf16.msra.mxu0 %v3108
    %3326 = vmatprep.subr.bf16.mxu0 %v3199
    %3327 = vmatpush2.bf16.msra.mxu0 %v3198
    %3328 = vmatprep.subr.bf16.mxu0 %v3193
    %3329 = vmatpush2.bf16.msra.mxu0 %v3192
    %3330 = vmatprep.subr.bf16.mxu0 %v3187
    %3331 = vmatpush2.bf16.msra.mxu0 %v3186
    %3332 = vmatprep.subr.bf16.mxu0 %v3181
    %3333 = vmatpush2.bf16.msra.mxu0 %v3180
    %3334 = vmatprep.subr.bf16.mxu0 %v3175
    %3335 = vmatpush2.bf16.msra.mxu0 %v3174
    %3336 = vmatprep.subr.bf16.mxu0 %v3169
    %3337 = vmatpush2.bf16.msra.mxu0 %v3168
    %3338 = vmatprep.subr.bf16.mxu0 %v3163
    %3339 = vmatpush2.bf16.msra.mxu0 %v3162
    %3340 = vmatprep.subr.bf16.mxu0 %v3157
    %3341 = vmatpush2.bf16.msra.mxu0 %v3156
    %3342 = vmatprep.mubr.bf16.mxu0 %v2765
    %3343 = vmatmul.mubr.bf16.gmra.mxu0 %v2764
    %v3344 = vpop.f32.mrf.mxu0
    %v3345 = vadd.f32 %v3292, %v3344
    %v3346 = vpop.f32.mrf.mxu0
    %v3347 = vadd.f32 %v3294, %v3346
    %v3348 = vpop.f32.mrf.mxu0
    %v3349 = vadd.f32 %v3296, %v3348
    %v3350 = vpop.f32.mrf.mxu0
    %v3351 = vadd.f32 %v3298, %v3350
    %3352 = vmatprep.mubr.bf16.mxu0 %v2771
    %3353 = vmatmul.mubr.bf16.gmra.mxu0 %v2770
    %v3354 = vpop.f32.mrf.mxu0
    %v3355 = vadd.f32 %v3302, %v3354
    %v3356 = vpop.f32.mrf.mxu0
    %v3357 = vadd.f32 %v3304, %v3356
    %v3358 = vpop.f32.mrf.mxu0
    %v3359 = vadd.f32 %v3306, %v3358
    %v3360 = vpop.f32.mrf.mxu0
    %v3361 = vadd.f32 %v3308, %v3360
    %3362 = vdwg.mxu0
    %3363 = vmatprep.subr.bf16.mxu0 %v2961
    %3364 = vmatpush1.bf16.msra.mxu0 %v2960
    %3365 = vmatprep.subr.bf16.mxu0 %v2955
    %3366 = vmatpush1.bf16.msra.mxu0 %v2954
    %3367 = vmatprep.subr.bf16.mxu0 %v2949
    %3368 = vmatpush1.bf16.msra.mxu0 %v2948
    %3369 = vmatprep.subr.bf16.mxu0 %v2943
    %3370 = vmatpush1.bf16.msra.mxu0 %v2942
    %3371 = vmatprep.subr.bf16.mxu0 %v2937
    %3372 = vmatpush1.bf16.msra.mxu0 %v2936
    %3373 = vmatprep.subr.bf16.mxu0 %v2931
    %3374 = vmatpush1.bf16.msra.mxu0 %v2930
    %3375 = vmatprep.subr.bf16.mxu0 %v2925
    %3376 = vmatpush1.bf16.msra.mxu0 %v2924
    %3377 = vmatprep.subr.bf16.mxu0 %v2919
    %3378 = vmatpush1.bf16.msra.mxu0 %v2918
    %3379 = vmatprep.subr.bf16.mxu0 %v3009
    %3380 = vmatpush2.bf16.msra.mxu0 %v3008
    %3381 = vmatprep.subr.bf16.mxu0 %v3003
    %3382 = vmatpush2.bf16.msra.mxu0 %v3002
    %3383 = vmatprep.subr.bf16.mxu0 %v2997
    %3384 = vmatpush2.bf16.msra.mxu0 %v2996
    %3385 = vmatprep.subr.bf16.mxu0 %v2991
    %3386 = vmatpush2.bf16.msra.mxu0 %v2990
    %3387 = vmatprep.subr.bf16.mxu0 %v2985
    %3388 = vmatpush2.bf16.msra.mxu0 %v2984
    %3389 = vmatprep.subr.bf16.mxu0 %v2979
    %3390 = vmatpush2.bf16.msra.mxu0 %v2978
    %3391 = vmatprep.subr.bf16.mxu0 %v2973
    %3392 = vmatpush2.bf16.msra.mxu0 %v2972
    %3393 = vmatprep.subr.bf16.mxu0 %v2967
    %3394 = vmatpush2.bf16.msra.mxu0 %v2966
    %3395 = vmatprep.mubr.bf16.mxu0 %v2761
    %3396 = vmatmul.mubr.bf16.gmra.mxu0 %v2760
    %v3397 = vpop.f32.mrf.mxu0
    %v3398 = vadd.f32 0.0, %v3397
    %v3399 = vpop.f32.mrf.mxu0
    %v3400 = vadd.f32 0.0, %v3399
    %v3401 = vpop.f32.mrf.mxu0
    %v3402 = vadd.f32 0.0, %v3401
    %v3403 = vpop.f32.mrf.mxu0
    %v3404 = vadd.f32 0.0, %v3403
    %3405 = vmatprep.mubr.bf16.mxu0 %v2767
    %3406 = vmatmul.mubr.bf16.gmra.mxu0 %v2766
    %v3407 = vpop.f32.mrf.mxu0
    %v3408 = vadd.f32 0.0, %v3407
    %v3409 = vpop.f32.mrf.mxu0
    %v3410 = vadd.f32 0.0, %v3409
    %v3411 = vpop.f32.mrf.mxu0
    %v3412 = vadd.f32 0.0, %v3411
    %v3413 = vpop.f32.mrf.mxu0
    %v3414 = vadd.f32 0.0, %v3413
    %3415 = vdwg.mxu0
    %3416 = vmatprep.subr.bf16.mxu0 %v3057
    %3417 = vmatpush1.bf16.msra.mxu0 %v3056
    %3418 = vmatprep.subr.bf16.mxu0 %v3051
    %3419 = vmatpush1.bf16.msra.mxu0 %v3050
    %3420 = vmatprep.subr.bf16.mxu0 %v3045
    %3421 = vmatpush1.bf16.msra.mxu0 %v3044
    %3422 = vmatprep.subr.bf16.mxu0 %v3039
    %3423 = vmatpush1.bf16.msra.mxu0 %v3038
    %3424 = vmatprep.subr.bf16.mxu0 %v3033
    %3425 = vmatpush1.bf16.msra.mxu0 %v3032
    %3426 = vmatprep.subr.bf16.mxu0 %v3027
    %3427 = vmatpush1.bf16.msra.mxu0 %v3026
    %3428 = vmatprep.subr.bf16.mxu0 %v3021
    %3429 = vmatpush1.bf16.msra.mxu0 %v3020
    %3430 = vmatprep.subr.bf16.mxu0 %v3015
    %3431 = vmatpush1.bf16.msra.mxu0 %v3014
    %3432 = vmatprep.subr.bf16.mxu0 %v3105
    %3433 = vmatpush2.bf16.msra.mxu0 %v3104
    %3434 = vmatprep.subr.bf16.mxu0 %v3099
    %3435 = vmatpush2.bf16.msra.mxu0 %v3098
    %3436 = vmatprep.subr.bf16.mxu0 %v3093
    %3437 = vmatpush2.bf16.msra.mxu0 %v3092
    %3438 = vmatprep.subr.bf16.mxu0 %v3087
    %3439 = vmatpush2.bf16.msra.mxu0 %v3086
    %3440 = vmatprep.subr.bf16.mxu0 %v3081
    %3441 = vmatpush2.bf16.msra.mxu0 %v3080
    %3442 = vmatprep.subr.bf16.mxu0 %v3075
    %3443 = vmatpush2.bf16.msra.mxu0 %v3074
    %3444 = vmatprep.subr.bf16.mxu0 %v3069
    %3445 = vmatpush2.bf16.msra.mxu0 %v3068
    %3446 = vmatprep.subr.bf16.mxu0 %v3063
    %3447 = vmatpush2.bf16.msra.mxu0 %v3062
    %3448 = vmatprep.mubr.bf16.mxu0 %v2763
    %3449 = vmatmul.mubr.bf16.gmra.mxu0 %v2762
    %v3450 = vpop.f32.mrf.mxu0
    %v3451 = vadd.f32 %v3398, %v3450
    %v3452 = vpop.f32.mrf.mxu0
    %v3453 = vadd.f32 %v3400, %v3452
    %v3454 = vpop.f32.mrf.mxu0
    %v3455 = vadd.f32 %v3402, %v3454
    %v3456 = vpop.f32.mrf.mxu0
    %v3457 = vadd.f32 %v3404, %v3456
    %3458 = vmatprep.mubr.bf16.mxu0 %v2769
    %3459 = vmatmul.mubr.bf16.gmra.mxu0 %v2768
    %v3460 = vpop.f32.mrf.mxu0
    %v3461 = vadd.f32 %v3408, %v3460
    %v3462 = vpop.f32.mrf.mxu0
    %v3463 = vadd.f32 %v3410, %v3462
    %v3464 = vpop.f32.mrf.mxu0
    %v3465 = vadd.f32 %v3412, %v3464
    %v3466 = vpop.f32.mrf.mxu0
    %v3467 = vadd.f32 %v3414, %v3466
    %3468 = vdwg.mxu0
    %3469 = vmatprep.subr.bf16.mxu0 %v3153
    %3470 = vmatpush1.bf16.msra.mxu0 %v3152
    %3471 = vmatprep.subr.bf16.mxu0 %v3147
    %3472 = vmatpush1.bf16.msra.mxu0 %v3146
    %3473 = vmatprep.subr.bf16.mxu0 %v3141
    %3474 = vmatpush1.bf16.msra.mxu0 %v3140
    %3475 = vmatprep.subr.bf16.mxu0 %v3135
    %3476 = vmatpush1.bf16.msra.mxu0 %v3134
    %3477 = vmatprep.subr.bf16.mxu0 %v3129
    %3478 = vmatpush1.bf16.msra.mxu0 %v3128
    %3479 = vmatprep.subr.bf16.mxu0 %v3123
    %3480 = vmatpush1.bf16.msra.mxu0 %v3122
    %3481 = vmatprep.subr.bf16.mxu0 %v3117
    %3482 = vmatpush1.bf16.msra.mxu0 %v3116
    %3483 = vmatprep.subr.bf16.mxu0 %v3111
    %3484 = vmatpush1.bf16.msra.mxu0 %v3110
    %3485 = vmatprep.subr.bf16.mxu0 %v3201
    %3486 = vmatpush2.bf16.msra.mxu0 %v3200
    %3487 = vmatprep.subr.bf16.mxu0 %v3195
    %3488 = vmatpush2.bf16.msra.mxu0 %v3194
    %3489 = vmatprep.subr.bf16.mxu0 %v3189
    %3490 = vmatpush2.bf16.msra.mxu0 %v3188
    %3491 = vmatprep.subr.bf16.mxu0 %v3183
    %3492 = vmatpush2.bf16.msra.mxu0 %v3182
    %3493 = vmatprep.subr.bf16.mxu0 %v3177
    %3494 = vmatpush2.bf16.msra.mxu0 %v3176
    %3495 = vmatprep.subr.bf16.mxu0 %v3171
    %3496 = vmatpush2.bf16.msra.mxu0 %v3170
    %3497 = vmatprep.subr.bf16.mxu0 %v3165
    %3498 = vmatpush2.bf16.msra.mxu0 %v3164
    %3499 = vmatprep.subr.bf16.mxu0 %v3159
    %3500 = vmatpush2.bf16.msra.mxu0 %v3158
    %3501 = vmatprep.mubr.bf16.mxu0 %v2765
    %3502 = vmatmul.mubr.bf16.gmra.mxu0 %v2764
    %v3503 = vpop.f32.mrf.mxu0
    %v3504 = vadd.f32 %v3451, %v3503
    %v3505 = vpop.f32.mrf.mxu0
    %v3506 = vadd.f32 %v3453, %v3505
    %v3507 = vpop.f32.mrf.mxu0
    %v3508 = vadd.f32 %v3455, %v3507
    %v3509 = vpop.f32.mrf.mxu0
    %v3510 = vadd.f32 %v3457, %v3509
    %3511 = vmatprep.mubr.bf16.mxu0 %v2771
    %3512 = vmatmul.mubr.bf16.gmra.mxu0 %v2770
    %v3513 = vpop.f32.mrf.mxu0
    %v3514 = vadd.f32 %v3461, %v3513
    %v3515 = vpop.f32.mrf.mxu0
    %v3516 = vadd.f32 %v3463, %v3515
    %v3517 = vpop.f32.mrf.mxu0
    %v3518 = vadd.f32 %v3465, %v3517
    %v3519 = vpop.f32.mrf.mxu0
    %v3520 = vadd.f32 %v3467, %v3519
    %3521 = vdwg.mxu0
    %3522 = vmatprep.subr.bf16.mxu0 %v2963
    %3523 = vmatpush1.bf16.msra.mxu0 %v2962
    %3524 = vmatprep.subr.bf16.mxu0 %v2957
    %3525 = vmatpush1.bf16.msra.mxu0 %v2956
    %3526 = vmatprep.subr.bf16.mxu0 %v2951
    %3527 = vmatpush1.bf16.msra.mxu0 %v2950
    %3528 = vmatprep.subr.bf16.mxu0 %v2945
    %3529 = vmatpush1.bf16.msra.mxu0 %v2944
    %3530 = vmatprep.subr.bf16.mxu0 %v2939
    %3531 = vmatpush1.bf16.msra.mxu0 %v2938
    %3532 = vmatprep.subr.bf16.mxu0 %v2933
    %3533 = vmatpush1.bf16.msra.mxu0 %v2932
    %3534 = vmatprep.subr.bf16.mxu0 %v2927
    %3535 = vmatpush1.bf16.msra.mxu0 %v2926
    %3536 = vmatprep.subr.bf16.mxu0 %v2921
    %3537 = vmatpush1.bf16.msra.mxu0 %v2920
    %3538 = vmatprep.subr.bf16.mxu0 %v3011
    %3539 = vmatpush2.bf16.msra.mxu0 %v3010
    %3540 = vmatprep.subr.bf16.mxu0 %v3005
    %3541 = vmatpush2.bf16.msra.mxu0 %v3004
    %3542 = vmatprep.subr.bf16.mxu0 %v2999
    %3543 = vmatpush2.bf16.msra.mxu0 %v2998
    %3544 = vmatprep.subr.bf16.mxu0 %v2993
    %3545 = vmatpush2.bf16.msra.mxu0 %v2992
    %3546 = vmatprep.subr.bf16.mxu0 %v2987
    %3547 = vmatpush2.bf16.msra.mxu0 %v2986
    %3548 = vmatprep.subr.bf16.mxu0 %v2981
    %3549 = vmatpush2.bf16.msra.mxu0 %v2980
    %3550 = vmatprep.subr.bf16.mxu0 %v2975
    %3551 = vmatpush2.bf16.msra.mxu0 %v2974
    %3552 = vmatprep.subr.bf16.mxu0 %v2969
    %3553 = vmatpush2.bf16.msra.mxu0 %v2968
    %3554 = vmatprep.mubr.bf16.mxu0 %v2761
    %3555 = vmatmul.mubr.bf16.gmra.mxu0 %v2760
    %v3556 = vpop.f32.mrf.mxu0
    %v3557 = vadd.f32 0.0, %v3556
    %v3558 = vpop.f32.mrf.mxu0
    %v3559 = vadd.f32 0.0, %v3558
    %v3560 = vpop.f32.mrf.mxu0
    %v3561 = vadd.f32 0.0, %v3560
    %v3562 = vpop.f32.mrf.mxu0
    %v3563 = vadd.f32 0.0, %v3562
    %3564 = vmatprep.mubr.bf16.mxu0 %v2767
    %3565 = vmatmul.mubr.bf16.gmra.mxu0 %v2766
    %v3566 = vpop.f32.mrf.mxu0
    %v3567 = vadd.f32 0.0, %v3566
    %v3568 = vpop.f32.mrf.mxu0
    %v3569 = vadd.f32 0.0, %v3568
    %v3570 = vpop.f32.mrf.mxu0
    %v3571 = vadd.f32 0.0, %v3570
    %v3572 = vpop.f32.mrf.mxu0
    %v3573 = vadd.f32 0.0, %v3572
    %3574 = vdwg.mxu0
    %3575 = vmatprep.subr.bf16.mxu0 %v3059
    %3576 = vmatpush1.bf16.msra.mxu0 %v3058
    %3577 = vmatprep.subr.bf16.mxu0 %v3053
    %3578 = vmatpush1.bf16.msra.mxu0 %v3052
    %3579 = vmatprep.subr.bf16.mxu0 %v3047
    %3580 = vmatpush1.bf16.msra.mxu0 %v3046
    %3581 = vmatprep.subr.bf16.mxu0 %v3041
    %3582 = vmatpush1.bf16.msra.mxu0 %v3040
    %3583 = vmatprep.subr.bf16.mxu0 %v3035
    %3584 = vmatpush1.bf16.msra.mxu0 %v3034
    %3585 = vmatprep.subr.bf16.mxu0 %v3029
    %3586 = vmatpush1.bf16.msra.mxu0 %v3028
    %3587 = vmatprep.subr.bf16.mxu0 %v3023
    %3588 = vmatpush1.bf16.msra.mxu0 %v3022
    %3589 = vmatprep.subr.bf16.mxu0 %v3017
    %3590 = vmatpush1.bf16.msra.mxu0 %v3016
    %3591 = vmatprep.subr.bf16.mxu0 %v3107
    %3592 = vmatpush2.bf16.msra.mxu0 %v3106
    %3593 = vmatprep.subr.bf16.mxu0 %v3101
    %3594 = vmatpush2.bf16.msra.mxu0 %v3100
    %3595 = vmatprep.subr.bf16.mxu0 %v3095
    %3596 = vmatpush2.bf16.msra.mxu0 %v3094
    %3597 = vmatprep.subr.bf16.mxu0 %v3089
    %3598 = vmatpush2.bf16.msra.mxu0 %v3088
    %3599 = vmatprep.subr.bf16.mxu0 %v3083
    %3600 = vmatpush2.bf16.msra.mxu0 %v3082
    %3601 = vmatprep.subr.bf16.mxu0 %v3077
    %3602 = vmatpush2.bf16.msra.mxu0 %v3076
    %3603 = vmatprep.subr.bf16.mxu0 %v3071
    %3604 = vmatpush2.bf16.msra.mxu0 %v3070
    %3605 = vmatprep.subr.bf16.mxu0 %v3065
    %3606 = vmatpush2.bf16.msra.mxu0 %v3064
    %3607 = vmatprep.mubr.bf16.mxu0 %v2763
    %3608 = vmatmul.mubr.bf16.gmra.mxu0 %v2762
    %v3609 = vpop.f32.mrf.mxu0
    %v3610 = vadd.f32 %v3557, %v3609
    %v3611 = vpop.f32.mrf.mxu0
    %v3612 = vadd.f32 %v3559, %v3611
    %v3613 = vpop.f32.mrf.mxu0
    %v3614 = vadd.f32 %v3561, %v3613
    %v3615 = vpop.f32.mrf.mxu0
    %v3616 = vadd.f32 %v3563, %v3615
    %3617 = vmatprep.mubr.bf16.mxu0 %v2769
    %3618 = vmatmul.mubr.bf16.gmra.mxu0 %v2768
    %v3619 = vpop.f32.mrf.mxu0
    %v3620 = vadd.f32 %v3567, %v3619
    %v3621 = vpop.f32.mrf.mxu0
    %v3622 = vadd.f32 %v3569, %v3621
    %v3623 = vpop.f32.mrf.mxu0
    %v3624 = vadd.f32 %v3571, %v3623
    %v3625 = vpop.f32.mrf.mxu0
    %v3626 = vadd.f32 %v3573, %v3625
    %3627 = vdwg.mxu0
    %3628 = vmatprep.subr.bf16.mxu0 %v3155
    %3629 = vmatpush1.bf16.msra.mxu0 %v3154
    %3630 = vmatprep.subr.bf16.mxu0 %v3149
    %3631 = vmatpush1.bf16.msra.mxu0 %v3148
    %3632 = vmatprep.subr.bf16.mxu0 %v3143
    %3633 = vmatpush1.bf16.msra.mxu0 %v3142
    %3634 = vmatprep.subr.bf16.mxu0 %v3137
    %3635 = vmatpush1.bf16.msra.mxu0 %v3136
    %3636 = vmatprep.subr.bf16.mxu0 %v3131
    %3637 = vmatpush1.bf16.msra.mxu0 %v3130
    %3638 = vmatprep.subr.bf16.mxu0 %v3125
    %3639 = vmatpush1.bf16.msra.mxu0 %v3124
    %3640 = vmatprep.subr.bf16.mxu0 %v3119
    %3641 = vmatpush1.bf16.msra.mxu0 %v3118
    %3642 = vmatprep.subr.bf16.mxu0 %v3113
    %3643 = vmatpush1.bf16.msra.mxu0 %v3112
    %3644 = vmatprep.subr.bf16.mxu0 %v3203
    %3645 = vmatpush2.bf16.msra.mxu0 %v3202
    %3646 = vmatprep.subr.bf16.mxu0 %v3197
    %3647 = vmatpush2.bf16.msra.mxu0 %v3196
    %3648 = vmatprep.subr.bf16.mxu0 %v3191
    %3649 = vmatpush2.bf16.msra.mxu0 %v3190
    %3650 = vmatprep.subr.bf16.mxu0 %v3185
    %3651 = vmatpush2.bf16.msra.mxu0 %v3184
    %3652 = vmatprep.subr.bf16.mxu0 %v3179
    %3653 = vmatpush2.bf16.msra.mxu0 %v3178
    %3654 = vmatprep.subr.bf16.mxu0 %v3173
    %3655 = vmatpush2.bf16.msra.mxu0 %v3172
    %3656 = vmatprep.subr.bf16.mxu0 %v3167
    %3657 = vmatpush2.bf16.msra.mxu0 %v3166
    %3658 = vmatprep.subr.bf16.mxu0 %v3161
    %3659 = vmatpush2.bf16.msra.mxu0 %v3160
    %3660 = vmatprep.mubr.bf16.mxu0 %v2765
    %3661 = vmatmul.mubr.bf16.gmra.mxu0 %v2764
    %v3662 = vpop.f32.mrf.mxu0
    %v3663 = vadd.f32 %v3610, %v3662
    %v3664 = vpop.f32.mrf.mxu0
    %v3665 = vadd.f32 %v3612, %v3664
    %v3666 = vpop.f32.mrf.mxu0
    %v3667 = vadd.f32 %v3614, %v3666
    %v3668 = vpop.f32.mrf.mxu0
    %v3669 = vadd.f32 %v3616, %v3668
    %3670 = vmatprep.mubr.bf16.mxu0 %v2771
    %3671 = vmatmul.mubr.bf16.gmra.mxu0 %v2770
    %v3672 = vpop.f32.mrf.mxu0
    %v3673 = vadd.f32 %v3620, %v3672
    %v3674 = vpop.f32.mrf.mxu0
    %v3675 = vadd.f32 %v3622, %v3674
    %v3676 = vpop.f32.mrf.mxu0
    %v3677 = vadd.f32 %v3624, %v3676
    %v3678 = vpop.f32.mrf.mxu0
    %v3679 = vadd.f32 %v3626, %v3678
    %3680 = vdwg.mxu0
    %v3681 = vld [vmem:[%s13] sm:$0x3f]
    %v3683 = vlaneseq
    %v3684 = vshrl.u32 %v3683, 7
    %v3685 = vsub.s32 0, %v3684
    %v3686 = vrot.slane %v3681, %v3685
    %v3687 = vlaneseq
    %v3688 = vshrl.u32 %v3687, 7
    %v3689 = vsub.s32 1, %v3688
    %v3690 = vrot.slane %v3681, %v3689
    %v3691 = vlaneseq
    %v3692 = vshrl.u32 %v3691, 7
    %v3693 = vsub.s32 2, %v3692
    %v3694 = vrot.slane %v3681, %v3693
    %v3695 = vlaneseq
    %v3696 = vshrl.u32 %v3695, 7
    %v3697 = vsub.s32 3, %v3696
    %v3698 = vrot.slane %v3681, %v3697
    %v3699 = vlaneseq
    %v3700 = vshrl.u32 %v3699, 7
    %v3701 = vsub.s32 4, %v3700
    %v3702 = vrot.slane %v3681, %v3701
    %v3703 = vlaneseq
    %v3704 = vshrl.u32 %v3703, 7
    %v3705 = vsub.s32 5, %v3704
    %v3706 = vrot.slane %v3681, %v3705
    %v3713 = vmul.f32 %v3345, %v3686
    %v3714 = vmul.f32 %v3347, %v3690
    %v3715 = vmul.f32 %v3504, %v3694
    %v3716 = vmul.f32 %v3506, %v3698
    %v3717 = vmul.f32 %v3663, %v3702
    %v3718 = vmul.f32 %v3665, %v3706
    %v3719 = vmul.f32 %v3349, %v3686
    %v3720 = vmul.f32 %v3351, %v3690
    %v3721 = vmul.f32 %v3508, %v3694
    %v3722 = vmul.f32 %v3510, %v3698
    %v3723 = vmul.f32 %v3667, %v3702
    %v3724 = vmul.f32 %v3669, %v3706
    %v3725 = vmul.f32 %v3355, %v3686
    %v3726 = vmul.f32 %v3357, %v3690
    %v3727 = vmul.f32 %v3514, %v3694
    %v3728 = vmul.f32 %v3516, %v3698
    %v3729 = vmul.f32 %v3673, %v3702
    %v3730 = vmul.f32 %v3675, %v3706
    %v3731 = vmul.f32 %v3359, %v3686
    %v3732 = vmul.f32 %v3361, %v3690
    %v3733 = vmul.f32 %v3518, %v3694
    %v3734 = vmul.f32 %v3520, %v3698
    %v3735 = vmul.f32 %v3677, %v3702
    %v3736 = vmul.f32 %v3679, %v3706
    %v3737 = vld [vmem:[#allocation17] sm:$0x3f]
    %v3739 = vlaneseq
    %v3740 = vshrl.u32 %v3739, 7
    %v3741 = vsub.s32 0, %v3740
    %v3742 = vrot.slane %v3737, %v3741
    %v3743 = vlaneseq
    %v3744 = vshrl.u32 %v3743, 7
    %v3745 = vsub.s32 1, %v3744
    %v3746 = vrot.slane %v3737, %v3745
    %v3747 = vlaneseq
    %v3748 = vshrl.u32 %v3747, 7
    %v3749 = vsub.s32 2, %v3748
    %v3750 = vrot.slane %v3737, %v3749
    %v3751 = vlaneseq
    %v3752 = vshrl.u32 %v3751, 7
    %v3753 = vsub.s32 3, %v3752
    %v3754 = vrot.slane %v3737, %v3753
    %v3755 = vlaneseq
    %v3756 = vshrl.u32 %v3755, 7
    %v3757 = vsub.s32 4, %v3756
    %v3758 = vrot.slane %v3737, %v3757
    %v3759 = vlaneseq
    %v3760 = vshrl.u32 %v3759, 7
    %v3761 = vsub.s32 5, %v3760
    %v3762 = vrot.slane %v3737, %v3761
    %v3769 = vadd.f32 %v3713, %v3742
    %v3770 = vadd.f32 %v3714, %v3746
    %v3771 = vadd.f32 %v3715, %v3750
    %v3772 = vadd.f32 %v3716, %v3754
    %v3773 = vadd.f32 %v3717, %v3758
    %v3774 = vadd.f32 %v3718, %v3762
    %v3775 = vadd.f32 %v3719, %v3742
    %v3776 = vadd.f32 %v3720, %v3746
    %v3777 = vadd.f32 %v3721, %v3750
    %v3778 = vadd.f32 %v3722, %v3754
    %v3779 = vadd.f32 %v3723, %v3758
    %v3780 = vadd.f32 %v3724, %v3762
    %v3781 = vadd.f32 %v3725, %v3742
    %v3782 = vadd.f32 %v3726, %v3746
    %v3783 = vadd.f32 %v3727, %v3750
    %v3784 = vadd.f32 %v3728, %v3754
    %v3785 = vadd.f32 %v3729, %v3758
    %v3786 = vadd.f32 %v3730, %v3762
    %v3787 = vadd.f32 %v3731, %v3742
    %v3788 = vadd.f32 %v3732, %v3746
    %v3789 = vadd.f32 %v3733, %v3750
    %v3790 = vadd.f32 %v3734, %v3754
    %v3791 = vadd.f32 %v3735, %v3758
    %v3792 = vadd.f32 %v3736, %v3762
    %v3793 = vmax.f32 %v3769, 0.0
    %v3794 = vmax.f32 %v3770, 0.0
    %v3795 = vmax.f32 %v3771, 0.0
    %v3796 = vmax.f32 %v3772, 0.0
    %v3797 = vmax.f32 %v3773, 0.0
    %v3798 = vmax.f32 %v3774, 0.0
    %v3799 = vmax.f32 %v3775, 0.0
    %v3800 = vmax.f32 %v3776, 0.0
    %v3801 = vmax.f32 %v3777, 0.0
    %v3802 = vmax.f32 %v3778, 0.0
    %v3803 = vmax.f32 %v3779, 0.0
    %v3804 = vmax.f32 %v3780, 0.0
    %v3805 = vmax.f32 %v3781, 0.0
    %v3806 = vmax.f32 %v3782, 0.0
    %v3807 = vmax.f32 %v3783, 0.0
    %v3808 = vmax.f32 %v3784, 0.0
    %v3809 = vmax.f32 %v3785, 0.0
    %v3810 = vmax.f32 %v3786, 0.0
    %v3811 = vmax.f32 %v3787, 0.0
    %v3812 = vmax.f32 %v3788, 0.0
    %v3813 = vmax.f32 %v3789, 0.0
    %v3814 = vmax.f32 %v3790, 0.0
    %v3815 = vmax.f32 %v3791, 0.0
    %v3816 = vmax.f32 %v3792, 0.0
    %v3817 = vpack.c.bf16 %v3799, %v3793
    %v3818 = vpack.c.bf16 %v3800, %v3794
    %v3819 = vpack.c.bf16 %v3801, %v3795
    %v3820 = vpack.c.bf16 %v3802, %v3796
    %v3821 = vpack.c.bf16 %v3803, %v3797
    %v3822 = vpack.c.bf16 %v3804, %v3798
    %v3823 = vpack.c.bf16 %v3811, %v3805
    %v3824 = vpack.c.bf16 %v3812, %v3806
    %v3825 = vpack.c.bf16 %v3813, %v3807
    %v3826 = vpack.c.bf16 %v3814, %v3808
    %v3827 = vpack.c.bf16 %v3815, %v3809
    %v3828 = vpack.c.bf16 %v3816, %v3810
    %v3829 = vld [vmem:[#allocation19] sm:$0xf]
    %v3830 = vld [vmem:[#allocation19 + $0x4] sm:$0xf]
    %v3831 = vld [vmem:[#allocation19 + $0x8] sm:$0xf]
    %v3832 = vld [vmem:[#allocation19 + $0xc] sm:$0xf]
    %v3833 = vld [vmem:[#allocation19 + $0x10] sm:$0xf]
    %v3834 = vld [vmem:[#allocation19 + $0x14] sm:$0xf]
    %v3835 = vld [vmem:[#allocation19 + $0x18] sm:$0xf]
    %v3836 = vld [vmem:[#allocation19 + $0x1c] sm:$0xf]
    %v3837 = vld [vmem:[#allocation19 + $0x20] sm:$0xf]
    %v3838 = vld [vmem:[#allocation19 + $0x24] sm:$0xf]
    %v3839 = vld [vmem:[#allocation19 + $0x28] sm:$0xf]
    %v3840 = vld [vmem:[#allocation19 + $0x2c] sm:$0xf]
    %v3841 = vld [vmem:[#allocation19 + $0x30] sm:$0xf]
    %v3842 = vld [vmem:[#allocation19 + $0x34] sm:$0xf]
    %v3843 = vld [vmem:[#allocation19 + $0x38] sm:$0xf]
    %v3844 = vld [vmem:[#allocation19 + $0x3c] sm:$0xf]
    %v3845 = vld [vmem:[#allocation19 + $0x40] sm:$0xf]
    %v3846 = vld [vmem:[#allocation19 + $0x44] sm:$0xf]
    %v3847 = vld [vmem:[#allocation19 + $0x48] sm:$0xf]
    %v3848 = vld [vmem:[#allocation19 + $0x4c] sm:$0xf]
    %v3849 = vld [vmem:[#allocation19 + $0x50] sm:$0xf]
    %v3850 = vld [vmem:[#allocation19 + $0x54] sm:$0xf]
    %v3851 = vld [vmem:[#allocation19 + $0x58] sm:$0xf]
    %v3852 = vld [vmem:[#allocation19 + $0x5c] sm:$0xf]
    %v3853 = vld [vmem:[#allocation19 + $0x60] sm:$0xf]
    %v3854 = vld [vmem:[#allocation19 + $0x64] sm:$0xf]
    %v3855 = vld [vmem:[#allocation19 + $0x68] sm:$0xf]
    %v3856 = vld [vmem:[#allocation19 + $0x6c] sm:$0xf]
    %v3857 = vld [vmem:[#allocation19 + $0x70] sm:$0xf]
    %v3858 = vld [vmem:[#allocation19 + $0x74] sm:$0xf]
    %v3859 = vld [vmem:[#allocation19 + $0x78] sm:$0xf]
    %v3860 = vld [vmem:[#allocation19 + $0x7c] sm:$0xf]
    %v3861 = vld [vmem:[#allocation19 + $0x80] sm:$0xf]
    %v3862 = vld [vmem:[#allocation19 + $0x84] sm:$0xf]
    %v3863 = vld [vmem:[#allocation19 + $0x88] sm:$0xf]
    %v3864 = vld [vmem:[#allocation19 + $0x8c] sm:$0xf]
    %v3865 = vld [vmem:[#allocation19 + $0x90] sm:$0xf]
    %v3866 = vld [vmem:[#allocation19 + $0x94] sm:$0xf]
    %v3867 = vld [vmem:[#allocation19 + $0x98] sm:$0xf]
    %v3868 = vld [vmem:[#allocation19 + $0x9c] sm:$0xf]
    %v3869 = vld [vmem:[#allocation19 + $0xa0] sm:$0xf]
    %v3870 = vld [vmem:[#allocation19 + $0xa4] sm:$0xf]
    %v3871 = vld [vmem:[#allocation19 + $0xa8] sm:$0xf]
    %v3872 = vld [vmem:[#allocation19 + $0xac] sm:$0xf]
    %v3873 = vld [vmem:[#allocation19 + $0xb0] sm:$0xf]
    %v3874 = vld [vmem:[#allocation19 + $0xb4] sm:$0xf]
    %v3875 = vld [vmem:[#allocation19 + $0xb8] sm:$0xf]
    %v3876 = vld [vmem:[#allocation19 + $0xbc] sm:$0xf]
    %v3877 = vld [vmem:[#allocation19 + $0xc0] sm:$0xf]
    %v3878 = vld [vmem:[#allocation19 + $0xc4] sm:$0xf]
    %v3879 = vld [vmem:[#allocation19 + $0xc8] sm:$0xf]
    %v3880 = vld [vmem:[#allocation19 + $0xcc] sm:$0xf]
    %v3881 = vld [vmem:[#allocation19 + $0xd0] sm:$0xf]
    %v3882 = vld [vmem:[#allocation19 + $0xd4] sm:$0xf]
    %v3883 = vld [vmem:[#allocation19 + $0xd8] sm:$0xf]
    %v3884 = vld [vmem:[#allocation19 + $0xdc] sm:$0xf]
    %v3885 = vld [vmem:[#allocation19 + $0xe0] sm:$0xf]
    %v3886 = vld [vmem:[#allocation19 + $0xe4] sm:$0xf]
    %v3887 = vld [vmem:[#allocation19 + $0xe8] sm:$0xf]
    %v3888 = vld [vmem:[#allocation19 + $0xec] sm:$0xf]
    %v3889 = vld [vmem:[#allocation19 + $0xf0] sm:$0xf]
    %v3890 = vld [vmem:[#allocation19 + $0xf4] sm:$0xf]
    %v3891 = vld [vmem:[#allocation19 + $0xf8] sm:$0xf]
    %v3892 = vld [vmem:[#allocation19 + $0xfc] sm:$0xf]
    %v3893 = vld [vmem:[#allocation19 + $0x100] sm:$0xf]
    %v3894 = vld [vmem:[#allocation19 + $0x104] sm:$0xf]
    %v3895 = vld [vmem:[#allocation19 + $0x108] sm:$0xf]
    %v3896 = vld [vmem:[#allocation19 + $0x10c] sm:$0xf]
    %v3897 = vld [vmem:[#allocation19 + $0x110] sm:$0xf]
    %v3898 = vld [vmem:[#allocation19 + $0x114] sm:$0xf]
    %v3899 = vld [vmem:[#allocation19 + $0x118] sm:$0xf]
    %v3900 = vld [vmem:[#allocation19 + $0x11c] sm:$0xf]
    %v3901 = vld [vmem:[#allocation19 + $0x120] sm:$0xf]
    %v3902 = vld [vmem:[#allocation19 + $0x124] sm:$0xf]
    %v3903 = vld [vmem:[#allocation19 + $0x128] sm:$0xf]
    %v3904 = vld [vmem:[#allocation19 + $0x12c] sm:$0xf]
    %v3905 = vld [vmem:[#allocation19 + $0x130] sm:$0xf]
    %v3906 = vld [vmem:[#allocation19 + $0x134] sm:$0xf]
    %v3907 = vld [vmem:[#allocation19 + $0x138] sm:$0xf]
    %v3908 = vld [vmem:[#allocation19 + $0x13c] sm:$0xf]
    %v3909 = vld [vmem:[#allocation19 + $0x140] sm:$0xf]
    %v3910 = vld [vmem:[#allocation19 + $0x144] sm:$0xf]
    %v3911 = vld [vmem:[#allocation19 + $0x148] sm:$0xf]
    %v3912 = vld [vmem:[#allocation19 + $0x14c] sm:$0xf]
    %v3913 = vld [vmem:[#allocation19 + $0x150] sm:$0xf]
    %v3914 = vld [vmem:[#allocation19 + $0x154] sm:$0xf]
    %v3915 = vld [vmem:[#allocation19 + $0x158] sm:$0xf]
    %v3916 = vld [vmem:[#allocation19 + $0x15c] sm:$0xf]
    %v3917 = vld [vmem:[#allocation19 + $0x160] sm:$0xf]
    %v3918 = vld [vmem:[#allocation19 + $0x164] sm:$0xf]
    %v3919 = vld [vmem:[#allocation19 + $0x168] sm:$0xf]
    %v3920 = vld [vmem:[#allocation19 + $0x16c] sm:$0xf]
    %v3921 = vld [vmem:[#allocation19 + $0x170] sm:$0xf]
    %v3922 = vld [vmem:[#allocation19 + $0x174] sm:$0xf]
    %v3923 = vld [vmem:[#allocation19 + $0x178] sm:$0xf]
    %v3924 = vld [vmem:[#allocation19 + $0x17c] sm:$0xf]
    %v3925 = vld [vmem:[%s16] sm:$0x1]
    %v3927 = vlaneseq
    %v3928 = vshrl.u32 %v3927, 7
    %v3929 = vsub.s32 0, %v3928
    %v3930 = vrot.slane %v3925, %v3929
    %v4028 = vunpack.c.l.b16 %v3829
    %v4029 = vunpack.c.l.b16 %v3830
    %v4030 = vunpack.c.l.b16 %v3831
    %v4031 = vunpack.c.l.b16 %v3832
    %v4032 = vunpack.c.l.b16 %v3833
    %v4033 = vunpack.c.l.b16 %v3834
    %v4034 = vunpack.c.l.b16 %v3835
    %v4035 = vunpack.c.l.b16 %v3836
    %v4036 = vunpack.c.l.b16 %v3837
    %v4037 = vunpack.c.l.b16 %v3838
    %v4038 = vunpack.c.l.b16 %v3839
    %v4039 = vunpack.c.l.b16 %v3840
    %v4040 = vunpack.c.l.b16 %v3841
    %v4041 = vunpack.c.l.b16 %v3842
    %v4042 = vunpack.c.l.b16 %v3843
    %v4043 = vunpack.c.l.b16 %v3844
    %v4044 = vunpack.c.l.b16 %v3845
    %v4045 = vunpack.c.l.b16 %v3846
    %v4046 = vunpack.c.l.b16 %v3847
    %v4047 = vunpack.c.l.b16 %v3848
    %v4048 = vunpack.c.l.b16 %v3849
    %v4049 = vunpack.c.l.b16 %v3850
    %v4050 = vunpack.c.l.b16 %v3851
    %v4051 = vunpack.c.l.b16 %v3852
    %v4052 = vunpack.c.l.b16 %v3853
    %v4053 = vunpack.c.l.b16 %v3854
    %v4054 = vunpack.c.l.b16 %v3855
    %v4055 = vunpack.c.l.b16 %v3856
    %v4056 = vunpack.c.l.b16 %v3857
    %v4057 = vunpack.c.l.b16 %v3858
    %v4058 = vunpack.c.l.b16 %v3859
    %v4059 = vunpack.c.l.b16 %v3860
    %v4060 = vunpack.c.l.b16 %v3861
    %v4061 = vunpack.c.l.b16 %v3862
    %v4062 = vunpack.c.l.b16 %v3863
    %v4063 = vunpack.c.l.b16 %v3864
    %v4064 = vunpack.c.l.b16 %v3865
    %v4065 = vunpack.c.l.b16 %v3866
    %v4066 = vunpack.c.l.b16 %v3867
    %v4067 = vunpack.c.l.b16 %v3868
    %v4068 = vunpack.c.l.b16 %v3869
    %v4069 = vunpack.c.l.b16 %v3870
    %v4070 = vunpack.c.l.b16 %v3871
    %v4071 = vunpack.c.l.b16 %v3872
    %v4072 = vunpack.c.l.b16 %v3873
    %v4073 = vunpack.c.l.b16 %v3874
    %v4074 = vunpack.c.l.b16 %v3875
    %v4075 = vunpack.c.l.b16 %v3876
    %v4076 = vunpack.c.l.b16 %v3877
    %v4077 = vunpack.c.l.b16 %v3878
    %v4078 = vunpack.c.l.b16 %v3879
    %v4079 = vunpack.c.l.b16 %v3880
    %v4080 = vunpack.c.l.b16 %v3881
    %v4081 = vunpack.c.l.b16 %v3882
    %v4082 = vunpack.c.l.b16 %v3883
    %v4083 = vunpack.c.l.b16 %v3884
    %v4084 = vunpack.c.l.b16 %v3885
    %v4085 = vunpack.c.l.b16 %v3886
    %v4086 = vunpack.c.l.b16 %v3887
    %v4087 = vunpack.c.l.b16 %v3888
    %v4088 = vunpack.c.l.b16 %v3889
    %v4089 = vunpack.c.l.b16 %v3890
    %v4090 = vunpack.c.l.b16 %v3891
    %v4091 = vunpack.c.l.b16 %v3892
    %v4092 = vunpack.c.l.b16 %v3893
    %v4093 = vunpack.c.l.b16 %v3894
    %v4094 = vunpack.c.l.b16 %v3895
    %v4095 = vunpack.c.l.b16 %v3896
    %v4096 = vunpack.c.l.b16 %v3897
    %v4097 = vunpack.c.l.b16 %v3898
    %v4098 = vunpack.c.l.b16 %v3899
    %v4099 = vunpack.c.l.b16 %v3900
    %v4100 = vunpack.c.l.b16 %v3901
    %v4101 = vunpack.c.l.b16 %v3902
    %v4102 = vunpack.c.l.b16 %v3903
    %v4103 = vunpack.c.l.b16 %v3904
    %v4104 = vunpack.c.l.b16 %v3905
    %v4105 = vunpack.c.l.b16 %v3906
    %v4106 = vunpack.c.l.b16 %v3907
    %v4107 = vunpack.c.l.b16 %v3908
    %v4108 = vunpack.c.l.b16 %v3909
    %v4109 = vunpack.c.l.b16 %v3910
    %v4110 = vunpack.c.l.b16 %v3911
    %v4111 = vunpack.c.l.b16 %v3912
    %v4112 = vunpack.c.l.b16 %v3913
    %v4113 = vunpack.c.l.b16 %v3914
    %v4114 = vunpack.c.l.b16 %v3915
    %v4115 = vunpack.c.l.b16 %v3916
    %v4116 = vunpack.c.l.b16 %v3917
    %v4117 = vunpack.c.l.b16 %v3918
    %v4118 = vunpack.c.l.b16 %v3919
    %v4119 = vunpack.c.l.b16 %v3920
    %v4120 = vunpack.c.l.b16 %v3921
    %v4121 = vunpack.c.l.b16 %v3922
    %v4122 = vunpack.c.l.b16 %v3923
    %v4123 = vunpack.c.l.b16 %v3924
    %v4124 = vpack.c.b16 %v4029, %v4028
    %v4125 = vpack.c.b16 %v4031, %v4030
    %v4126 = vpack.c.b16 %v4033, %v4032
    %v4127 = vpack.c.b16 %v4035, %v4034
    %v4128 = vpack.c.b16 %v4037, %v4036
    %v4129 = vpack.c.b16 %v4039, %v4038
    %v4130 = vpack.c.b16 %v4041, %v4040
    %v4131 = vpack.c.b16 %v4043, %v4042
    %v4132 = vpack.c.b16 %v4045, %v4044
    %v4133 = vpack.c.b16 %v4047, %v4046
    %v4134 = vpack.c.b16 %v4049, %v4048
    %v4135 = vpack.c.b16 %v4051, %v4050
    %v4136 = vpack.c.b16 %v4053, %v4052
    %v4137 = vpack.c.b16 %v4055, %v4054
    %v4138 = vpack.c.b16 %v4057, %v4056
    %v4139 = vpack.c.b16 %v4059, %v4058
    %v4140 = vpack.c.b16 %v4061, %v4060
    %v4141 = vpack.c.b16 %v4063, %v4062
    %v4142 = vpack.c.b16 %v4065, %v4064
    %v4143 = vpack.c.b16 %v4067, %v4066
    %v4144 = vpack.c.b16 %v4069, %v4068
    %v4145 = vpack.c.b16 %v4071, %v4070
    %v4146 = vpack.c.b16 %v4073, %v4072
    %v4147 = vpack.c.b16 %v4075, %v4074
    %v4148 = vpack.c.b16 %v4077, %v4076
    %v4149 = vpack.c.b16 %v4079, %v4078
    %v4150 = vpack.c.b16 %v4081, %v4080
    %v4151 = vpack.c.b16 %v4083, %v4082
    %v4152 = vpack.c.b16 %v4085, %v4084
    %v4153 = vpack.c.b16 %v4087, %v4086
    %v4154 = vpack.c.b16 %v4089, %v4088
    %v4155 = vpack.c.b16 %v4091, %v4090
    %v4156 = vpack.c.b16 %v4093, %v4092
    %v4157 = vpack.c.b16 %v4095, %v4094
    %v4158 = vpack.c.b16 %v4097, %v4096
    %v4159 = vpack.c.b16 %v4099, %v4098
    %v4160 = vpack.c.b16 %v4101, %v4100
    %v4161 = vpack.c.b16 %v4103, %v4102
    %v4162 = vpack.c.b16 %v4105, %v4104
    %v4163 = vpack.c.b16 %v4107, %v4106
    %v4164 = vpack.c.b16 %v4109, %v4108
    %v4165 = vpack.c.b16 %v4111, %v4110
    %v4166 = vpack.c.b16 %v4113, %v4112
    %v4167 = vpack.c.b16 %v4115, %v4114
    %v4168 = vpack.c.b16 %v4117, %v4116
    %v4169 = vpack.c.b16 %v4119, %v4118
    %v4170 = vpack.c.b16 %v4121, %v4120
    %v4171 = vpack.c.b16 %v4123, %v4122
    %4220 = vmatprep.subr.bf16.mxu0 0
    %4221 = vmatpush1.bf16.msra.mxu0 %v4131
    %4222 = vmatprep.subr.bf16.mxu0 0
    %4223 = vmatpush1.bf16.msra.mxu0 %v4130
    %4224 = vmatprep.subr.bf16.mxu0 0
    %4225 = vmatpush1.bf16.msra.mxu0 %v4129
    %4226 = vmatprep.subr.bf16.mxu0 0
    %4227 = vmatpush1.bf16.msra.mxu0 %v4128
    %4228 = vmatprep.subr.bf16.mxu0 0
    %4229 = vmatpush1.bf16.msra.mxu0 %v4127
    %4230 = vmatprep.subr.bf16.mxu0 0
    %4231 = vmatpush1.bf16.msra.mxu0 %v4126
    %4232 = vmatprep.subr.bf16.mxu0 0
    %4233 = vmatpush1.bf16.msra.mxu0 %v4125
    %4234 = vmatprep.subr.bf16.mxu0 0
    %4235 = vmatpush1.bf16.msra.mxu0 %v4124
    %4236 = vmatprep.subr.bf16.mxu0 0
    %4237 = vmatpush2.bf16.msra.mxu0 %v4139
    %4238 = vmatprep.subr.bf16.mxu0 0
    %4239 = vmatpush2.bf16.msra.mxu0 %v4138
    %4240 = vmatprep.subr.bf16.mxu0 0
    %4241 = vmatpush2.bf16.msra.mxu0 %v4137
    %4242 = vmatprep.subr.bf16.mxu0 0
    %4243 = vmatpush2.bf16.msra.mxu0 %v4136
    %4244 = vmatprep.subr.bf16.mxu0 0
    %4245 = vmatpush2.bf16.msra.mxu0 %v4135
    %4246 = vmatprep.subr.bf16.mxu0 0
    %4247 = vmatpush2.bf16.msra.mxu0 %v4134
    %4248 = vmatprep.subr.bf16.mxu0 0
    %4249 = vmatpush2.bf16.msra.mxu0 %v4133
    %4250 = vmatprep.subr.bf16.mxu0 0
    %4251 = vmatpush2.bf16.msra.mxu0 %v4132
    %4252 = vmatprep.mubr.bf16.mxu0 %v3818
    %4253 = vmatmul.mubr.bf16.gmra.mxu0 %v3817
    %v4254 = vpop.f32.mrf.mxu0
    %v4255 = vadd.f32 %v3930, %v4254
    %v4256 = vpop.f32.mrf.mxu0
    %v4257 = vpop.f32.mrf.mxu0
    %v4258 = vadd.f32 %v3930, %v4257
    %v4259 = vpop.f32.mrf.mxu0
    %4260 = vmatprep.mubr.bf16.mxu0 %v3824
    %4261 = vmatmul.mubr.bf16.gmra.mxu0 %v3823
    %v4262 = vpop.f32.mrf.mxu0
    %v4263 = vadd.f32 %v3930, %v4262
    %v4264 = vpop.f32.mrf.mxu0
    %v4265 = vpop.f32.mrf.mxu0
    %v4266 = vadd.f32 %v3930, %v4265
    %v4267 = vpop.f32.mrf.mxu0
    %4268 = vdwg.mxu0
    %4269 = vmatprep.subr.bf16.mxu0 0
    %4270 = vmatpush1.bf16.msra.mxu0 %v4147
    %4271 = vmatprep.subr.bf16.mxu0 0
    %4272 = vmatpush1.bf16.msra.mxu0 %v4146
    %4273 = vmatprep.subr.bf16.mxu0 0
    %4274 = vmatpush1.bf16.msra.mxu0 %v4145
    %4275 = vmatprep.subr.bf16.mxu0 0
    %4276 = vmatpush1.bf16.msra.mxu0 %v4144
    %4277 = vmatprep.subr.bf16.mxu0 0
    %4278 = vmatpush1.bf16.msra.mxu0 %v4143
    %4279 = vmatprep.subr.bf16.mxu0 0
    %4280 = vmatpush1.bf16.msra.mxu0 %v4142
    %4281 = vmatprep.subr.bf16.mxu0 0
    %4282 = vmatpush1.bf16.msra.mxu0 %v4141
    %4283 = vmatprep.subr.bf16.mxu0 0
    %4284 = vmatpush1.bf16.msra.mxu0 %v4140
    %4285 = vmatprep.subr.bf16.mxu0 0
    %4286 = vmatpush2.bf16.msra.mxu0 %v4155
    %4287 = vmatprep.subr.bf16.mxu0 0
    %4288 = vmatpush2.bf16.msra.mxu0 %v4154
    %4289 = vmatprep.subr.bf16.mxu0 0
    %4290 = vmatpush2.bf16.msra.mxu0 %v4153
    %4291 = vmatprep.subr.bf16.mxu0 0
    %4292 = vmatpush2.bf16.msra.mxu0 %v4152
    %4293 = vmatprep.subr.bf16.mxu0 0
    %4294 = vmatpush2.bf16.msra.mxu0 %v4151
    %4295 = vmatprep.subr.bf16.mxu0 0
    %4296 = vmatpush2.bf16.msra.mxu0 %v4150
    %4297 = vmatprep.subr.bf16.mxu0 0
    %4298 = vmatpush2.bf16.msra.mxu0 %v4149
    %4299 = vmatprep.subr.bf16.mxu0 0
    %4300 = vmatpush2.bf16.msra.mxu0 %v4148
    %4301 = vmatprep.mubr.bf16.mxu0 %v3820
    %4302 = vmatmul.mubr.bf16.gmra.mxu0 %v3819
    %v4303 = vpop.f32.mrf.mxu0
    %v4304 = vadd.f32 %v4255, %v4303
    %v4305 = vpop.f32.mrf.mxu0
    %v4306 = vpop.f32.mrf.mxu0
    %v4307 = vadd.f32 %v4258, %v4306
    %v4308 = vpop.f32.mrf.mxu0
    %4309 = vmatprep.mubr.bf16.mxu0 %v3826
    %4310 = vmatmul.mubr.bf16.gmra.mxu0 %v3825
    %v4311 = vpop.f32.mrf.mxu0
    %v4312 = vadd.f32 %v4263, %v4311
    %v4313 = vpop.f32.mrf.mxu0
    %v4314 = vpop.f32.mrf.mxu0
    %v4315 = vadd.f32 %v4266, %v4314
    %v4316 = vpop.f32.mrf.mxu0
    %4317 = vdwg.mxu0
    %4318 = vmatprep.subr.bf16.mxu0 0
    %4319 = vmatpush1.bf16.msra.mxu0 %v4163
    %4320 = vmatprep.subr.bf16.mxu0 0
    %4321 = vmatpush1.bf16.msra.mxu0 %v4162
    %4322 = vmatprep.subr.bf16.mxu0 0
    %4323 = vmatpush1.bf16.msra.mxu0 %v4161
    %4324 = vmatprep.subr.bf16.mxu0 0
    %4325 = vmatpush1.bf16.msra.mxu0 %v4160
    %4326 = vmatprep.subr.bf16.mxu0 0
    %4327 = vmatpush1.bf16.msra.mxu0 %v4159
    %4328 = vmatprep.subr.bf16.mxu0 0
    %4329 = vmatpush1.bf16.msra.mxu0 %v4158
    %4330 = vmatprep.subr.bf16.mxu0 0
    %4331 = vmatpush1.bf16.msra.mxu0 %v4157
    %4332 = vmatprep.subr.bf16.mxu0 0
    %4333 = vmatpush1.bf16.msra.mxu0 %v4156
    %4334 = vmatprep.subr.bf16.mxu0 0
    %4335 = vmatpush2.bf16.msra.mxu0 %v4171
    %4336 = vmatprep.subr.bf16.mxu0 0
    %4337 = vmatpush2.bf16.msra.mxu0 %v4170
    %4338 = vmatprep.subr.bf16.mxu0 0
    %4339 = vmatpush2.bf16.msra.mxu0 %v4169
    %4340 = vmatprep.subr.bf16.mxu0 0
    %4341 = vmatpush2.bf16.msra.mxu0 %v4168
    %4342 = vmatprep.subr.bf16.mxu0 0
    %4343 = vmatpush2.bf16.msra.mxu0 %v4167
    %4344 = vmatprep.subr.bf16.mxu0 0
    %4345 = vmatpush2.bf16.msra.mxu0 %v4166
    %4346 = vmatprep.subr.bf16.mxu0 0
    %4347 = vmatpush2.bf16.msra.mxu0 %v4165
    %4348 = vmatprep.subr.bf16.mxu0 0
    %4349 = vmatpush2.bf16.msra.mxu0 %v4164
    %4350 = vmatprep.mubr.bf16.mxu0 %v3822
    %4351 = vmatmul.mubr.bf16.gmra.mxu0 %v3821
    %v4352 = vpop.f32.mrf.mxu0
    %v4353 = vadd.f32 %v4304, %v4352
    %v4354 = vpop.f32.mrf.mxu0
    %v4355 = vpop.f32.mrf.mxu0
    %v4356 = vadd.f32 %v4307, %v4355
    %v4357 = vpop.f32.mrf.mxu0
    %4358 = vmatprep.mubr.bf16.mxu0 %v3828
    %4359 = vmatmul.mubr.bf16.gmra.mxu0 %v3827
    %v4360 = vpop.f32.mrf.mxu0
    %v4361 = vadd.f32 %v4312, %v4360
    %v4362 = vpop.f32.mrf.mxu0
    %v4363 = vpop.f32.mrf.mxu0
    %v4364 = vadd.f32 %v4315, %v4363
    %v4365 = vpop.f32.mrf.mxu0
    %4366 = vdwg.mxu0
    %v4367 = vtanh.pop %v4353
    %v4368 = vtanh.pop %v4356
    %v4369 = vtanh.pop %v4361
    %v4370 = vtanh.pop %v4364
    %v4371 = vlaneseq
    %v4372 = vand.u32 %v4371, 127
    %vm4373 = vcmp.lt.s32.totalorder %v4372, 16
    %vm4374 = vcmp.lt.s32.totalorder %v4372, 32
    %v4375 = vsel %vm4374, %v2158, 0.0
    %v4376 = vsel %vm4374, %v2160, 0.0
    %v4377 = vsel %vm4374, %v2162, 0.0
    %v4378 = vsel %vm4374, %v2164, 0.0
    %v4379 = vsel %vm4373, %v2135, %v4375
    %v4380 = vsel %vm4373, %v2138, %v4376
    %v4381 = vsel %vm4373, %v2143, %v4377
    %v4382 = vsel %vm4373, %v2146, %v4378
    %v4383 = vadd.f32 %v4379, %v4367
    %v4384 = vadd.f32 %v4380, %v4368
    %v4385 = vadd.f32 %v4381, %v4369
    %v4386 = vadd.f32 %v4382, %v4370
    %4387 = vst [vmem:[#allocation20] sm:$0xff] %v4383
    %4388 = vst [vmem:[#allocation20 + $0x8] sm:$0xff] %v4384
    %4389 = vst [vmem:[#allocation20 + $0x10] sm:$0xff] %v4385
    %4390 = vst [vmem:[#allocation20 + $0x18] sm:$0xff] %v4386
    // Predicated region
    $region114: #{tpu_custom_call.1} parent=1 // pred_check
      _
    $region115: #{tpu_custom_call.1} parent=1 // pred_check_branch
      %4392 = sbr.rel (0) target = $region117
    $region116: #{tpu_custom_call.1} parent=1 // pred_region
      %s4394 = ssub.s32 512, 512
      %4395 = vsyncadd [#allocation4], %s4394
      %s4396 = sshll.u32 [#allocation20], 4
      %s4397 = int_to_ptr.vmem [resolvable:$true] %s4396
      %4402 = dma.vmem_to_hbm [thread:$0]  %s4397, 512, %s17, [#allocation4], 128, 128, 8
    $region117: #{tpu_custom_call.1} parent=1 // pred_fallthru
      _
    // Predicated region
    $region118: #{tpu_custom_call.1} parent=1 // pred_check
      _
    $region119: #{tpu_custom_call.1} parent=1 // pred_check_branch
      %4404 = sbr.rel (0) target = $region121
    $region120: #{tpu_custom_call.1} parent=1 // pred_region
      %4405 = dma.done [#allocation4], 512
    $region121: #{tpu_custom_call.1} parent=1 // pred_fallthru
      _
    %4406 = vsyncpa [#allocation3], 1
    %4407 = vsyncpa [#allocation6], 1
    %4408 = vsyncpa [#allocation9], 1
    %4409 = vsyncpa [#allocation12], 1
    %4410 = vsyncpa [#allocation15], 1
    %4411 = vsyncpa [#allocation18], 1
    %4412 = vsyncpa [#allocation4], 1

</llo_original>
